<compile_context>
chip_gen: v6e
topology: v6e:2x2x1
jax: 0.10.0
libtpu: 0.0.40
codegen_flags: <defaults>
</compile_context>

<pallas_src>
import functools

import jax
import jax.numpy as jnp
import numpy as np
from jax.experimental import pallas as pl
from jax.experimental.pallas import tpu as pltpu


def _round_up(x, m):
    return (x + m - 1) // m * m


def _conv_bn_kernel(xpad_ref, w_ref, scale_ref, bias_ref, o_ref, *,
                    TH, W, KH, KW, use_im2col):
    """One (batch, cout-tile, row-tile) grid step.

    xpad_ref : (1, Hp, Wp, Cin)   zero-padded image for this batch (resident
                                  across the inner cout/row grid axes)
    w_ref    : (KH*KW*Cin, TC)    im2col-flattened weights for this cout tile
                                  (residual identity already folded in)
    scale_ref: (1, TC)            folded BN scale  (gamma / sqrt(var + eps))
    bias_ref : (1, TC)            folded BN + conv bias
    o_ref    : (1, TH, W, TC)     lane-dense output tile (TC multiple of 128)
    """
    Cin = xpad_ref.shape[-1]
    TC = o_ref.shape[-1]

    t = pl.program_id(2)                                      # row-tile index
    row0 = pl.multiple_of(t * TH, TH)
    # TH output rows need TH + KH - 1 padded input rows (halo included).
    xs = xpad_ref[0, pl.ds(row0, TH + KH - 1), :, :]          # (TH+KH-1, Wp, Cin)

    if use_im2col:
        # Single deep-K matmul: (TH*W, KH*KW*Cin) @ (KH*KW*Cin, TC).
        # Only used when Cin % 128 == 0 so every tap block is lane aligned.
        taps = []
        for kh in range(KH):
            for kw in range(KW):
                taps.append(xs[kh:kh + TH, kw:kw + W, :].reshape(TH * W, Cin))
        patch = jnp.concatenate(taps, axis=-1)                # (TH*W, KH*KW*Cin)
        acc = jnp.dot(patch, w_ref[...], preferred_element_type=jnp.float32)
    else:
        # Small Cin: building the (e.g.) 72-lane patch needs unaligned lane
        # relayouts comparable to the adds it would remove, so push each tap to
        # the MXU and accumulate in f32 (first tap initializes the accumulator).
        acc = None
        for kh in range(KH):
            for kw in range(KW):
                tap = xs[kh:kh + TH, kw:kw + W, :].reshape(TH * W, Cin)
                k0 = (kh * KW + kw) * Cin
                wk = w_ref[k0:k0 + Cin, :]                    # (Cin, TC)
                d = jnp.dot(tap, wk, preferred_element_type=jnp.float32)
                acc = d if acc is None else acc + d

    # Folded BatchNorm (+ conv bias + residual, already in the weights/bias).
    out = acc * scale_ref[...].astype(jnp.float32) + bias_ref[...].astype(jnp.float32)
    o_ref[...] = out.reshape(1, TH, W, TC).astype(o_ref.dtype)


def conv_bn_forward(x_nchw, w_oihw, conv_bias, gamma, beta, run_mean, run_var,
                    *, residual=False, eps=1e-5, row_tile=None, mxu_dtype=None):
    """Pallas implementation of Conv.forward (NCHW in, NCHW out, eval-mode BN)."""
    N, Cin, H, W = x_nchw.shape
    Cout, Cin_w, KH, KW = w_oihw.shape
    assert Cin_w == Cin, "weight Cin mismatch"
    assert KH % 2 == 1 and KW % 2 == 1, "'same' padding handled for odd kernels"
    if residual:
        assert Cin == Cout, "residual add requires input_channels == output_channels"
    ph, pw = (KH - 1) // 2, (KW - 1) // 2

    # Row tile: target ~256 output rows (2 MXU M-blocks) per step.
    if row_tile is None:
        row_tile = max(1, min(H, 256 // max(W, 1)))
    TH = row_tile
    Ht = _round_up(H, TH)                      # pad H so the row grid divides evenly
    n_row_tiles = Ht // TH

    # Lane-dense output channels: pad Cout to a multiple of 128, tile 128/256 wide.
    Cp = _round_up(Cout, 128)
    TC = 256 if Cp % 256 == 0 else 128
    n_c_tiles = Cp // TC

    # NCHW -> NHWC + zero halo rows/cols (kept in the wrapper for NCHW interface).
    x = jnp.transpose(x_nchw, (0, 2, 3, 1))
    xpad = jnp.pad(x, ((0, 0), (ph, ph + (Ht - H)), (pw, pw), (0, 0)))
    Hp, Wp = Ht + KH - 1, W + 2 * pw

    # OIHW -> (KH*KW*Cin, Cp); fold the residual into the centre tap
    # (conv(x) + x == conv'(x) with identity added to the centre-tap weights).
    w = jnp.transpose(w_oihw, (2, 3, 1, 0)).astype(jnp.float32)   # (KH,KW,Cin,Cout)
    if residual:
        w = w.at[ph, pw].add(jnp.eye(Cin, dtype=w.dtype))
    w2d = jnp.pad(w.reshape(KH * KW * Cin, Cout), ((0, 0), (0, Cp - Cout)))

    # Fold eval-mode BatchNorm + conv bias into per-channel scale / bias:
    #   bn(conv'(x) + b) = scale*conv'(x) + (beta + scale*(b - mean))
    scale = (gamma / jnp.sqrt(run_var + eps)).astype(jnp.float32)
    bias = (beta + scale * (conv_bias - run_mean)).astype(jnp.float32)
    scale_p = jnp.pad(scale, (0, Cp - Cout), constant_values=1.0).reshape(1, Cp)
    bias_p = jnp.pad(bias, (0, Cp - Cout)).reshape(1, Cp)

    if mxu_dtype is not None:                  # e.g. jnp.bfloat16 on v6e/v7x
        xpad = xpad.astype(mxu_dtype)
        w2d = w2d.astype(mxu_dtype)

    use_im2col = (Cin % 128 == 0)              # lane-aligned tap blocks only

    kernel = functools.partial(_conv_bn_kernel, TH=TH, W=W, KH=KH, KW=KW,
                               use_im2col=use_im2col)

    # VMEM budget for the (double-buffered) blocks; clamp to v7x's 64 MiB physical.
    itm = jnp.dtype(xpad.dtype).itemsize
    blk_bytes = (Hp * Wp * Cin * itm + KH * KW * Cin * TC * itm
                 + TH * W * TC * 4 + 2 * Cp * 4)
    vmem_limit = int(min(max(2 * blk_bytes + (4 << 20), 32 << 20), 64 << 20))

    flops = 2 * N * Ht * W * KH * KW * Cin * Cp
    bytes_accessed = int(xpad.size * itm + w2d.size * itm + 2 * Cp * 4
                         + N * Ht * W * Cp * 4)

    out_nhwc = pl.pallas_call(
        kernel,
        out_shape=jax.ShapeDtypeStruct((N, Ht, W, Cp), x_nchw.dtype),
        grid=(N, n_c_tiles, n_row_tiles),
        in_specs=[
            # Whole padded image per batch; block index constant over (c, t), so
            # it is DMA'd once per batch and row-sliced dynamically in the kernel.
            pl.BlockSpec((1, Hp, Wp, Cin), lambda n, c, t: (n, 0, 0, 0)),
            # Weights / scale / bias depend only on the cout tile -> resident
            # across all row tiles of that cout tile.
            pl.BlockSpec((KH * KW * Cin, TC), lambda n, c, t: (0, c)),
            pl.BlockSpec((1, TC), lambda n, c, t: (0, c)),
            pl.BlockSpec((1, TC), lambda n, c, t: (0, c)),
        ],
        out_specs=pl.BlockSpec((1, TH, W, TC), lambda n, c, t: (n, t, 0, c)),
        compiler_params=pltpu.CompilerParams(
            dimension_semantics=("parallel", "parallel", "parallel"),
            vmem_limit_bytes=vmem_limit),
        cost_estimate=pl.CostEstimate(flops=flops, transcendentals=0,
                                      bytes_accessed=bytes_accessed),
    )(xpad, w2d, scale_p, bias_p)

    # Drop the row / channel padding and return to NCHW.
    return jnp.transpose(out_nhwc[:, :H, :, :Cout], (0, 3, 1, 2))


def _reference(x, w, b, gamma, beta, run_mean, run_var, *, residual, eps):
    """Pure-JAX reference mirroring the PyTorch forward (eval-mode BN)."""
    conv = jax.lax.conv_general_dilated(
        x, w, window_strides=(1, 1), padding="SAME",
        dimension_numbers=("NCHW", "OIHW", "NCHW"))
    conv = conv + b[None, :, None, None]
    if residual:
        conv = conv + x
    return (conv - run_mean[None, :, None, None]) / jnp.sqrt(
        run_var[None, :, None, None] + eps) * gamma[None, :, None, None] \
        + beta[None, :, None, None]


def _run_case(key, N, Cin, Cout, H, W, KH, KW, *, residual, eps=1e-5):
    k1, k2, k3, k4, k5, k6, k7 = jax.random.split(key, 7)
    x = jax.random.normal(k1, (N, Cin, H, W), jnp.float32)
    w = 0.1 * jax.random.normal(k2, (Cout, Cin, KH, KW), jnp.float32)   # OIHW
    b = 0.1 * jax.random.normal(k3, (Cout,), jnp.float32)               # conv bias
    gamma = 1.0 + 0.1 * jax.random.normal(k4, (Cout,), jnp.float32)
    beta = 0.1 * jax.random.normal(k5, (Cout,), jnp.float32)
    run_mean = 0.1 * jax.random.normal(k6, (Cout,), jnp.float32)
    run_var = jnp.abs(jax.random.normal(k7, (Cout,), jnp.float32)) + 0.5

    out = conv_bn_forward(x, w, b, gamma, beta, run_mean, run_var,
                          residual=residual, eps=eps)
    out = jax.block_until_ready(out)

    ref = _reference(x, w, b, gamma, beta, run_mean, run_var,
                     residual=residual, eps=eps)
    np.testing.assert_allclose(np.asarray(out), np.asarray(ref),
                               rtol=1e-4, atol=1e-4)


if __name__ == "__main__":
    key = jax.random.PRNGKey(0)
    k_a, k_b = jax.random.split(key, 2)

    # Case 1: small channels (per-tap MXU accumulation path) + residual.
    _run_case(k_a, N=2, Cin=8, Cout=8, H=16, W=16, KH=3, KW=3, residual=True)

    # Case 2: lane-aligned channels (single deep-K im2col matmul path).
    _run_case(k_b, N=1, Cin=128, Cout=128, H=8, W=8, KH=3, KW=3, residual=False)

    print("KERNEL_OK")
</pallas_src>

<mosaic_0001>
module attributes {stable_mosaic.version = 11 : i64} {
  func.func @_conv_bn_kernel(%arg0: i32, %arg1: i32, %arg2: i32, %arg3: memref<1x18x18x8xf32, #tpu.memory_space<vmem>>, %arg4: memref<72x128xf32, #tpu.memory_space<vmem>>, %arg5: memref<1x128xf32, #tpu.memory_space<vmem>>, %arg6: memref<1x128xf32, #tpu.memory_space<vmem>>, %arg7: memref<1x16x16x128xf32, #tpu.memory_space<vmem>>) attributes {dimension_semantics = [#tpu.dimension_semantics<parallel>, #tpu.dimension_semantics<parallel>, #tpu.dimension_semantics<parallel>], iteration_bounds = array<i64: 2, 1, 1>, scalar_prefetch = 0 : i64, scratch_operands = 0 : i64, tpu.core_type = #tpu.core_type<tc>, window_params = [{transform_indices = @transform_0, window_bounds = array<i64: 1, 18, 18, 8>}, {transform_indices = @transform_1, window_bounds = array<i64: 72, 128>}, {transform_indices = @transform_2, window_bounds = array<i64: 1, 128>}, {transform_indices = @transform_3, window_bounds = array<i64: 1, 128>}, {transform_indices = @transform_4, window_bounds = array<i64: 1, 16, 16, 128>}]} {
    %c16_i32 = arith.constant 16 : i32
    %0 = arith.muli %arg2, %c16_i32 : i32
    %1 = tpu.assume_multiple %0, 16 : i32
    %c0 = arith.constant 0 : index
    %2 = arith.index_cast %1 : i32 to index
    %c0_0 = arith.constant 0 : index
    %c0_1 = arith.constant 0 : index
    %3 = vector.load %arg3[%c0, %2, %c0_0, %c0_1] : memref<1x18x18x8xf32, #tpu.memory_space<vmem>>, vector<1x18x18x8xf32>
    %4 = vector.shape_cast %3 : vector<1x18x18x8xf32> to vector<18x18x8xf32>
    %5 = vector.extract_strided_slice %4 {offsets = [0, 0, 0], sizes = [16, 16, 8], strides = [1, 1, 1]} : vector<18x18x8xf32> to vector<16x16x8xf32>
    %6 = vector.shape_cast %5 : vector<16x16x8xf32> to vector<256x8xf32>
    %c0_2 = arith.constant 0 : index
    %c0_3 = arith.constant 0 : index
    %7 = vector.load %arg4[%c0_2, %c0_3] : memref<72x128xf32, #tpu.memory_space<vmem>>, vector<8x128xf32>
    %cst = arith.constant dense<0.000000e+00> : vector<256x128xf32>
    %8 = tpu.matmul %6, %7, %cst {dimension_numbers = #tpu.dot_dimension_numbers<[1], [0], [0], [1], [0, 0, 1, 1], [], []>} : vector<256x8xf32>, vector<8x128xf32>, vector<256x128xf32> -> vector<256x128xf32>
    %9 = vector.extract_strided_slice %4 {offsets = [0, 1, 0], sizes = [16, 16, 8], strides = [1, 1, 1]} : vector<18x18x8xf32> to vector<16x16x8xf32>
    %10 = vector.shape_cast %9 : vector<16x16x8xf32> to vector<256x8xf32>
    %c8 = arith.constant 8 : index
    %c0_4 = arith.constant 0 : index
    %11 = vector.load %arg4[%c8, %c0_4] : memref<72x128xf32, #tpu.memory_space<vmem>>, vector<8x128xf32>
    %cst_5 = arith.constant dense<0.000000e+00> : vector<256x128xf32>
    %12 = tpu.matmul %10, %11, %cst_5 {dimension_numbers = #tpu.dot_dimension_numbers<[1], [0], [0], [1], [0, 0, 1, 1], [], []>} : vector<256x8xf32>, vector<8x128xf32>, vector<256x128xf32> -> vector<256x128xf32>
    %13 = arith.addf %8, %12 : vector<256x128xf32>
    %14 = vector.extract_strided_slice %4 {offsets = [0, 2, 0], sizes = [16, 16, 8], strides = [1, 1, 1]} : vector<18x18x8xf32> to vector<16x16x8xf32>
    %15 = vector.shape_cast %14 : vector<16x16x8xf32> to vector<256x8xf32>
    %c16 = arith.constant 16 : index
    %c0_6 = arith.constant 0 : index
    %16 = vector.load %arg4[%c16, %c0_6] : memref<72x128xf32, #tpu.memory_space<vmem>>, vector<8x128xf32>
    %cst_7 = arith.constant dense<0.000000e+00> : vector<256x128xf32>
    %17 = tpu.matmul %15, %16, %cst_7 {dimension_numbers = #tpu.dot_dimension_numbers<[1], [0], [0], [1], [0, 0, 1, 1], [], []>} : vector<256x8xf32>, vector<8x128xf32>, vector<256x128xf32> -> vector<256x128xf32>
    %18 = arith.addf %13, %17 : vector<256x128xf32>
    %19 = vector.extract_strided_slice %4 {offsets = [1, 0, 0], sizes = [16, 16, 8], strides = [1, 1, 1]} : vector<18x18x8xf32> to vector<16x16x8xf32>
    %20 = vector.shape_cast %19 : vector<16x16x8xf32> to vector<256x8xf32>
    %c24 = arith.constant 24 : index
    %c0_8 = arith.constant 0 : index
    %21 = vector.load %arg4[%c24, %c0_8] : memref<72x128xf32, #tpu.memory_space<vmem>>, vector<8x128xf32>
    %cst_9 = arith.constant dense<0.000000e+00> : vector<256x128xf32>
    %22 = tpu.matmul %20, %21, %cst_9 {dimension_numbers = #tpu.dot_dimension_numbers<[1], [0], [0], [1], [0, 0, 1, 1], [], []>} : vector<256x8xf32>, vector<8x128xf32>, vector<256x128xf32> -> vector<256x128xf32>
    %23 = arith.addf %18, %22 : vector<256x128xf32>
    %24 = vector.extract_strided_slice %4 {offsets = [1, 1, 0], sizes = [16, 16, 8], strides = [1, 1, 1]} : vector<18x18x8xf32> to vector<16x16x8xf32>
    %25 = vector.shape_cast %24 : vector<16x16x8xf32> to vector<256x8xf32>
    %c32 = arith.constant 32 : index
    %c0_10 = arith.constant 0 : index
    %26 = vector.load %arg4[%c32, %c0_10] : memref<72x128xf32, #tpu.memory_space<vmem>>, vector<8x128xf32>
    %cst_11 = arith.constant dense<0.000000e+00> : vector<256x128xf32>
    %27 = tpu.matmul %25, %26, %cst_11 {dimension_numbers = #tpu.dot_dimension_numbers<[1], [0], [0], [1], [0, 0, 1, 1], [], []>} : vector<256x8xf32>, vector<8x128xf32>, vector<256x128xf32> -> vector<256x128xf32>
    %28 = arith.addf %23, %27 : vector<256x128xf32>
    %29 = vector.extract_strided_slice %4 {offsets = [1, 2, 0], sizes = [16, 16, 8], strides = [1, 1, 1]} : vector<18x18x8xf32> to vector<16x16x8xf32>
    %30 = vector.shape_cast %29 : vector<16x16x8xf32> to vector<256x8xf32>
    %c40 = arith.constant 40 : index
    %c0_12 = arith.constant 0 : index
    %31 = vector.load %arg4[%c40, %c0_12] : memref<72x128xf32, #tpu.memory_space<vmem>>, vector<8x128xf32>
    %cst_13 = arith.constant dense<0.000000e+00> : vector<256x128xf32>
    %32 = tpu.matmul %30, %31, %cst_13 {dimension_numbers = #tpu.dot_dimension_numbers<[1], [0], [0], [1], [0, 0, 1, 1], [], []>} : vector<256x8xf32>, vector<8x128xf32>, vector<256x128xf32> -> vector<256x128xf32>
    %33 = arith.addf %28, %32 : vector<256x128xf32>
    %34 = vector.extract_strided_slice %4 {offsets = [2, 0, 0], sizes = [16, 16, 8], strides = [1, 1, 1]} : vector<18x18x8xf32> to vector<16x16x8xf32>
    %35 = vector.shape_cast %34 : vector<16x16x8xf32> to vector<256x8xf32>
    %c48 = arith.constant 48 : index
    %c0_14 = arith.constant 0 : index
    %36 = vector.load %arg4[%c48, %c0_14] : memref<72x128xf32, #tpu.memory_space<vmem>>, vector<8x128xf32>
    %cst_15 = arith.constant dense<0.000000e+00> : vector<256x128xf32>
    %37 = tpu.matmul %35, %36, %cst_15 {dimension_numbers = #tpu.dot_dimension_numbers<[1], [0], [0], [1], [0, 0, 1, 1], [], []>} : vector<256x8xf32>, vector<8x128xf32>, vector<256x128xf32> -> vector<256x128xf32>
    %38 = arith.addf %33, %37 : vector<256x128xf32>
    %39 = vector.extract_strided_slice %4 {offsets = [2, 1, 0], sizes = [16, 16, 8], strides = [1, 1, 1]} : vector<18x18x8xf32> to vector<16x16x8xf32>
    %40 = vector.shape_cast %39 : vector<16x16x8xf32> to vector<256x8xf32>
    %c56 = arith.constant 56 : index
    %c0_16 = arith.constant 0 : index
    %41 = vector.load %arg4[%c56, %c0_16] : memref<72x128xf32, #tpu.memory_space<vmem>>, vector<8x128xf32>
    %cst_17 = arith.constant dense<0.000000e+00> : vector<256x128xf32>
    %42 = tpu.matmul %40, %41, %cst_17 {dimension_numbers = #tpu.dot_dimension_numbers<[1], [0], [0], [1], [0, 0, 1, 1], [], []>} : vector<256x8xf32>, vector<8x128xf32>, vector<256x128xf32> -> vector<256x128xf32>
    %43 = arith.addf %38, %42 : vector<256x128xf32>
    %44 = vector.extract_strided_slice %4 {offsets = [2, 2, 0], sizes = [16, 16, 8], strides = [1, 1, 1]} : vector<18x18x8xf32> to vector<16x16x8xf32>
    %45 = vector.shape_cast %44 : vector<16x16x8xf32> to vector<256x8xf32>
    %c64 = arith.constant 64 : index
    %c0_18 = arith.constant 0 : index
    %46 = vector.load %arg4[%c64, %c0_18] : memref<72x128xf32, #tpu.memory_space<vmem>>, vector<8x128xf32>
    %cst_19 = arith.constant dense<0.000000e+00> : vector<256x128xf32>
    %47 = tpu.matmul %45, %46, %cst_19 {dimension_numbers = #tpu.dot_dimension_numbers<[1], [0], [0], [1], [0, 0, 1, 1], [], []>} : vector<256x8xf32>, vector<8x128xf32>, vector<256x128xf32> -> vector<256x128xf32>
    %48 = arith.addf %43, %47 : vector<256x128xf32>
    %c0_20 = arith.constant 0 : index
    %c0_21 = arith.constant 0 : index
    %49 = vector.load %arg5[%c0_20, %c0_21] : memref<1x128xf32, #tpu.memory_space<vmem>>, vector<1x128xf32>
    %50 = vector.broadcast %49 : vector<1x128xf32> to vector<256x128xf32>
    %51 = arith.mulf %48, %50 : vector<256x128xf32>
    %c0_22 = arith.constant 0 : index
    %c0_23 = arith.constant 0 : index
    %52 = vector.load %arg6[%c0_22, %c0_23] : memref<1x128xf32, #tpu.memory_space<vmem>>, vector<1x128xf32>
    %53 = vector.broadcast %52 : vector<1x128xf32> to vector<256x128xf32>
    %54 = arith.addf %51, %53 : vector<256x128xf32>
    %55 = vector.shape_cast %54 : vector<256x128xf32> to vector<1x16x16x128xf32>
    %c0_24 = arith.constant 0 : index
    %c0_25 = arith.constant 0 : index
    %c0_26 = arith.constant 0 : index
    %c0_27 = arith.constant 0 : index
    %56 = vector.load %arg7[%c0_24, %c0_25, %c0_26, %c0_27] : memref<1x16x16x128xf32, #tpu.memory_space<vmem>>, vector<1x16x16x128xf32>
    tpu.vector_store %arg7[%c0_24, %c0_25, %c0_26, %c0_27], %55 {strides = array<i32>} : memref<1x16x16x128xf32, #tpu.memory_space<vmem>>, vector<1x16x16x128xf32>,
    return
  }
  func.func @transform_0(%arg0: i32, %arg1: i32, %arg2: i32) -> (i32, i32, i32, i32) {
    %c0_i32 = arith.constant 0 : i32
    %c0_i32_0 = arith.constant 0 : i32
    %c0_i32_1 = arith.constant 0 : i32
    %c0_i32_2 = arith.constant 0 : i32
    return %arg0, %c0_i32, %c0_i32_0, %c0_i32_1 : i32, i32, i32, i32
  }
  func.func @transform_1(%arg0: i32, %arg1: i32, %arg2: i32) -> (i32, i32) {
    %c0_i32 = arith.constant 0 : i32
    %c0_i32_0 = arith.constant 0 : i32
    return %c0_i32, %arg1 : i32, i32
  }
  func.func @transform_2(%arg0: i32, %arg1: i32, %arg2: i32) -> (i32, i32) {
    %c0_i32 = arith.constant 0 : i32
    %c0_i32_0 = arith.constant 0 : i32
    return %c0_i32, %arg1 : i32, i32
  }
  func.func @transform_3(%arg0: i32, %arg1: i32, %arg2: i32) -> (i32, i32) {
    %c0_i32 = arith.constant 0 : i32
    %c0_i32_0 = arith.constant 0 : i32
    return %c0_i32, %arg1 : i32, i32
  }
  func.func @transform_4(%arg0: i32, %arg1: i32, %arg2: i32) -> (i32, i32, i32, i32) {
    %c0_i32 = arith.constant 0 : i32
    %c0_i32_0 = arith.constant 0 : i32
    return %arg0, %arg2, %c0_i32, %arg1 : i32, i32, i32, i32
  }
}

</mosaic_0001>

<llo_original>
// kernel: tpu_custom_call.1
$region0: #{tpu_custom_call.1}
  #allocation0 [shape = 'u32[]', space=smem, size = 0x4, offset = 0x4, fixed_abs, tag = 'smem constant byte address 0x4 - core index']
  #allocation1 [shape = 'u32[144,128]{1,0:T(1,128)}', space=vmem, size = 0x12000, scoped, tag = 'internal scratch']
  %s0 = inlined_call_operand.vmem [shape: f32[2,18,18,8], index: 0, kind: input, shape index: {}]
  %s1 = inlined_call_operand.vmem [shape: f32[72,128], index: 1, kind: input, shape index: {}]
  %s2 = inlined_call_operand.vmem [shape: f32[1,128], index: 2, kind: input, shape index: {}]
  %s3 = inlined_call_operand.vmem [shape: f32[1,128], index: 3, kind: input, shape index: {}]
  %s4 = inlined_call_operand.hbm [shape: f32[2,16,16,128], index: 4, kind: output, shape index: {}]
  %s5 = sld [smem:[#allocation0]]
  $region49: #{tpu_custom_call.1} parent=0
    _
  %s7 = ssub.s32 1, %s5
  %s8 = scalar_select 0, %s7, %s5
  $region1: #{tpu_custom_call.1} parent=0
    #allocation2 [shape = 'u8[262144]{0}', space=vmem, size = 0x40000, scoped, tag = 'output window, operand 0']
    #allocation3 [shape = 's32[2]{0}', space=sflag, size = 0x8, scoped, tag = 'scoped memory for tpu_custom_call.1']
    %9 = vsyncpa [#allocation3], 0
    %s10 = scalar_lea.sflag [#allocation3], 1
    %11 = vsyncpa %s10, 0
    loop: start=0, step=1, limit=4
    $region2: #{tpu_custom_call.1} parent=1 // loop_pre_header
      _
    $region3: #{tpu_custom_call.1} parent=1 // loop_header
      %s13 = sphi 0, %s17
      %p14 = scmp.ge.s32.totalorder %s13, 4
      %s20 = sphi 0, %s39
      %s21 = sphi 0, %s35
      %s22 = sphi 0, %s31
      %s23 = sphi 0, %s20
      %s24 = sphi 0, %s21
      %s25 = sphi 0, %s22
      %s26 = sphi 0, %s23
      %s27 = sphi 0, %s24
      %s28 = sphi 0, %s25
      %s42 = sphi 0, %s44
      %s45 = sphi 0, %s42
      %s46 = sphi 0, %s45
      %s62 = sphi 0, %s46
      %s68 = sphi 0, %s70
      %s71 = sphi 0, %s68
      %s72 = sphi 0, %s71
      %s88 = sphi 0, %s72
      %s94 = sphi 0, %s96
      %s97 = sphi 0, %s94
      %s98 = sphi 0, %s97
      %s114 = sphi 0, %s98
      %s120 = sphi 0, %s122
      %s123 = sphi 0, %s120
      %s124 = sphi 0, %s123
      %s140 = sphi 0, %s124
      %s150 = sphi 0, %s152
      %s153 = sphi 0, %s150
      %s154 = sphi 0, %s153
      %s170 = sphi 0, %s154
    $region4: #{tpu_custom_call.1} parent=1 // loop_header_branch
      %16 = sbr.rel (%p14) target = $region8
    $region5: #{tpu_custom_call.1} parent=1 // loop_body
      %s18 = ssub.s32 %s13, 1
      %s19 = ssub.s32 %s13, 2
      %s29 = sadd.s32 1, %s22
      %p30 = scmp.ge.s32.totalorder %s29, 1
      %s31 = scalar_select %p30, 0, %s29
      %s32 = sadd.s32 1, %s21
      %s33 = scalar_select %p30, %s32, %s21
      %p34 = scmp.ge.s32.totalorder %s33, 1
      %s35 = scalar_select %p34, 0, %s33
      %s36 = sadd.s32 1, %s20
      %s37 = scalar_select %p34, %s36, %s20
      %p38 = scmp.ge.s32.totalorder %s37, 2
      %s39 = scalar_select %p38, 0, %s37
      %s40 = ssub.s32 %s20, %s39
      %p41 = scmp.eq.s32.totalorder %s40, 0
      %s43 = sadd.s32 %s42, 1
      %s44 = scalar_select %p41, %s42, %s43
      %p47 = pneg %p41
      %p48 = scmp.eq.s32.totalorder %s13, 1
      %p49 = por %p47, %p48
      %p50 = scmp.ne.s32.totalorder %s42, %s45
      %p51 = scmp.eq.s32.totalorder %s13, 0
      %p52 = por %p50, %p51
      %p53 = scmp.ne.s32.totalorder %s42, %s45
      %p54 = scmp.eq.s32.totalorder %s18, 1
      %p55 = por %p53, %p54
      %p56 = scmp.ne.s32.totalorder %s45, %s46
      %p57 = scmp.eq.s32.totalorder %s18, 0
      %p58 = por %p56, %p57
      %p59 = scmp.ne.s32.totalorder %s45, %s46
      %p60 = scmp.eq.s32.totalorder %s19, 1
      %p61 = por %p59, %p60
      %p63 = scmp.ne.s32.totalorder %s46, %s62
      %p64 = scmp.eq.s32.totalorder %s19, 0
      %p65 = por %p63, %p64
      %s66 = ssub.s32 %s21, %s35
      %p67 = scmp.eq.s32.totalorder %s66, 0
      %s69 = sadd.s32 %s68, 1
      %s70 = scalar_select %p67, %s68, %s69
      %p73 = pneg %p67
      %p74 = scmp.eq.s32.totalorder %s13, 1
      %p75 = por %p73, %p74
      %p76 = scmp.ne.s32.totalorder %s68, %s71
      %p77 = scmp.eq.s32.totalorder %s13, 0
      %p78 = por %p76, %p77
      %p79 = scmp.ne.s32.totalorder %s68, %s71
      %p80 = scmp.eq.s32.totalorder %s18, 1
      %p81 = por %p79, %p80
      %p82 = scmp.ne.s32.totalorder %s71, %s72
      %p83 = scmp.eq.s32.totalorder %s18, 0
      %p84 = por %p82, %p83
      %p85 = scmp.ne.s32.totalorder %s71, %s72
      %p86 = scmp.eq.s32.totalorder %s19, 1
      %p87 = por %p85, %p86
      %p89 = scmp.ne.s32.totalorder %s72, %s88
      %p90 = scmp.eq.s32.totalorder %s19, 0
      %p91 = por %p89, %p90
      %s92 = ssub.s32 %s21, %s35
      %p93 = scmp.eq.s32.totalorder %s92, 0
      %s95 = sadd.s32 %s94, 1
      %s96 = scalar_select %p93, %s94, %s95
      %p99 = pneg %p93
      %p100 = scmp.eq.s32.totalorder %s13, 1
      %p101 = por %p99, %p100
      %p102 = scmp.ne.s32.totalorder %s94, %s97
      %p103 = scmp.eq.s32.totalorder %s13, 0
      %p104 = por %p102, %p103
      %p105 = scmp.ne.s32.totalorder %s94, %s97
      %p106 = scmp.eq.s32.totalorder %s18, 1
      %p107 = por %p105, %p106
      %p108 = scmp.ne.s32.totalorder %s97, %s98
      %p109 = scmp.eq.s32.totalorder %s18, 0
      %p110 = por %p108, %p109
      %p111 = scmp.ne.s32.totalorder %s97, %s98
      %p112 = scmp.eq.s32.totalorder %s19, 1
      %p113 = por %p111, %p112
      %p115 = scmp.ne.s32.totalorder %s98, %s114
      %p116 = scmp.eq.s32.totalorder %s19, 0
      %p117 = por %p115, %p116
      %s118 = ssub.s32 %s21, %s35
      %p119 = scmp.eq.s32.totalorder %s118, 0
      %s121 = sadd.s32 %s120, 1
      %s122 = scalar_select %p119, %s120, %s121
      %p125 = pneg %p119
      %p126 = scmp.eq.s32.totalorder %s13, 1
      %p127 = por %p125, %p126
      %p128 = scmp.ne.s32.totalorder %s120, %s123
      %p129 = scmp.eq.s32.totalorder %s13, 0
      %p130 = por %p128, %p129
      %p131 = scmp.ne.s32.totalorder %s120, %s123
      %p132 = scmp.eq.s32.totalorder %s18, 1
      %p133 = por %p131, %p132
      %p134 = scmp.ne.s32.totalorder %s123, %s124
      %p135 = scmp.eq.s32.totalorder %s18, 0
      %p136 = por %p134, %p135
      %p137 = scmp.ne.s32.totalorder %s123, %s124
      %p138 = scmp.eq.s32.totalorder %s19, 1
      %p139 = por %p137, %p138
      %p141 = scmp.ne.s32.totalorder %s124, %s140
      %p142 = scmp.eq.s32.totalorder %s19, 0
      %p143 = por %p141, %p142
      %s144 = ssub.s32 %s20, %s39
      %s145 = ssub.s32 %s22, %s31
      %s146 = sor.u32 %s144, %s145
      %s147 = ssub.s32 %s21, %s35
      %s148 = sor.u32 %s146, %s147
      %p149 = scmp.eq.s32.totalorder %s148, 0
      %s151 = sadd.s32 %s150, 1
      %s152 = scalar_select %p149, %s150, %s151
      %p155 = pneg %p149
      %p156 = scmp.eq.s32.totalorder %s13, 1
      %p157 = por %p155, %p156
      %p158 = scmp.ne.s32.totalorder %s150, %s153
      %p159 = scmp.eq.s32.totalorder %s13, 0
      %p160 = por %p158, %p159
      %p161 = scmp.ne.s32.totalorder %s150, %s153
      %p162 = scmp.eq.s32.totalorder %s18, 1
      %p163 = por %p161, %p162
      %p164 = scmp.ne.s32.totalorder %s153, %s154
      %p165 = scmp.eq.s32.totalorder %s18, 0
      %p166 = por %p164, %p165
      %p167 = scmp.ne.s32.totalorder %s153, %s154
      %p168 = scmp.eq.s32.totalorder %s19, 1
      %p169 = por %p167, %p168
      %p171 = scmp.ne.s32.totalorder %s154, %s170
      %p172 = scmp.eq.s32.totalorder %s19, 0
      %p173 = por %p171, %p172
      %p174 = scmp.le.s32.totalorder 1, %s13
      %p175 = scmp.lt.s32.totalorder %s13, 3
      %p176 = pnand %p174, %p175
      %p177 = pneg %p176
      // Predicated region
      $region9: #{tpu_custom_call.1} parent=5 // pred_check
        _
      $region10: #{tpu_custom_call.1} parent=5 // pred_check_branch
        %179 = sbr.rel (%p176) target = $region12
      $region11: #{tpu_custom_call.1} parent=5 // pred_region
        %s180 = ssub.s32 %s13, 1
        // Predicated region
        $region13: #{tpu_custom_call.1} parent=11 // pred_check
          %p181 = pneg %p84
        $region14: #{tpu_custom_call.1} parent=11 // pred_check_branch
          %183 = sbr.rel (%p181) target = $region16
        $region15: #{tpu_custom_call.1} parent=11 // pred_region
          %p184 = scmp.lt.s32.totalorder %s24, 0
          %s185 = scalar_select %p184, %s24, 0
          %s186 = smul.addr %s185, 8
          %s187 = scalar_lea.vmem %s1, %s186
        $region16: #{tpu_custom_call.1} parent=11 // pred_fallthru
          _
        // Predicated region
        $region17: #{tpu_custom_call.1} parent=11 // pred_check
          %p188 = pneg %p110
        $region18: #{tpu_custom_call.1} parent=11 // pred_check_branch
          %190 = sbr.rel (%p188) target = $region20
        $region19: #{tpu_custom_call.1} parent=11 // pred_region
          %p191 = scmp.lt.s32.totalorder %s24, 0
          %s192 = scalar_select %p191, %s24, 0
          %s193 = scalar_lea.vmem %s2, %s192
        $region20: #{tpu_custom_call.1} parent=11 // pred_fallthru
          _
        // Predicated region
        $region21: #{tpu_custom_call.1} parent=11 // pred_check
          %p194 = pneg %p136
        $region22: #{tpu_custom_call.1} parent=11 // pred_check_branch
          %196 = sbr.rel (%p194) target = $region24
        $region23: #{tpu_custom_call.1} parent=11 // pred_region
          %p197 = scmp.lt.s32.totalorder %s24, 0
          %s198 = scalar_select %p197, %s24, 0
          %s199 = scalar_lea.vmem %s3, %s198
        $region24: #{tpu_custom_call.1} parent=11 // pred_fallthru
          _
      $region12: #{tpu_custom_call.1} parent=5 // pred_fallthru
        _
      %p200 = scmp.lt.s32.totalorder %s13, 2
      // Predicated region
      $region25: #{tpu_custom_call.1} parent=5 // pred_check
        %p201 = pneg %p200
      $region26: #{tpu_custom_call.1} parent=5 // pred_check_branch
        %203 = sbr.rel (%p201) target = $region28
      $region27: #{tpu_custom_call.1} parent=5 // pred_region
        // Predicated region
        $region29: #{tpu_custom_call.1} parent=27 // pred_check
          %p204 = pneg %p52
        $region30: #{tpu_custom_call.1} parent=27 // pred_check_branch
          %206 = sbr.rel (%p204) target = $region32
        $region31: #{tpu_custom_call.1} parent=27 // pred_region
          %p207 = scmp.lt.s32.totalorder %s20, 1
          %s208 = scalar_select %p207, %s20, 1
          %s209 = smul.addr %s208, 54
          %s210 = smul.addr %s209, 8
          %s211 = scalar_lea.vmem %s0, %s210
        $region32: #{tpu_custom_call.1} parent=27 // pred_fallthru
          _
      $region28: #{tpu_custom_call.1} parent=5 // pred_fallthru
        _
      %p212 = scmp.le.s32.totalorder 1, %s13
      %p213 = scmp.lt.s32.totalorder %s13, 3
      %p214 = pnand %p212, %p213
      %p215 = pneg %p214
      // Predicated region
      $region33: #{tpu_custom_call.1} parent=5 // pred_check
        _
      $region34: #{tpu_custom_call.1} parent=5 // pred_check_branch
        %217 = sbr.rel (%p214) target = $region36
      $region35: #{tpu_custom_call.1} parent=5 // pred_region
        %s218 = ssub.s32 %s13, 1
        %p219 = scmp.lt.s32.totalorder %s23, 1
        %s220 = scalar_select %p219, %s23, 1
        %s221 = smul.addr %s220, 54
        %s222 = smul.addr %s221, 8
        %s223 = scalar_lea.vmem %s0, %s222
        %p224 = pneg %p58
        %p225 = pneg %p55
        %p226 = scmp.lt.s32.totalorder %s24, 0
        %s227 = scalar_select %p226, %s24, 0
        %s228 = smul.addr %s227, 8
        %s229 = scalar_lea.vmem %s1, %s228
        %p230 = pneg %p84
        %p231 = pneg %p81
        %p232 = scmp.lt.s32.totalorder %s24, 0
        %s233 = scalar_select %p232, %s24, 0
        %s234 = scalar_lea.vmem %s2, %s233
        %p235 = pneg %p110
        %p236 = pneg %p107
        %p237 = scmp.lt.s32.totalorder %s24, 0
        %s238 = scalar_select %p237, %s24, 0
        %s239 = scalar_lea.vmem %s3, %s238
        %p240 = pneg %p136
        %p241 = pneg %p133
        %p242 = pneg %p166
        %p243 = pneg %p163
        %s244 = sand.u32 %s153, 1
        %s245 = scalar_lea.sflag [#allocation3], %s244
        %s246 = sand.u32 %s153, 1
        %s247 = smul.addr %s246, 256
        %s248 = scalar_lea.vmem [#allocation2], %s247
        %p249 = scmp.lt.s32.totalorder %s23, 1
        %s250 = scalar_select %p249, %s23, 1
        %s251 = smul.addr %s250, 54
        %s252 = smul.addr %s251, 8
        %s253 = scalar_lea.vmem %s0, %s252
        %p254 = scmp.lt.s32.totalorder %s24, 0
        %s255 = scalar_select %p254, %s24, 0
        %s256 = smul.addr %s255, 8
        %s257 = scalar_lea.vmem %s1, %s256
        %p258 = scmp.lt.s32.totalorder %s24, 0
        %s259 = scalar_select %p258, %s24, 0
        %s260 = scalar_lea.vmem %s2, %s259
        %p261 = scmp.lt.s32.totalorder %s24, 0
        %s262 = scalar_select %p261, %s24, 0
        %s263 = scalar_lea.vmem %s3, %s262
        %s264 = smul.u32 16, %s25
        %s265 = smul.u32 %s25, 16
        %s266 = smul.u32 %s265, 24
        %s267 = scalar_lea.vmem %s253, %s266
        %v268 = vld [vmem:[%s267] sm:$0xff]
        %v269 = vld [vmem:[%s267 + $0x8] sm:$0xff]
        %v270 = vld [vmem:[%s267 + $0x10] sm:$0x3]
        %v271 = vld [vmem:[%s267 + $0x18] sm:$0xff]
        %v272 = vld [vmem:[%s267 + $0x20] sm:$0xff]
        %v273 = vld [vmem:[%s267 + $0x28] sm:$0x3]
        %v274 = vld [vmem:[%s267 + $0x30] sm:$0xff]
        %v275 = vld [vmem:[%s267 + $0x38] sm:$0xff]
        %v276 = vld [vmem:[%s267 + $0x40] sm:$0x3]
        %v277 = vld [vmem:[%s267 + $0x48] sm:$0xff]
        %v278 = vld [vmem:[%s267 + $0x50] sm:$0xff]
        %v279 = vld [vmem:[%s267 + $0x58] sm:$0x3]
        %v280 = vld [vmem:[%s267 + $0x60] sm:$0xff]
        %v281 = vld [vmem:[%s267 + $0x68] sm:$0xff]
        %v282 = vld [vmem:[%s267 + $0x70] sm:$0x3]
        %v283 = vld [vmem:[%s267 + $0x78] sm:$0xff]
        %v284 = vld [vmem:[%s267 + $0x80] sm:$0xff]
        %v285 = vld [vmem:[%s267 + $0x88] sm:$0x3]
        %v286 = vld [vmem:[%s267 + $0x90] sm:$0xff]
        %v287 = vld [vmem:[%s267 + $0x98] sm:$0xff]
        %v288 = vld [vmem:[%s267 + $0xa0] sm:$0x3]
        %v289 = vld [vmem:[%s267 + $0xa8] sm:$0xff]
        %v290 = vld [vmem:[%s267 + $0xb0] sm:$0xff]
        %v291 = vld [vmem:[%s267 + $0xb8] sm:$0x3]
        %v292 = vld [vmem:[%s267 + $0xc0] sm:$0xff]
        %v293 = vld [vmem:[%s267 + $0xc8] sm:$0xff]
        %v294 = vld [vmem:[%s267 + $0xd0] sm:$0x3]
        %v295 = vld [vmem:[%s267 + $0xd8] sm:$0xff]
        %v296 = vld [vmem:[%s267 + $0xe0] sm:$0xff]
        %v297 = vld [vmem:[%s267 + $0xe8] sm:$0x3]
        %v298 = vld [vmem:[%s267 + $0xf0] sm:$0xff]
        %v299 = vld [vmem:[%s267 + $0xf8] sm:$0xff]
        %v300 = vld [vmem:[%s267 + $0x100] sm:$0x3]
        %v301 = vld [vmem:[%s267 + $0x108] sm:$0xff]
        %v302 = vld [vmem:[%s267 + $0x110] sm:$0xff]
        %v303 = vld [vmem:[%s267 + $0x118] sm:$0x3]
        %v304 = vld [vmem:[%s267 + $0x120] sm:$0xff]
        %v305 = vld [vmem:[%s267 + $0x128] sm:$0xff]
        %v306 = vld [vmem:[%s267 + $0x130] sm:$0x3]
        %v307 = vld [vmem:[%s267 + $0x138] sm:$0xff]
        %v308 = vld [vmem:[%s267 + $0x140] sm:$0xff]
        %v309 = vld [vmem:[%s267 + $0x148] sm:$0x3]
        %v310 = vld [vmem:[%s267 + $0x150] sm:$0xff]
        %v311 = vld [vmem:[%s267 + $0x158] sm:$0xff]
        %v312 = vld [vmem:[%s267 + $0x160] sm:$0x3]
        %v313 = vld [vmem:[%s267 + $0x168] sm:$0xff]
        %v314 = vld [vmem:[%s267 + $0x170] sm:$0xff]
        %v315 = vld [vmem:[%s267 + $0x178] sm:$0x3]
        %v316 = vld [vmem:[%s267 + $0x180] sm:$0xff]
        %v317 = vld [vmem:[%s267 + $0x188] sm:$0xff]
        %v318 = vld [vmem:[%s267 + $0x190] sm:$0x3]
        %v319 = vld [vmem:[%s267 + $0x198] sm:$0xff]
        %v320 = vld [vmem:[%s267 + $0x1a0] sm:$0xff]
        %v321 = vld [vmem:[%s267 + $0x1a8] sm:$0x3]
        %v322 = vld [vmem:[%s257] sm:$0xff]
        %vm371 = vcmask 1046528
        %v372 = vrot.slane %v268, 1
        %v373 = vrot.slane %v269, 1
        %v374 = vsel %vm371, %v372, %v373
        %v375 = vrot.slane %v270, 1
        %v376 = vsel %vm371, %v373, %v375
        %v377 = vrot.slane %v271, 1
        %v378 = vrot.slane %v272, 1
        %v379 = vsel %vm371, %v377, %v378
        %v380 = vrot.slane %v273, 1
        %v381 = vsel %vm371, %v378, %v380
        %v382 = vrot.slane %v274, 1
        %v383 = vrot.slane %v275, 1
        %v384 = vsel %vm371, %v382, %v383
        %v385 = vrot.slane %v276, 1
        %v386 = vsel %vm371, %v383, %v385
        %v387 = vrot.slane %v277, 1
        %v388 = vrot.slane %v278, 1
        %v389 = vsel %vm371, %v387, %v388
        %v390 = vrot.slane %v279, 1
        %v391 = vsel %vm371, %v388, %v390
        %v392 = vrot.slane %v280, 1
        %v393 = vrot.slane %v281, 1
        %v394 = vsel %vm371, %v392, %v393
        %v395 = vrot.slane %v282, 1
        %v396 = vsel %vm371, %v393, %v395
        %v397 = vrot.slane %v283, 1
        %v398 = vrot.slane %v284, 1
        %v399 = vsel %vm371, %v397, %v398
        %v400 = vrot.slane %v285, 1
        %v401 = vsel %vm371, %v398, %v400
        %v402 = vrot.slane %v286, 1
        %v403 = vrot.slane %v287, 1
        %v404 = vsel %vm371, %v402, %v403
        %v405 = vrot.slane %v288, 1
        %v406 = vsel %vm371, %v403, %v405
        %v407 = vrot.slane %v289, 1
        %v408 = vrot.slane %v290, 1
        %v409 = vsel %vm371, %v407, %v408
        %v410 = vrot.slane %v291, 1
        %v411 = vsel %vm371, %v408, %v410
        %v412 = vrot.slane %v292, 1
        %v413 = vrot.slane %v293, 1
        %v414 = vsel %vm371, %v412, %v413
        %v415 = vrot.slane %v294, 1
        %v416 = vsel %vm371, %v413, %v415
        %v417 = vrot.slane %v295, 1
        %v418 = vrot.slane %v296, 1
        %v419 = vsel %vm371, %v417, %v418
        %v420 = vrot.slane %v297, 1
        %v421 = vsel %vm371, %v418, %v420
        %v422 = vrot.slane %v298, 1
        %v423 = vrot.slane %v299, 1
        %v424 = vsel %vm371, %v422, %v423
        %v425 = vrot.slane %v300, 1
        %v426 = vsel %vm371, %v423, %v425
        %v427 = vrot.slane %v301, 1
        %v428 = vrot.slane %v302, 1
        %v429 = vsel %vm371, %v427, %v428
        %v430 = vrot.slane %v303, 1
        %v431 = vsel %vm371, %v428, %v430
        %v432 = vrot.slane %v304, 1
        %v433 = vrot.slane %v305, 1
        %v434 = vsel %vm371, %v432, %v433
        %v435 = vrot.slane %v306, 1
        %v436 = vsel %vm371, %v433, %v435
        %v437 = vrot.slane %v307, 1
        %v438 = vrot.slane %v308, 1
        %v439 = vsel %vm371, %v437, %v438
        %v440 = vrot.slane %v309, 1
        %v441 = vsel %vm371, %v438, %v440
        %v442 = vrot.slane %v310, 1
        %v443 = vrot.slane %v311, 1
        %v444 = vsel %vm371, %v442, %v443
        %v445 = vrot.slane %v312, 1
        %v446 = vsel %vm371, %v443, %v445
        %v447 = vrot.slane %v313, 1
        %v448 = vrot.slane %v314, 1
        %v449 = vsel %vm371, %v447, %v448
        %v450 = vrot.slane %v315, 1
        %v451 = vsel %vm371, %v448, %v450
        %v452 = vld [vmem:[%s257 + $0x8] sm:$0xff]
        %vm453 = vcmask 64512
        %v454 = vsel %vm453, %v374, 0
        %v456 = vsel %vm453, %v376, 0
        %v458 = vsel %vm453, %v379, 0
        %v460 = vsel %vm453, %v381, 0
        %v462 = vsel %vm453, %v384, 0
        %v464 = vsel %vm453, %v386, 0
        %v466 = vsel %vm453, %v389, 0
        %v468 = vsel %vm453, %v391, 0
        %v470 = vsel %vm453, %v394, 0
        %v472 = vsel %vm453, %v396, 0
        %v474 = vsel %vm453, %v399, 0
        %v476 = vsel %vm453, %v401, 0
        %v478 = vsel %vm453, %v404, 0
        %v480 = vsel %vm453, %v406, 0
        %v482 = vsel %vm453, %v409, 0
        %v484 = vsel %vm453, %v411, 0
        %v486 = vsel %vm453, %v414, 0
        %v488 = vsel %vm453, %v416, 0
        %v490 = vsel %vm453, %v419, 0
        %v492 = vsel %vm453, %v421, 0
        %v494 = vsel %vm453, %v424, 0
        %v496 = vsel %vm453, %v426, 0
        %v498 = vsel %vm453, %v429, 0
        %v500 = vsel %vm453, %v431, 0
        %v502 = vsel %vm453, %v434, 0
        %v504 = vsel %vm453, %v436, 0
        %v506 = vsel %vm453, %v439, 0
        %v508 = vsel %vm453, %v441, 0
        %v510 = vsel %vm453, %v444, 0
        %v512 = vsel %vm453, %v446, 0
        %v514 = vsel %vm453, %v449, 0
        %v516 = vsel %vm453, %v451, 0
        %518 = vmatprep.subr.mxu0 0.0
        %519 = vmatpush1.msra.mxu0 0.0
        %520 = vmatprep.subr.mxu0 0.0
        %521 = vmatpush1.msra.mxu0 0.0
        %522 = vmatprep.subr.mxu0 0.0
        %523 = vmatpush1.msra.mxu0 0.0
        %524 = vmatprep.subr.mxu0 0.0
        %525 = vmatpush1.msra.mxu0 0.0
        %526 = vmatprep.subr.mxu0 0.0
        %527 = vmatpush1.msra.mxu0 0.0
        %528 = vmatprep.subr.mxu0 0.0
        %529 = vmatpush1.msra.mxu0 0.0
        %530 = vmatprep.subr.mxu0 0.0
        %531 = vmatpush1.msra.mxu0 0.0
        %532 = vmatprep.subr.mxu0 0.0
        %533 = vmatpush1.msra.mxu0 0.0
        %534 = vmatprep.subr.mxu0 0.0
        %535 = vmatpush1.msra.mxu0 0.0
        %536 = vmatprep.subr.mxu0 0.0
        %537 = vmatpush1.msra.mxu0 0.0
        %538 = vmatprep.subr.mxu0 0.0
        %539 = vmatpush1.msra.mxu0 0.0
        %540 = vmatprep.subr.mxu0 0.0
        %541 = vmatpush1.msra.mxu0 0.0
        %542 = vmatprep.subr.mxu0 0.0
        %543 = vmatpush1.msra.mxu0 0.0
        %544 = vmatprep.subr.mxu0 0.0
        %545 = vmatpush1.msra.mxu0 0.0
        %546 = vmatprep.subr.mxu0 0.0
        %547 = vmatpush1.msra.mxu0 0.0
        %548 = vmatprep.subr.mxu0 0.0
        %549 = vmatpush1.msra.mxu0 %v452
        %550 = vmatprep.subr.mxu0 0.0
        %551 = vmatpush2.msra.mxu0 0.0
        %552 = vmatprep.subr.mxu0 0.0
        %553 = vmatpush2.msra.mxu0 0.0
        %554 = vmatprep.subr.mxu0 0.0
        %555 = vmatpush2.msra.mxu0 0.0
        %556 = vmatprep.subr.mxu0 0.0
        %557 = vmatpush2.msra.mxu0 0.0
        %558 = vmatprep.subr.mxu0 0.0
        %559 = vmatpush2.msra.mxu0 0.0
        %560 = vmatprep.subr.mxu0 0.0
        %561 = vmatpush2.msra.mxu0 0.0
        %562 = vmatprep.subr.mxu0 0.0
        %563 = vmatpush2.msra.mxu0 0.0
        %564 = vmatprep.subr.mxu0 0.0
        %565 = vmatpush2.msra.mxu0 0.0
        %566 = vmatprep.subr.mxu0 0.0
        %567 = vmatpush2.msra.mxu0 0.0
        %568 = vmatprep.subr.mxu0 0.0
        %569 = vmatpush2.msra.mxu0 0.0
        %570 = vmatprep.subr.mxu0 0.0
        %571 = vmatpush2.msra.mxu0 0.0
        %572 = vmatprep.subr.mxu0 0.0
        %573 = vmatpush2.msra.mxu0 0.0
        %574 = vmatprep.subr.mxu0 0.0
        %575 = vmatpush2.msra.mxu0 0.0
        %576 = vmatprep.subr.mxu0 0.0
        %577 = vmatpush2.msra.mxu0 0.0
        %578 = vmatprep.subr.mxu0 0.0
        %579 = vmatpush2.msra.mxu0 0.0
        %580 = vmatprep.subr.mxu0 0.0
        %581 = vmatpush2.msra.mxu0 0.0
        %582 = vmatprep.mubr.f32.mxu0 0.0
        %583 = vmatmul.mubr.f32.gmra.mxu0 %v454
        %v584 = vpop.f32.mrf.mxu0
        %v585 = vadd.f32 0.0, %v584
        %v586 = vpop.f32.mrf.mxu0
        %587 = vmatprep.mubr.f32.mxu0 0.0
        %588 = vmatmul.mubr.f32.gmra.mxu0 %v456
        %v589 = vpop.f32.mrf.mxu0
        %v590 = vadd.f32 0.0, %v589
        %v591 = vpop.f32.mrf.mxu0
        %592 = vmatprep.mubr.f32.mxu0 0.0
        %593 = vmatmul.mubr.f32.gmra.mxu0 %v458
        %v594 = vpop.f32.mrf.mxu0
        %v595 = vadd.f32 0.0, %v594
        %v596 = vpop.f32.mrf.mxu0
        %597 = vmatprep.mubr.f32.mxu0 0.0
        %598 = vmatmul.mubr.f32.gmra.mxu0 %v460
        %v599 = vpop.f32.mrf.mxu0
        %v600 = vadd.f32 0.0, %v599
        %v601 = vpop.f32.mrf.mxu0
        %602 = vmatprep.mubr.f32.mxu0 0.0
        %603 = vmatmul.mubr.f32.gmra.mxu0 %v462
        %v604 = vpop.f32.mrf.mxu0
        %v605 = vadd.f32 0.0, %v604
        %v606 = vpop.f32.mrf.mxu0
        %607 = vmatprep.mubr.f32.mxu0 0.0
        %608 = vmatmul.mubr.f32.gmra.mxu0 %v464
        %v609 = vpop.f32.mrf.mxu0
        %v610 = vadd.f32 0.0, %v609
        %v611 = vpop.f32.mrf.mxu0
        %612 = vmatprep.mubr.f32.mxu0 0.0
        %613 = vmatmul.mubr.f32.gmra.mxu0 %v466
        %v614 = vpop.f32.mrf.mxu0
        %v615 = vadd.f32 0.0, %v614
        %v616 = vpop.f32.mrf.mxu0
        %617 = vmatprep.mubr.f32.mxu0 0.0
        %618 = vmatmul.mubr.f32.gmra.mxu0 %v468
        %v619 = vpop.f32.mrf.mxu0
        %v620 = vadd.f32 0.0, %v619
        %v621 = vpop.f32.mrf.mxu0
        %622 = vmatprep.mubr.f32.mxu0 0.0
        %623 = vmatmul.mubr.f32.gmra.mxu0 %v470
        %v624 = vpop.f32.mrf.mxu0
        %v625 = vadd.f32 0.0, %v624
        %v626 = vpop.f32.mrf.mxu0
        %627 = vmatprep.mubr.f32.mxu0 0.0
        %628 = vmatmul.mubr.f32.gmra.mxu0 %v472
        %v629 = vpop.f32.mrf.mxu0
        %v630 = vadd.f32 0.0, %v629
        %v631 = vpop.f32.mrf.mxu0
        %632 = vmatprep.mubr.f32.mxu0 0.0
        %633 = vmatmul.mubr.f32.gmra.mxu0 %v474
        %v634 = vpop.f32.mrf.mxu0
        %v635 = vadd.f32 0.0, %v634
        %v636 = vpop.f32.mrf.mxu0
        %637 = vmatprep.mubr.f32.mxu0 0.0
        %638 = vmatmul.mubr.f32.gmra.mxu0 %v476
        %v639 = vpop.f32.mrf.mxu0
        %v640 = vadd.f32 0.0, %v639
        %v641 = vpop.f32.mrf.mxu0
        %642 = vmatprep.mubr.f32.mxu0 0.0
        %643 = vmatmul.mubr.f32.gmra.mxu0 %v478
        %v644 = vpop.f32.mrf.mxu0
        %v645 = vadd.f32 0.0, %v644
        %v646 = vpop.f32.mrf.mxu0
        %647 = vmatprep.mubr.f32.mxu0 0.0
        %648 = vmatmul.mubr.f32.gmra.mxu0 %v480
        %v649 = vpop.f32.mrf.mxu0
        %v650 = vadd.f32 0.0, %v649
        %v651 = vpop.f32.mrf.mxu0
        %652 = vmatprep.mubr.f32.mxu0 0.0
        %653 = vmatmul.mubr.f32.gmra.mxu0 %v482
        %v654 = vpop.f32.mrf.mxu0
        %v655 = vadd.f32 0.0, %v654
        %v656 = vpop.f32.mrf.mxu0
        %657 = vmatprep.mubr.f32.mxu0 0.0
        %658 = vmatmul.mubr.f32.gmra.mxu0 %v484
        %v659 = vpop.f32.mrf.mxu0
        %v660 = vadd.f32 0.0, %v659
        %v661 = vpop.f32.mrf.mxu0
        %662 = vmatprep.mubr.f32.mxu0 0.0
        %663 = vmatmul.mubr.f32.gmra.mxu0 %v486
        %v664 = vpop.f32.mrf.mxu0
        %v665 = vadd.f32 0.0, %v664
        %v666 = vpop.f32.mrf.mxu0
        %667 = vmatprep.mubr.f32.mxu0 0.0
        %668 = vmatmul.mubr.f32.gmra.mxu0 %v488
        %v669 = vpop.f32.mrf.mxu0
        %v670 = vadd.f32 0.0, %v669
        %v671 = vpop.f32.mrf.mxu0
        %672 = vmatprep.mubr.f32.mxu0 0.0
        %673 = vmatmul.mubr.f32.gmra.mxu0 %v490
        %v674 = vpop.f32.mrf.mxu0
        %v675 = vadd.f32 0.0, %v674
        %v676 = vpop.f32.mrf.mxu0
        %677 = vmatprep.mubr.f32.mxu0 0.0
        %678 = vmatmul.mubr.f32.gmra.mxu0 %v492
        %v679 = vpop.f32.mrf.mxu0
        %v680 = vadd.f32 0.0, %v679
        %v681 = vpop.f32.mrf.mxu0
        %682 = vmatprep.mubr.f32.mxu0 0.0
        %683 = vmatmul.mubr.f32.gmra.mxu0 %v494
        %v684 = vpop.f32.mrf.mxu0
        %v685 = vadd.f32 0.0, %v684
        %v686 = vpop.f32.mrf.mxu0
        %687 = vmatprep.mubr.f32.mxu0 0.0
        %688 = vmatmul.mubr.f32.gmra.mxu0 %v496
        %v689 = vpop.f32.mrf.mxu0
        %v690 = vadd.f32 0.0, %v689
        %v691 = vpop.f32.mrf.mxu0
        %692 = vmatprep.mubr.f32.mxu0 0.0
        %693 = vmatmul.mubr.f32.gmra.mxu0 %v498
        %v694 = vpop.f32.mrf.mxu0
        %v695 = vadd.f32 0.0, %v694
        %v696 = vpop.f32.mrf.mxu0
        %697 = vmatprep.mubr.f32.mxu0 0.0
        %698 = vmatmul.mubr.f32.gmra.mxu0 %v500
        %v699 = vpop.f32.mrf.mxu0
        %v700 = vadd.f32 0.0, %v699
        %v701 = vpop.f32.mrf.mxu0
        %702 = vmatprep.mubr.f32.mxu0 0.0
        %703 = vmatmul.mubr.f32.gmra.mxu0 %v502
        %v704 = vpop.f32.mrf.mxu0
        %v705 = vadd.f32 0.0, %v704
        %v706 = vpop.f32.mrf.mxu0
        %707 = vmatprep.mubr.f32.mxu0 0.0
        %708 = vmatmul.mubr.f32.gmra.mxu0 %v504
        %v709 = vpop.f32.mrf.mxu0
        %v710 = vadd.f32 0.0, %v709
        %v711 = vpop.f32.mrf.mxu0
        %712 = vmatprep.mubr.f32.mxu0 0.0
        %713 = vmatmul.mubr.f32.gmra.mxu0 %v506
        %v714 = vpop.f32.mrf.mxu0
        %v715 = vadd.f32 0.0, %v714
        %v716 = vpop.f32.mrf.mxu0
        %717 = vmatprep.mubr.f32.mxu0 0.0
        %718 = vmatmul.mubr.f32.gmra.mxu0 %v508
        %v719 = vpop.f32.mrf.mxu0
        %v720 = vadd.f32 0.0, %v719
        %v721 = vpop.f32.mrf.mxu0
        %722 = vmatprep.mubr.f32.mxu0 0.0
        %723 = vmatmul.mubr.f32.gmra.mxu0 %v510
        %v724 = vpop.f32.mrf.mxu0
        %v725 = vadd.f32 0.0, %v724
        %v726 = vpop.f32.mrf.mxu0
        %727 = vmatprep.mubr.f32.mxu0 0.0
        %728 = vmatmul.mubr.f32.gmra.mxu0 %v512
        %v729 = vpop.f32.mrf.mxu0
        %v730 = vadd.f32 0.0, %v729
        %v731 = vpop.f32.mrf.mxu0
        %732 = vmatprep.mubr.f32.mxu0 0.0
        %733 = vmatmul.mubr.f32.gmra.mxu0 %v514
        %v734 = vpop.f32.mrf.mxu0
        %v735 = vadd.f32 0.0, %v734
        %v736 = vpop.f32.mrf.mxu0
        %737 = vmatprep.mubr.f32.mxu0 0.0
        %738 = vmatmul.mubr.f32.gmra.mxu0 %v516
        %v739 = vpop.f32.mrf.mxu0
        %v740 = vadd.f32 0.0, %v739
        %v741 = vpop.f32.mrf.mxu0
        %742 = vdwg.mxu0
        %v743 = vsel %vm453, %v268, 0
        %v745 = vsel %vm453, %v269, 0
        %v747 = vsel %vm453, %v271, 0
        %v749 = vsel %vm453, %v272, 0
        %v751 = vsel %vm453, %v274, 0
        %v753 = vsel %vm453, %v275, 0
        %v755 = vsel %vm453, %v277, 0
        %v757 = vsel %vm453, %v278, 0
        %v759 = vsel %vm453, %v280, 0
        %v761 = vsel %vm453, %v281, 0
        %v763 = vsel %vm453, %v283, 0
        %v765 = vsel %vm453, %v284, 0
        %v767 = vsel %vm453, %v286, 0
        %v769 = vsel %vm453, %v287, 0
        %v771 = vsel %vm453, %v289, 0
        %v773 = vsel %vm453, %v290, 0
        %v775 = vsel %vm453, %v292, 0
        %v777 = vsel %vm453, %v293, 0
        %v779 = vsel %vm453, %v295, 0
        %v781 = vsel %vm453, %v296, 0
        %v783 = vsel %vm453, %v298, 0
        %v785 = vsel %vm453, %v299, 0
        %v787 = vsel %vm453, %v301, 0
        %v789 = vsel %vm453, %v302, 0
        %v791 = vsel %vm453, %v304, 0
        %v793 = vsel %vm453, %v305, 0
        %v795 = vsel %vm453, %v307, 0
        %v797 = vsel %vm453, %v308, 0
        %v799 = vsel %vm453, %v310, 0
        %v801 = vsel %vm453, %v311, 0
        %v803 = vsel %vm453, %v313, 0
        %v805 = vsel %vm453, %v314, 0
        %807 = vmatprep.subr.mxu0 0.0
        %808 = vmatpush1.msra.mxu0 0.0
        %809 = vmatprep.subr.mxu0 0.0
        %810 = vmatpush1.msra.mxu0 0.0
        %811 = vmatprep.subr.mxu0 0.0
        %812 = vmatpush1.msra.mxu0 0.0
        %813 = vmatprep.subr.mxu0 0.0
        %814 = vmatpush1.msra.mxu0 0.0
        %815 = vmatprep.subr.mxu0 0.0
        %816 = vmatpush1.msra.mxu0 0.0
        %817 = vmatprep.subr.mxu0 0.0
        %818 = vmatpush1.msra.mxu0 0.0
        %819 = vmatprep.subr.mxu0 0.0
        %820 = vmatpush1.msra.mxu0 0.0
        %821 = vmatprep.subr.mxu0 0.0
        %822 = vmatpush1.msra.mxu0 0.0
        %823 = vmatprep.subr.mxu0 0.0
        %824 = vmatpush1.msra.mxu0 0.0
        %825 = vmatprep.subr.mxu0 0.0
        %826 = vmatpush1.msra.mxu0 0.0
        %827 = vmatprep.subr.mxu0 0.0
        %828 = vmatpush1.msra.mxu0 0.0
        %829 = vmatprep.subr.mxu0 0.0
        %830 = vmatpush1.msra.mxu0 0.0
        %831 = vmatprep.subr.mxu0 0.0
        %832 = vmatpush1.msra.mxu0 0.0
        %833 = vmatprep.subr.mxu0 0.0
        %834 = vmatpush1.msra.mxu0 0.0
        %835 = vmatprep.subr.mxu0 0.0
        %836 = vmatpush1.msra.mxu0 0.0
        %837 = vmatprep.subr.mxu0 0.0
        %838 = vmatpush1.msra.mxu0 %v322
        %839 = vmatprep.subr.mxu0 0.0
        %840 = vmatpush2.msra.mxu0 0.0
        %841 = vmatprep.subr.mxu0 0.0
        %842 = vmatpush2.msra.mxu0 0.0
        %843 = vmatprep.subr.mxu0 0.0
        %844 = vmatpush2.msra.mxu0 0.0
        %845 = vmatprep.subr.mxu0 0.0
        %846 = vmatpush2.msra.mxu0 0.0
        %847 = vmatprep.subr.mxu0 0.0
        %848 = vmatpush2.msra.mxu0 0.0
        %849 = vmatprep.subr.mxu0 0.0
        %850 = vmatpush2.msra.mxu0 0.0
        %851 = vmatprep.subr.mxu0 0.0
        %852 = vmatpush2.msra.mxu0 0.0
        %853 = vmatprep.subr.mxu0 0.0
        %854 = vmatpush2.msra.mxu0 0.0
        %855 = vmatprep.subr.mxu0 0.0
        %856 = vmatpush2.msra.mxu0 0.0
        %857 = vmatprep.subr.mxu0 0.0
        %858 = vmatpush2.msra.mxu0 0.0
        %859 = vmatprep.subr.mxu0 0.0
        %860 = vmatpush2.msra.mxu0 0.0
        %861 = vmatprep.subr.mxu0 0.0
        %862 = vmatpush2.msra.mxu0 0.0
        %863 = vmatprep.subr.mxu0 0.0
        %864 = vmatpush2.msra.mxu0 0.0
        %865 = vmatprep.subr.mxu0 0.0
        %866 = vmatpush2.msra.mxu0 0.0
        %867 = vmatprep.subr.mxu0 0.0
        %868 = vmatpush2.msra.mxu0 0.0
        %869 = vmatprep.subr.mxu0 0.0
        %870 = vmatpush2.msra.mxu0 0.0
        %871 = vmatprep.mubr.f32.mxu0 0.0
        %872 = vmatmul.mubr.f32.gmra.mxu0 %v743
        %v873 = vpop.f32.mrf.mxu0
        %v874 = vadd.f32 %v585, %v873
        %v875 = vpop.f32.mrf.mxu0
        %876 = vmatprep.mubr.f32.mxu0 0.0
        %877 = vmatmul.mubr.f32.gmra.mxu0 %v745
        %v878 = vpop.f32.mrf.mxu0
        %v879 = vadd.f32 %v590, %v878
        %v880 = vpop.f32.mrf.mxu0
        %881 = vmatprep.mubr.f32.mxu0 0.0
        %882 = vmatmul.mubr.f32.gmra.mxu0 %v747
        %v883 = vpop.f32.mrf.mxu0
        %v884 = vadd.f32 %v595, %v883
        %v885 = vpop.f32.mrf.mxu0
        %886 = vmatprep.mubr.f32.mxu0 0.0
        %887 = vmatmul.mubr.f32.gmra.mxu0 %v749
        %v888 = vpop.f32.mrf.mxu0
        %v889 = vadd.f32 %v600, %v888
        %v890 = vpop.f32.mrf.mxu0
        %891 = vmatprep.mubr.f32.mxu0 0.0
        %892 = vmatmul.mubr.f32.gmra.mxu0 %v751
        %v893 = vpop.f32.mrf.mxu0
        %v894 = vadd.f32 %v605, %v893
        %v895 = vpop.f32.mrf.mxu0
        %896 = vmatprep.mubr.f32.mxu0 0.0
        %897 = vmatmul.mubr.f32.gmra.mxu0 %v753
        %v898 = vpop.f32.mrf.mxu0
        %v899 = vadd.f32 %v610, %v898
        %v900 = vpop.f32.mrf.mxu0
        %901 = vmatprep.mubr.f32.mxu0 0.0
        %902 = vmatmul.mubr.f32.gmra.mxu0 %v755
        %v903 = vpop.f32.mrf.mxu0
        %v904 = vadd.f32 %v615, %v903
        %v905 = vpop.f32.mrf.mxu0
        %906 = vmatprep.mubr.f32.mxu0 0.0
        %907 = vmatmul.mubr.f32.gmra.mxu0 %v757
        %v908 = vpop.f32.mrf.mxu0
        %v909 = vadd.f32 %v620, %v908
        %v910 = vpop.f32.mrf.mxu0
        %911 = vmatprep.mubr.f32.mxu0 0.0
        %912 = vmatmul.mubr.f32.gmra.mxu0 %v759
        %v913 = vpop.f32.mrf.mxu0
        %v914 = vadd.f32 %v625, %v913
        %v915 = vpop.f32.mrf.mxu0
        %916 = vmatprep.mubr.f32.mxu0 0.0
        %917 = vmatmul.mubr.f32.gmra.mxu0 %v761
        %v918 = vpop.f32.mrf.mxu0
        %v919 = vadd.f32 %v630, %v918
        %v920 = vpop.f32.mrf.mxu0
        %921 = vmatprep.mubr.f32.mxu0 0.0
        %922 = vmatmul.mubr.f32.gmra.mxu0 %v763
        %v923 = vpop.f32.mrf.mxu0
        %v924 = vadd.f32 %v635, %v923
        %v925 = vpop.f32.mrf.mxu0
        %926 = vmatprep.mubr.f32.mxu0 0.0
        %927 = vmatmul.mubr.f32.gmra.mxu0 %v765
        %v928 = vpop.f32.mrf.mxu0
        %v929 = vadd.f32 %v640, %v928
        %v930 = vpop.f32.mrf.mxu0
        %931 = vmatprep.mubr.f32.mxu0 0.0
        %932 = vmatmul.mubr.f32.gmra.mxu0 %v767
        %v933 = vpop.f32.mrf.mxu0
        %v934 = vadd.f32 %v645, %v933
        %v935 = vpop.f32.mrf.mxu0
        %936 = vmatprep.mubr.f32.mxu0 0.0
        %937 = vmatmul.mubr.f32.gmra.mxu0 %v769
        %v938 = vpop.f32.mrf.mxu0
        %v939 = vadd.f32 %v650, %v938
        %v940 = vpop.f32.mrf.mxu0
        %941 = vmatprep.mubr.f32.mxu0 0.0
        %942 = vmatmul.mubr.f32.gmra.mxu0 %v771
        %v943 = vpop.f32.mrf.mxu0
        %v944 = vadd.f32 %v655, %v943
        %v945 = vpop.f32.mrf.mxu0
        %946 = vmatprep.mubr.f32.mxu0 0.0
        %947 = vmatmul.mubr.f32.gmra.mxu0 %v773
        %v948 = vpop.f32.mrf.mxu0
        %v949 = vadd.f32 %v660, %v948
        %v950 = vpop.f32.mrf.mxu0
        %951 = vmatprep.mubr.f32.mxu0 0.0
        %952 = vmatmul.mubr.f32.gmra.mxu0 %v775
        %v953 = vpop.f32.mrf.mxu0
        %v954 = vadd.f32 %v665, %v953
        %v955 = vpop.f32.mrf.mxu0
        %956 = vmatprep.mubr.f32.mxu0 0.0
        %957 = vmatmul.mubr.f32.gmra.mxu0 %v777
        %v958 = vpop.f32.mrf.mxu0
        %v959 = vadd.f32 %v670, %v958
        %v960 = vpop.f32.mrf.mxu0
        %961 = vmatprep.mubr.f32.mxu0 0.0
        %962 = vmatmul.mubr.f32.gmra.mxu0 %v779
        %v963 = vpop.f32.mrf.mxu0
        %v964 = vadd.f32 %v675, %v963
        %v965 = vpop.f32.mrf.mxu0
        %966 = vmatprep.mubr.f32.mxu0 0.0
        %967 = vmatmul.mubr.f32.gmra.mxu0 %v781
        %v968 = vpop.f32.mrf.mxu0
        %v969 = vadd.f32 %v680, %v968
        %v970 = vpop.f32.mrf.mxu0
        %971 = vmatprep.mubr.f32.mxu0 0.0
        %972 = vmatmul.mubr.f32.gmra.mxu0 %v783
        %v973 = vpop.f32.mrf.mxu0
        %v974 = vadd.f32 %v685, %v973
        %v975 = vpop.f32.mrf.mxu0
        %976 = vmatprep.mubr.f32.mxu0 0.0
        %977 = vmatmul.mubr.f32.gmra.mxu0 %v785
        %v978 = vpop.f32.mrf.mxu0
        %v979 = vadd.f32 %v690, %v978
        %v980 = vpop.f32.mrf.mxu0
        %981 = vmatprep.mubr.f32.mxu0 0.0
        %982 = vmatmul.mubr.f32.gmra.mxu0 %v787
        %v983 = vpop.f32.mrf.mxu0
        %v984 = vadd.f32 %v695, %v983
        %v985 = vpop.f32.mrf.mxu0
        %986 = vmatprep.mubr.f32.mxu0 0.0
        %987 = vmatmul.mubr.f32.gmra.mxu0 %v789
        %v988 = vpop.f32.mrf.mxu0
        %v989 = vadd.f32 %v700, %v988
        %v990 = vpop.f32.mrf.mxu0
        %991 = vmatprep.mubr.f32.mxu0 0.0
        %992 = vmatmul.mubr.f32.gmra.mxu0 %v791
        %v993 = vpop.f32.mrf.mxu0
        %v994 = vadd.f32 %v705, %v993
        %v995 = vpop.f32.mrf.mxu0
        %996 = vmatprep.mubr.f32.mxu0 0.0
        %997 = vmatmul.mubr.f32.gmra.mxu0 %v793
        %v998 = vpop.f32.mrf.mxu0
        %v999 = vadd.f32 %v710, %v998
        %v1000 = vpop.f32.mrf.mxu0
        %1001 = vmatprep.mubr.f32.mxu0 0.0
        %1002 = vmatmul.mubr.f32.gmra.mxu0 %v795
        %v1003 = vpop.f32.mrf.mxu0
        %v1004 = vadd.f32 %v715, %v1003
        %v1005 = vpop.f32.mrf.mxu0
        %1006 = vmatprep.mubr.f32.mxu0 0.0
        %1007 = vmatmul.mubr.f32.gmra.mxu0 %v797
        %v1008 = vpop.f32.mrf.mxu0
        %v1009 = vadd.f32 %v720, %v1008
        %v1010 = vpop.f32.mrf.mxu0
        %1011 = vmatprep.mubr.f32.mxu0 0.0
        %1012 = vmatmul.mubr.f32.gmra.mxu0 %v799
        %v1013 = vpop.f32.mrf.mxu0
        %v1014 = vadd.f32 %v725, %v1013
        %v1015 = vpop.f32.mrf.mxu0
        %1016 = vmatprep.mubr.f32.mxu0 0.0
        %1017 = vmatmul.mubr.f32.gmra.mxu0 %v801
        %v1018 = vpop.f32.mrf.mxu0
        %v1019 = vadd.f32 %v730, %v1018
        %v1020 = vpop.f32.mrf.mxu0
        %1021 = vmatprep.mubr.f32.mxu0 0.0
        %1022 = vmatmul.mubr.f32.gmra.mxu0 %v803
        %v1023 = vpop.f32.mrf.mxu0
        %v1024 = vadd.f32 %v735, %v1023
        %v1025 = vpop.f32.mrf.mxu0
        %1026 = vmatprep.mubr.f32.mxu0 0.0
        %1027 = vmatmul.mubr.f32.gmra.mxu0 %v805
        %v1028 = vpop.f32.mrf.mxu0
        %v1029 = vadd.f32 %v740, %v1028
        %v1030 = vpop.f32.mrf.mxu0
        %1031 = vdwg.mxu0
        %vm1032 = vcmask 1045504
        %v1033 = vrot.slane %v268, 2
        %v1034 = vrot.slane %v269, 2
        %v1035 = vsel %vm1032, %v1033, %v1034
        %v1036 = vrot.slane %v270, 2
        %v1037 = vsel %vm1032, %v1034, %v1036
        %v1038 = vrot.slane %v271, 2
        %v1039 = vrot.slane %v272, 2
        %v1040 = vsel %vm1032, %v1038, %v1039
        %v1041 = vrot.slane %v273, 2
        %v1042 = vsel %vm1032, %v1039, %v1041
        %v1043 = vrot.slane %v274, 2
        %v1044 = vrot.slane %v275, 2
        %v1045 = vsel %vm1032, %v1043, %v1044
        %v1046 = vrot.slane %v276, 2
        %v1047 = vsel %vm1032, %v1044, %v1046
        %v1048 = vrot.slane %v277, 2
        %v1049 = vrot.slane %v278, 2
        %v1050 = vsel %vm1032, %v1048, %v1049
        %v1051 = vrot.slane %v279, 2
        %v1052 = vsel %vm1032, %v1049, %v1051
        %v1053 = vrot.slane %v280, 2
        %v1054 = vrot.slane %v281, 2
        %v1055 = vsel %vm1032, %v1053, %v1054
        %v1056 = vrot.slane %v282, 2
        %v1057 = vsel %vm1032, %v1054, %v1056
        %v1058 = vrot.slane %v283, 2
        %v1059 = vrot.slane %v284, 2
        %v1060 = vsel %vm1032, %v1058, %v1059
        %v1061 = vrot.slane %v285, 2
        %v1062 = vsel %vm1032, %v1059, %v1061
        %v1063 = vrot.slane %v286, 2
        %v1064 = vrot.slane %v287, 2
        %v1065 = vsel %vm1032, %v1063, %v1064
        %v1066 = vrot.slane %v288, 2
        %v1067 = vsel %vm1032, %v1064, %v1066
        %v1068 = vrot.slane %v289, 2
        %v1069 = vrot.slane %v290, 2
        %v1070 = vsel %vm1032, %v1068, %v1069
        %v1071 = vrot.slane %v291, 2
        %v1072 = vsel %vm1032, %v1069, %v1071
        %v1073 = vrot.slane %v292, 2
        %v1074 = vrot.slane %v293, 2
        %v1075 = vsel %vm1032, %v1073, %v1074
        %v1076 = vrot.slane %v294, 2
        %v1077 = vsel %vm1032, %v1074, %v1076
        %v1078 = vrot.slane %v295, 2
        %v1079 = vrot.slane %v296, 2
        %v1080 = vsel %vm1032, %v1078, %v1079
        %v1081 = vrot.slane %v297, 2
        %v1082 = vsel %vm1032, %v1079, %v1081
        %v1083 = vrot.slane %v298, 2
        %v1084 = vrot.slane %v299, 2
        %v1085 = vsel %vm1032, %v1083, %v1084
        %v1086 = vrot.slane %v300, 2
        %v1087 = vsel %vm1032, %v1084, %v1086
        %v1088 = vrot.slane %v301, 2
        %v1089 = vrot.slane %v302, 2
        %v1090 = vsel %vm1032, %v1088, %v1089
        %v1091 = vrot.slane %v303, 2
        %v1092 = vsel %vm1032, %v1089, %v1091
        %v1093 = vrot.slane %v304, 2
        %v1094 = vrot.slane %v305, 2
        %v1095 = vsel %vm1032, %v1093, %v1094
        %v1096 = vrot.slane %v306, 2
        %v1097 = vsel %vm1032, %v1094, %v1096
        %v1098 = vrot.slane %v307, 2
        %v1099 = vrot.slane %v308, 2
        %v1100 = vsel %vm1032, %v1098, %v1099
        %v1101 = vrot.slane %v309, 2
        %v1102 = vsel %vm1032, %v1099, %v1101
        %v1103 = vrot.slane %v310, 2
        %v1104 = vrot.slane %v311, 2
        %v1105 = vsel %vm1032, %v1103, %v1104
        %v1106 = vrot.slane %v312, 2
        %v1107 = vsel %vm1032, %v1104, %v1106
        %v1108 = vrot.slane %v313, 2
        %v1109 = vrot.slane %v314, 2
        %v1110 = vsel %vm1032, %v1108, %v1109
        %v1111 = vrot.slane %v315, 2
        %v1112 = vsel %vm1032, %v1109, %v1111
        %v1113 = vld [vmem:[%s257 + $0x10] sm:$0xff]
        %v1114 = vsel %vm453, %v1035, 0
        %v1116 = vsel %vm453, %v1037, 0
        %v1118 = vsel %vm453, %v1040, 0
        %v1120 = vsel %vm453, %v1042, 0
        %v1122 = vsel %vm453, %v1045, 0
        %v1124 = vsel %vm453, %v1047, 0
        %v1126 = vsel %vm453, %v1050, 0
        %v1128 = vsel %vm453, %v1052, 0
        %v1130 = vsel %vm453, %v1055, 0
        %v1132 = vsel %vm453, %v1057, 0
        %v1134 = vsel %vm453, %v1060, 0
        %v1136 = vsel %vm453, %v1062, 0
        %v1138 = vsel %vm453, %v1065, 0
        %v1140 = vsel %vm453, %v1067, 0
        %v1142 = vsel %vm453, %v1070, 0
        %v1144 = vsel %vm453, %v1072, 0
        %v1146 = vsel %vm453, %v1075, 0
        %v1148 = vsel %vm453, %v1077, 0
        %v1150 = vsel %vm453, %v1080, 0
        %v1152 = vsel %vm453, %v1082, 0
        %v1154 = vsel %vm453, %v1085, 0
        %v1156 = vsel %vm453, %v1087, 0
        %v1158 = vsel %vm453, %v1090, 0
        %v1160 = vsel %vm453, %v1092, 0
        %v1162 = vsel %vm453, %v1095, 0
        %v1164 = vsel %vm453, %v1097, 0
        %v1166 = vsel %vm453, %v1100, 0
        %v1168 = vsel %vm453, %v1102, 0
        %v1170 = vsel %vm453, %v1105, 0
        %v1172 = vsel %vm453, %v1107, 0
        %v1174 = vsel %vm453, %v1110, 0
        %v1176 = vsel %vm453, %v1112, 0
        %1178 = vmatprep.subr.mxu0 0.0
        %1179 = vmatpush1.msra.mxu0 0.0
        %1180 = vmatprep.subr.mxu0 0.0
        %1181 = vmatpush1.msra.mxu0 0.0
        %1182 = vmatprep.subr.mxu0 0.0
        %1183 = vmatpush1.msra.mxu0 0.0
        %1184 = vmatprep.subr.mxu0 0.0
        %1185 = vmatpush1.msra.mxu0 0.0
        %1186 = vmatprep.subr.mxu0 0.0
        %1187 = vmatpush1.msra.mxu0 0.0
        %1188 = vmatprep.subr.mxu0 0.0
        %1189 = vmatpush1.msra.mxu0 0.0
        %1190 = vmatprep.subr.mxu0 0.0
        %1191 = vmatpush1.msra.mxu0 0.0
        %1192 = vmatprep.subr.mxu0 0.0
        %1193 = vmatpush1.msra.mxu0 0.0
        %1194 = vmatprep.subr.mxu0 0.0
        %1195 = vmatpush1.msra.mxu0 0.0
        %1196 = vmatprep.subr.mxu0 0.0
        %1197 = vmatpush1.msra.mxu0 0.0
        %1198 = vmatprep.subr.mxu0 0.0
        %1199 = vmatpush1.msra.mxu0 0.0
        %1200 = vmatprep.subr.mxu0 0.0
        %1201 = vmatpush1.msra.mxu0 0.0
        %1202 = vmatprep.subr.mxu0 0.0
        %1203 = vmatpush1.msra.mxu0 0.0
        %1204 = vmatprep.subr.mxu0 0.0
        %1205 = vmatpush1.msra.mxu0 0.0
        %1206 = vmatprep.subr.mxu0 0.0
        %1207 = vmatpush1.msra.mxu0 0.0
        %1208 = vmatprep.subr.mxu0 0.0
        %1209 = vmatpush1.msra.mxu0 %v1113
        %1210 = vmatprep.subr.mxu0 0.0
        %1211 = vmatpush2.msra.mxu0 0.0
        %1212 = vmatprep.subr.mxu0 0.0
        %1213 = vmatpush2.msra.mxu0 0.0
        %1214 = vmatprep.subr.mxu0 0.0
        %1215 = vmatpush2.msra.mxu0 0.0
        %1216 = vmatprep.subr.mxu0 0.0
        %1217 = vmatpush2.msra.mxu0 0.0
        %1218 = vmatprep.subr.mxu0 0.0
        %1219 = vmatpush2.msra.mxu0 0.0
        %1220 = vmatprep.subr.mxu0 0.0
        %1221 = vmatpush2.msra.mxu0 0.0
        %1222 = vmatprep.subr.mxu0 0.0
        %1223 = vmatpush2.msra.mxu0 0.0
        %1224 = vmatprep.subr.mxu0 0.0
        %1225 = vmatpush2.msra.mxu0 0.0
        %1226 = vmatprep.subr.mxu0 0.0
        %1227 = vmatpush2.msra.mxu0 0.0
        %1228 = vmatprep.subr.mxu0 0.0
        %1229 = vmatpush2.msra.mxu0 0.0
        %1230 = vmatprep.subr.mxu0 0.0
        %1231 = vmatpush2.msra.mxu0 0.0
        %1232 = vmatprep.subr.mxu0 0.0
        %1233 = vmatpush2.msra.mxu0 0.0
        %1234 = vmatprep.subr.mxu0 0.0
        %1235 = vmatpush2.msra.mxu0 0.0
        %1236 = vmatprep.subr.mxu0 0.0
        %1237 = vmatpush2.msra.mxu0 0.0
        %1238 = vmatprep.subr.mxu0 0.0
        %1239 = vmatpush2.msra.mxu0 0.0
        %1240 = vmatprep.subr.mxu0 0.0
        %1241 = vmatpush2.msra.mxu0 0.0
        %1242 = vmatprep.mubr.f32.mxu0 0.0
        %1243 = vmatmul.mubr.f32.gmra.mxu0 %v1114
        %v1244 = vpop.f32.mrf.mxu0
        %v1245 = vadd.f32 0.0, %v1244
        %v1246 = vpop.f32.mrf.mxu0
        %1247 = vmatprep.mubr.f32.mxu0 0.0
        %1248 = vmatmul.mubr.f32.gmra.mxu0 %v1116
        %v1249 = vpop.f32.mrf.mxu0
        %v1250 = vadd.f32 0.0, %v1249
        %v1251 = vpop.f32.mrf.mxu0
        %1252 = vmatprep.mubr.f32.mxu0 0.0
        %1253 = vmatmul.mubr.f32.gmra.mxu0 %v1118
        %v1254 = vpop.f32.mrf.mxu0
        %v1255 = vadd.f32 0.0, %v1254
        %v1256 = vpop.f32.mrf.mxu0
        %1257 = vmatprep.mubr.f32.mxu0 0.0
        %1258 = vmatmul.mubr.f32.gmra.mxu0 %v1120
        %v1259 = vpop.f32.mrf.mxu0
        %v1260 = vadd.f32 0.0, %v1259
        %v1261 = vpop.f32.mrf.mxu0
        %1262 = vmatprep.mubr.f32.mxu0 0.0
        %1263 = vmatmul.mubr.f32.gmra.mxu0 %v1122
        %v1264 = vpop.f32.mrf.mxu0
        %v1265 = vadd.f32 0.0, %v1264
        %v1266 = vpop.f32.mrf.mxu0
        %1267 = vmatprep.mubr.f32.mxu0 0.0
        %1268 = vmatmul.mubr.f32.gmra.mxu0 %v1124
        %v1269 = vpop.f32.mrf.mxu0
        %v1270 = vadd.f32 0.0, %v1269
        %v1271 = vpop.f32.mrf.mxu0
        %1272 = vmatprep.mubr.f32.mxu0 0.0
        %1273 = vmatmul.mubr.f32.gmra.mxu0 %v1126
        %v1274 = vpop.f32.mrf.mxu0
        %v1275 = vadd.f32 0.0, %v1274
        %v1276 = vpop.f32.mrf.mxu0
        %1277 = vmatprep.mubr.f32.mxu0 0.0
        %1278 = vmatmul.mubr.f32.gmra.mxu0 %v1128
        %v1279 = vpop.f32.mrf.mxu0
        %v1280 = vadd.f32 0.0, %v1279
        %v1281 = vpop.f32.mrf.mxu0
        %1282 = vmatprep.mubr.f32.mxu0 0.0
        %1283 = vmatmul.mubr.f32.gmra.mxu0 %v1130
        %v1284 = vpop.f32.mrf.mxu0
        %v1285 = vadd.f32 0.0, %v1284
        %v1286 = vpop.f32.mrf.mxu0
        %1287 = vmatprep.mubr.f32.mxu0 0.0
        %1288 = vmatmul.mubr.f32.gmra.mxu0 %v1132
        %v1289 = vpop.f32.mrf.mxu0
        %v1290 = vadd.f32 0.0, %v1289
        %v1291 = vpop.f32.mrf.mxu0
        %1292 = vmatprep.mubr.f32.mxu0 0.0
        %1293 = vmatmul.mubr.f32.gmra.mxu0 %v1134
        %v1294 = vpop.f32.mrf.mxu0
        %v1295 = vadd.f32 0.0, %v1294
        %v1296 = vpop.f32.mrf.mxu0
        %1297 = vmatprep.mubr.f32.mxu0 0.0
        %1298 = vmatmul.mubr.f32.gmra.mxu0 %v1136
        %v1299 = vpop.f32.mrf.mxu0
        %v1300 = vadd.f32 0.0, %v1299
        %v1301 = vpop.f32.mrf.mxu0
        %1302 = vmatprep.mubr.f32.mxu0 0.0
        %1303 = vmatmul.mubr.f32.gmra.mxu0 %v1138
        %v1304 = vpop.f32.mrf.mxu0
        %v1305 = vadd.f32 0.0, %v1304
        %v1306 = vpop.f32.mrf.mxu0
        %1307 = vmatprep.mubr.f32.mxu0 0.0
        %1308 = vmatmul.mubr.f32.gmra.mxu0 %v1140
        %v1309 = vpop.f32.mrf.mxu0
        %v1310 = vadd.f32 0.0, %v1309
        %v1311 = vpop.f32.mrf.mxu0
        %1312 = vmatprep.mubr.f32.mxu0 0.0
        %1313 = vmatmul.mubr.f32.gmra.mxu0 %v1142
        %v1314 = vpop.f32.mrf.mxu0
        %v1315 = vadd.f32 0.0, %v1314
        %v1316 = vpop.f32.mrf.mxu0
        %1317 = vmatprep.mubr.f32.mxu0 0.0
        %1318 = vmatmul.mubr.f32.gmra.mxu0 %v1144
        %v1319 = vpop.f32.mrf.mxu0
        %v1320 = vadd.f32 0.0, %v1319
        %v1321 = vpop.f32.mrf.mxu0
        %1322 = vmatprep.mubr.f32.mxu0 0.0
        %1323 = vmatmul.mubr.f32.gmra.mxu0 %v1146
        %v1324 = vpop.f32.mrf.mxu0
        %v1325 = vadd.f32 0.0, %v1324
        %v1326 = vpop.f32.mrf.mxu0
        %1327 = vmatprep.mubr.f32.mxu0 0.0
        %1328 = vmatmul.mubr.f32.gmra.mxu0 %v1148
        %v1329 = vpop.f32.mrf.mxu0
        %v1330 = vadd.f32 0.0, %v1329
        %v1331 = vpop.f32.mrf.mxu0
        %1332 = vmatprep.mubr.f32.mxu0 0.0
        %1333 = vmatmul.mubr.f32.gmra.mxu0 %v1150
        %v1334 = vpop.f32.mrf.mxu0
        %v1335 = vadd.f32 0.0, %v1334
        %v1336 = vpop.f32.mrf.mxu0
        %1337 = vmatprep.mubr.f32.mxu0 0.0
        %1338 = vmatmul.mubr.f32.gmra.mxu0 %v1152
        %v1339 = vpop.f32.mrf.mxu0
        %v1340 = vadd.f32 0.0, %v1339
        %v1341 = vpop.f32.mrf.mxu0
        %1342 = vmatprep.mubr.f32.mxu0 0.0
        %1343 = vmatmul.mubr.f32.gmra.mxu0 %v1154
        %v1344 = vpop.f32.mrf.mxu0
        %v1345 = vadd.f32 0.0, %v1344
        %v1346 = vpop.f32.mrf.mxu0
        %1347 = vmatprep.mubr.f32.mxu0 0.0
        %1348 = vmatmul.mubr.f32.gmra.mxu0 %v1156
        %v1349 = vpop.f32.mrf.mxu0
        %v1350 = vadd.f32 0.0, %v1349
        %v1351 = vpop.f32.mrf.mxu0
        %1352 = vmatprep.mubr.f32.mxu0 0.0
        %1353 = vmatmul.mubr.f32.gmra.mxu0 %v1158
        %v1354 = vpop.f32.mrf.mxu0
        %v1355 = vadd.f32 0.0, %v1354
        %v1356 = vpop.f32.mrf.mxu0
        %1357 = vmatprep.mubr.f32.mxu0 0.0
        %1358 = vmatmul.mubr.f32.gmra.mxu0 %v1160
        %v1359 = vpop.f32.mrf.mxu0
        %v1360 = vadd.f32 0.0, %v1359
        %v1361 = vpop.f32.mrf.mxu0
        %1362 = vmatprep.mubr.f32.mxu0 0.0
        %1363 = vmatmul.mubr.f32.gmra.mxu0 %v1162
        %v1364 = vpop.f32.mrf.mxu0
        %v1365 = vadd.f32 0.0, %v1364
        %v1366 = vpop.f32.mrf.mxu0
        %1367 = vmatprep.mubr.f32.mxu0 0.0
        %1368 = vmatmul.mubr.f32.gmra.mxu0 %v1164
        %v1369 = vpop.f32.mrf.mxu0
        %v1370 = vadd.f32 0.0, %v1369
        %v1371 = vpop.f32.mrf.mxu0
        %1372 = vmatprep.mubr.f32.mxu0 0.0
        %1373 = vmatmul.mubr.f32.gmra.mxu0 %v1166
        %v1374 = vpop.f32.mrf.mxu0
        %v1375 = vadd.f32 0.0, %v1374
        %v1376 = vpop.f32.mrf.mxu0
        %1377 = vmatprep.mubr.f32.mxu0 0.0
        %1378 = vmatmul.mubr.f32.gmra.mxu0 %v1168
        %v1379 = vpop.f32.mrf.mxu0
        %v1380 = vadd.f32 0.0, %v1379
        %v1381 = vpop.f32.mrf.mxu0
        %1382 = vmatprep.mubr.f32.mxu0 0.0
        %1383 = vmatmul.mubr.f32.gmra.mxu0 %v1170
        %v1384 = vpop.f32.mrf.mxu0
        %v1385 = vadd.f32 0.0, %v1384
        %v1386 = vpop.f32.mrf.mxu0
        %1387 = vmatprep.mubr.f32.mxu0 0.0
        %1388 = vmatmul.mubr.f32.gmra.mxu0 %v1172
        %v1389 = vpop.f32.mrf.mxu0
        %v1390 = vadd.f32 0.0, %v1389
        %v1391 = vpop.f32.mrf.mxu0
        %1392 = vmatprep.mubr.f32.mxu0 0.0
        %1393 = vmatmul.mubr.f32.gmra.mxu0 %v1174
        %v1394 = vpop.f32.mrf.mxu0
        %v1395 = vadd.f32 0.0, %v1394
        %v1396 = vpop.f32.mrf.mxu0
        %1397 = vmatprep.mubr.f32.mxu0 0.0
        %1398 = vmatmul.mubr.f32.gmra.mxu0 %v1176
        %v1399 = vpop.f32.mrf.mxu0
        %v1400 = vadd.f32 0.0, %v1399
        %v1401 = vpop.f32.mrf.mxu0
        %1402 = vdwg.mxu0
        %v1403 = vadd.f32 %v874, %v1245
        %v1404 = vadd.f32 %v879, %v1250
        %v1405 = vadd.f32 %v884, %v1255
        %v1406 = vadd.f32 %v889, %v1260
        %v1407 = vadd.f32 %v894, %v1265
        %v1408 = vadd.f32 %v899, %v1270
        %v1409 = vadd.f32 %v904, %v1275
        %v1410 = vadd.f32 %v909, %v1280
        %v1411 = vadd.f32 %v914, %v1285
        %v1412 = vadd.f32 %v919, %v1290
        %v1413 = vadd.f32 %v924, %v1295
        %v1414 = vadd.f32 %v929, %v1300
        %v1415 = vadd.f32 %v934, %v1305
        %v1416 = vadd.f32 %v939, %v1310
        %v1417 = vadd.f32 %v944, %v1315
        %v1418 = vadd.f32 %v949, %v1320
        %v1419 = vadd.f32 %v954, %v1325
        %v1420 = vadd.f32 %v959, %v1330
        %v1421 = vadd.f32 %v964, %v1335
        %v1422 = vadd.f32 %v969, %v1340
        %v1423 = vadd.f32 %v974, %v1345
        %v1424 = vadd.f32 %v979, %v1350
        %v1425 = vadd.f32 %v984, %v1355
        %v1426 = vadd.f32 %v989, %v1360
        %v1427 = vadd.f32 %v994, %v1365
        %v1428 = vadd.f32 %v999, %v1370
        %v1429 = vadd.f32 %v1004, %v1375
        %v1430 = vadd.f32 %v1009, %v1380
        %v1431 = vadd.f32 %v1014, %v1385
        %v1432 = vadd.f32 %v1019, %v1390
        %v1433 = vadd.f32 %v1024, %v1395
        %v1434 = vadd.f32 %v1029, %v1400
        %v1435 = vld [vmem:[%s257 + $0x18] sm:$0xff]
        %v1437 = vsel %vm453, %v316, 0
        %v1440 = vsel %vm453, %v317, 0
        %1442 = vmatprep.subr.mxu0 0.0
        %1443 = vmatpush1.msra.mxu0 0.0
        %1444 = vmatprep.subr.mxu0 0.0
        %1445 = vmatpush1.msra.mxu0 0.0
        %1446 = vmatprep.subr.mxu0 0.0
        %1447 = vmatpush1.msra.mxu0 0.0
        %1448 = vmatprep.subr.mxu0 0.0
        %1449 = vmatpush1.msra.mxu0 0.0
        %1450 = vmatprep.subr.mxu0 0.0
        %1451 = vmatpush1.msra.mxu0 0.0
        %1452 = vmatprep.subr.mxu0 0.0
        %1453 = vmatpush1.msra.mxu0 0.0
        %1454 = vmatprep.subr.mxu0 0.0
        %1455 = vmatpush1.msra.mxu0 0.0
        %1456 = vmatprep.subr.mxu0 0.0
        %1457 = vmatpush1.msra.mxu0 0.0
        %1458 = vmatprep.subr.mxu0 0.0
        %1459 = vmatpush1.msra.mxu0 0.0
        %1460 = vmatprep.subr.mxu0 0.0
        %1461 = vmatpush1.msra.mxu0 0.0
        %1462 = vmatprep.subr.mxu0 0.0
        %1463 = vmatpush1.msra.mxu0 0.0
        %1464 = vmatprep.subr.mxu0 0.0
        %1465 = vmatpush1.msra.mxu0 0.0
        %1466 = vmatprep.subr.mxu0 0.0
        %1467 = vmatpush1.msra.mxu0 0.0
        %1468 = vmatprep.subr.mxu0 0.0
        %1469 = vmatpush1.msra.mxu0 0.0
        %1470 = vmatprep.subr.mxu0 0.0
        %1471 = vmatpush1.msra.mxu0 0.0
        %1472 = vmatprep.subr.mxu0 0.0
        %1473 = vmatpush1.msra.mxu0 %v1435
        %1474 = vmatprep.subr.mxu0 0.0
        %1475 = vmatpush2.msra.mxu0 0.0
        %1476 = vmatprep.subr.mxu0 0.0
        %1477 = vmatpush2.msra.mxu0 0.0
        %1478 = vmatprep.subr.mxu0 0.0
        %1479 = vmatpush2.msra.mxu0 0.0
        %1480 = vmatprep.subr.mxu0 0.0
        %1481 = vmatpush2.msra.mxu0 0.0
        %1482 = vmatprep.subr.mxu0 0.0
        %1483 = vmatpush2.msra.mxu0 0.0
        %1484 = vmatprep.subr.mxu0 0.0
        %1485 = vmatpush2.msra.mxu0 0.0
        %1486 = vmatprep.subr.mxu0 0.0
        %1487 = vmatpush2.msra.mxu0 0.0
        %1488 = vmatprep.subr.mxu0 0.0
        %1489 = vmatpush2.msra.mxu0 0.0
        %1490 = vmatprep.subr.mxu0 0.0
        %1491 = vmatpush2.msra.mxu0 0.0
        %1492 = vmatprep.subr.mxu0 0.0
        %1493 = vmatpush2.msra.mxu0 0.0
        %1494 = vmatprep.subr.mxu0 0.0
        %1495 = vmatpush2.msra.mxu0 0.0
        %1496 = vmatprep.subr.mxu0 0.0
        %1497 = vmatpush2.msra.mxu0 0.0
        %1498 = vmatprep.subr.mxu0 0.0
        %1499 = vmatpush2.msra.mxu0 0.0
        %1500 = vmatprep.subr.mxu0 0.0
        %1501 = vmatpush2.msra.mxu0 0.0
        %1502 = vmatprep.subr.mxu0 0.0
        %1503 = vmatpush2.msra.mxu0 0.0
        %1504 = vmatprep.subr.mxu0 0.0
        %1505 = vmatpush2.msra.mxu0 0.0
        %1506 = vmatprep.mubr.f32.mxu0 0.0
        %1507 = vmatmul.mubr.f32.gmra.mxu0 %v747
        %v1508 = vpop.f32.mrf.mxu0
        %v1509 = vadd.f32 0.0, %v1508
        %v1510 = vpop.f32.mrf.mxu0
        %1511 = vmatprep.mubr.f32.mxu0 0.0
        %1512 = vmatmul.mubr.f32.gmra.mxu0 %v749
        %v1513 = vpop.f32.mrf.mxu0
        %v1514 = vadd.f32 0.0, %v1513
        %v1515 = vpop.f32.mrf.mxu0
        %1516 = vmatprep.mubr.f32.mxu0 0.0
        %1517 = vmatmul.mubr.f32.gmra.mxu0 %v751
        %v1518 = vpop.f32.mrf.mxu0
        %v1519 = vadd.f32 0.0, %v1518
        %v1520 = vpop.f32.mrf.mxu0
        %1521 = vmatprep.mubr.f32.mxu0 0.0
        %1522 = vmatmul.mubr.f32.gmra.mxu0 %v753
        %v1523 = vpop.f32.mrf.mxu0
        %v1524 = vadd.f32 0.0, %v1523
        %v1525 = vpop.f32.mrf.mxu0
        %1526 = vmatprep.mubr.f32.mxu0 0.0
        %1527 = vmatmul.mubr.f32.gmra.mxu0 %v755
        %v1528 = vpop.f32.mrf.mxu0
        %v1529 = vadd.f32 0.0, %v1528
        %v1530 = vpop.f32.mrf.mxu0
        %1531 = vmatprep.mubr.f32.mxu0 0.0
        %1532 = vmatmul.mubr.f32.gmra.mxu0 %v757
        %v1533 = vpop.f32.mrf.mxu0
        %v1534 = vadd.f32 0.0, %v1533
        %v1535 = vpop.f32.mrf.mxu0
        %1536 = vmatprep.mubr.f32.mxu0 0.0
        %1537 = vmatmul.mubr.f32.gmra.mxu0 %v759
        %v1538 = vpop.f32.mrf.mxu0
        %v1539 = vadd.f32 0.0, %v1538
        %v1540 = vpop.f32.mrf.mxu0
        %1541 = vmatprep.mubr.f32.mxu0 0.0
        %1542 = vmatmul.mubr.f32.gmra.mxu0 %v761
        %v1543 = vpop.f32.mrf.mxu0
        %v1544 = vadd.f32 0.0, %v1543
        %v1545 = vpop.f32.mrf.mxu0
        %1546 = vmatprep.mubr.f32.mxu0 0.0
        %1547 = vmatmul.mubr.f32.gmra.mxu0 %v763
        %v1548 = vpop.f32.mrf.mxu0
        %v1549 = vadd.f32 0.0, %v1548
        %v1550 = vpop.f32.mrf.mxu0
        %1551 = vmatprep.mubr.f32.mxu0 0.0
        %1552 = vmatmul.mubr.f32.gmra.mxu0 %v765
        %v1553 = vpop.f32.mrf.mxu0
        %v1554 = vadd.f32 0.0, %v1553
        %v1555 = vpop.f32.mrf.mxu0
        %1556 = vmatprep.mubr.f32.mxu0 0.0
        %1557 = vmatmul.mubr.f32.gmra.mxu0 %v767
        %v1558 = vpop.f32.mrf.mxu0
        %v1559 = vadd.f32 0.0, %v1558
        %v1560 = vpop.f32.mrf.mxu0
        %1561 = vmatprep.mubr.f32.mxu0 0.0
        %1562 = vmatmul.mubr.f32.gmra.mxu0 %v769
        %v1563 = vpop.f32.mrf.mxu0
        %v1564 = vadd.f32 0.0, %v1563
        %v1565 = vpop.f32.mrf.mxu0
        %1566 = vmatprep.mubr.f32.mxu0 0.0
        %1567 = vmatmul.mubr.f32.gmra.mxu0 %v771
        %v1568 = vpop.f32.mrf.mxu0
        %v1569 = vadd.f32 0.0, %v1568
        %v1570 = vpop.f32.mrf.mxu0
        %1571 = vmatprep.mubr.f32.mxu0 0.0
        %1572 = vmatmul.mubr.f32.gmra.mxu0 %v773
        %v1573 = vpop.f32.mrf.mxu0
        %v1574 = vadd.f32 0.0, %v1573
        %v1575 = vpop.f32.mrf.mxu0
        %1576 = vmatprep.mubr.f32.mxu0 0.0
        %1577 = vmatmul.mubr.f32.gmra.mxu0 %v775
        %v1578 = vpop.f32.mrf.mxu0
        %v1579 = vadd.f32 0.0, %v1578
        %v1580 = vpop.f32.mrf.mxu0
        %1581 = vmatprep.mubr.f32.mxu0 0.0
        %1582 = vmatmul.mubr.f32.gmra.mxu0 %v777
        %v1583 = vpop.f32.mrf.mxu0
        %v1584 = vadd.f32 0.0, %v1583
        %v1585 = vpop.f32.mrf.mxu0
        %1586 = vmatprep.mubr.f32.mxu0 0.0
        %1587 = vmatmul.mubr.f32.gmra.mxu0 %v779
        %v1588 = vpop.f32.mrf.mxu0
        %v1589 = vadd.f32 0.0, %v1588
        %v1590 = vpop.f32.mrf.mxu0
        %1591 = vmatprep.mubr.f32.mxu0 0.0
        %1592 = vmatmul.mubr.f32.gmra.mxu0 %v781
        %v1593 = vpop.f32.mrf.mxu0
        %v1594 = vadd.f32 0.0, %v1593
        %v1595 = vpop.f32.mrf.mxu0
        %1596 = vmatprep.mubr.f32.mxu0 0.0
        %1597 = vmatmul.mubr.f32.gmra.mxu0 %v783
        %v1598 = vpop.f32.mrf.mxu0
        %v1599 = vadd.f32 0.0, %v1598
        %v1600 = vpop.f32.mrf.mxu0
        %1601 = vmatprep.mubr.f32.mxu0 0.0
        %1602 = vmatmul.mubr.f32.gmra.mxu0 %v785
        %v1603 = vpop.f32.mrf.mxu0
        %v1604 = vadd.f32 0.0, %v1603
        %v1605 = vpop.f32.mrf.mxu0
        %1606 = vmatprep.mubr.f32.mxu0 0.0
        %1607 = vmatmul.mubr.f32.gmra.mxu0 %v787
        %v1608 = vpop.f32.mrf.mxu0
        %v1609 = vadd.f32 0.0, %v1608
        %v1610 = vpop.f32.mrf.mxu0
        %1611 = vmatprep.mubr.f32.mxu0 0.0
        %1612 = vmatmul.mubr.f32.gmra.mxu0 %v789
        %v1613 = vpop.f32.mrf.mxu0
        %v1614 = vadd.f32 0.0, %v1613
        %v1615 = vpop.f32.mrf.mxu0
        %1616 = vmatprep.mubr.f32.mxu0 0.0
        %1617 = vmatmul.mubr.f32.gmra.mxu0 %v791
        %v1618 = vpop.f32.mrf.mxu0
        %v1619 = vadd.f32 0.0, %v1618
        %v1620 = vpop.f32.mrf.mxu0
        %1621 = vmatprep.mubr.f32.mxu0 0.0
        %1622 = vmatmul.mubr.f32.gmra.mxu0 %v793
        %v1623 = vpop.f32.mrf.mxu0
        %v1624 = vadd.f32 0.0, %v1623
        %v1625 = vpop.f32.mrf.mxu0
        %1626 = vmatprep.mubr.f32.mxu0 0.0
        %1627 = vmatmul.mubr.f32.gmra.mxu0 %v795
        %v1628 = vpop.f32.mrf.mxu0
        %v1629 = vadd.f32 0.0, %v1628
        %v1630 = vpop.f32.mrf.mxu0
        %1631 = vmatprep.mubr.f32.mxu0 0.0
        %1632 = vmatmul.mubr.f32.gmra.mxu0 %v797
        %v1633 = vpop.f32.mrf.mxu0
        %v1634 = vadd.f32 0.0, %v1633
        %v1635 = vpop.f32.mrf.mxu0
        %1636 = vmatprep.mubr.f32.mxu0 0.0
        %1637 = vmatmul.mubr.f32.gmra.mxu0 %v799
        %v1638 = vpop.f32.mrf.mxu0
        %v1639 = vadd.f32 0.0, %v1638
        %v1640 = vpop.f32.mrf.mxu0
        %1641 = vmatprep.mubr.f32.mxu0 0.0
        %1642 = vmatmul.mubr.f32.gmra.mxu0 %v801
        %v1643 = vpop.f32.mrf.mxu0
        %v1644 = vadd.f32 0.0, %v1643
        %v1645 = vpop.f32.mrf.mxu0
        %1646 = vmatprep.mubr.f32.mxu0 0.0
        %1647 = vmatmul.mubr.f32.gmra.mxu0 %v803
        %v1648 = vpop.f32.mrf.mxu0
        %v1649 = vadd.f32 0.0, %v1648
        %v1650 = vpop.f32.mrf.mxu0
        %1651 = vmatprep.mubr.f32.mxu0 0.0
        %1652 = vmatmul.mubr.f32.gmra.mxu0 %v805
        %v1653 = vpop.f32.mrf.mxu0
        %v1654 = vadd.f32 0.0, %v1653
        %v1655 = vpop.f32.mrf.mxu0
        %1656 = vmatprep.mubr.f32.mxu0 0.0
        %1657 = vmatmul.mubr.f32.gmra.mxu0 %v1437
        %v1658 = vpop.f32.mrf.mxu0
        %v1659 = vadd.f32 0.0, %v1658
        %v1660 = vpop.f32.mrf.mxu0
        %1661 = vmatprep.mubr.f32.mxu0 0.0
        %1662 = vmatmul.mubr.f32.gmra.mxu0 %v1440
        %v1663 = vpop.f32.mrf.mxu0
        %v1664 = vadd.f32 0.0, %v1663
        %v1665 = vpop.f32.mrf.mxu0
        %1666 = vdwg.mxu0
        %v1667 = vadd.f32 %v1403, %v1509
        %v1668 = vadd.f32 %v1404, %v1514
        %v1669 = vadd.f32 %v1405, %v1519
        %v1670 = vadd.f32 %v1406, %v1524
        %v1671 = vadd.f32 %v1407, %v1529
        %v1672 = vadd.f32 %v1408, %v1534
        %v1673 = vadd.f32 %v1409, %v1539
        %v1674 = vadd.f32 %v1410, %v1544
        %v1675 = vadd.f32 %v1411, %v1549
        %v1676 = vadd.f32 %v1412, %v1554
        %v1677 = vadd.f32 %v1413, %v1559
        %v1678 = vadd.f32 %v1414, %v1564
        %v1679 = vadd.f32 %v1415, %v1569
        %v1680 = vadd.f32 %v1416, %v1574
        %v1681 = vadd.f32 %v1417, %v1579
        %v1682 = vadd.f32 %v1418, %v1584
        %v1683 = vadd.f32 %v1419, %v1589
        %v1684 = vadd.f32 %v1420, %v1594
        %v1685 = vadd.f32 %v1421, %v1599
        %v1686 = vadd.f32 %v1422, %v1604
        %v1687 = vadd.f32 %v1423, %v1609
        %v1688 = vadd.f32 %v1424, %v1614
        %v1689 = vadd.f32 %v1425, %v1619
        %v1690 = vadd.f32 %v1426, %v1624
        %v1691 = vadd.f32 %v1427, %v1629
        %v1692 = vadd.f32 %v1428, %v1634
        %v1693 = vadd.f32 %v1429, %v1639
        %v1694 = vadd.f32 %v1430, %v1644
        %v1695 = vadd.f32 %v1431, %v1649
        %v1696 = vadd.f32 %v1432, %v1654
        %v1697 = vadd.f32 %v1433, %v1659
        %v1698 = vadd.f32 %v1434, %v1664
        %v1700 = vrot.slane %v316, 1
        %v1701 = vrot.slane %v317, 1
        %v1702 = vsel %vm371, %v1700, %v1701
        %v1703 = vrot.slane %v318, 1
        %v1704 = vsel %vm371, %v1701, %v1703
        %v1705 = vld [vmem:[%s257 + $0x20] sm:$0xff]
        %v1706 = vsel %vm453, %v1702, 0
        %v1708 = vsel %vm453, %v1704, 0
        %1710 = vmatprep.subr.mxu0 0.0
        %1711 = vmatpush1.msra.mxu0 0.0
        %1712 = vmatprep.subr.mxu0 0.0
        %1713 = vmatpush1.msra.mxu0 0.0
        %1714 = vmatprep.subr.mxu0 0.0
        %1715 = vmatpush1.msra.mxu0 0.0
        %1716 = vmatprep.subr.mxu0 0.0
        %1717 = vmatpush1.msra.mxu0 0.0
        %1718 = vmatprep.subr.mxu0 0.0
        %1719 = vmatpush1.msra.mxu0 0.0
        %1720 = vmatprep.subr.mxu0 0.0
        %1721 = vmatpush1.msra.mxu0 0.0
        %1722 = vmatprep.subr.mxu0 0.0
        %1723 = vmatpush1.msra.mxu0 0.0
        %1724 = vmatprep.subr.mxu0 0.0
        %1725 = vmatpush1.msra.mxu0 0.0
        %1726 = vmatprep.subr.mxu0 0.0
        %1727 = vmatpush1.msra.mxu0 0.0
        %1728 = vmatprep.subr.mxu0 0.0
        %1729 = vmatpush1.msra.mxu0 0.0
        %1730 = vmatprep.subr.mxu0 0.0
        %1731 = vmatpush1.msra.mxu0 0.0
        %1732 = vmatprep.subr.mxu0 0.0
        %1733 = vmatpush1.msra.mxu0 0.0
        %1734 = vmatprep.subr.mxu0 0.0
        %1735 = vmatpush1.msra.mxu0 0.0
        %1736 = vmatprep.subr.mxu0 0.0
        %1737 = vmatpush1.msra.mxu0 0.0
        %1738 = vmatprep.subr.mxu0 0.0
        %1739 = vmatpush1.msra.mxu0 0.0
        %1740 = vmatprep.subr.mxu0 0.0
        %1741 = vmatpush1.msra.mxu0 %v1705
        %1742 = vmatprep.subr.mxu0 0.0
        %1743 = vmatpush2.msra.mxu0 0.0
        %1744 = vmatprep.subr.mxu0 0.0
        %1745 = vmatpush2.msra.mxu0 0.0
        %1746 = vmatprep.subr.mxu0 0.0
        %1747 = vmatpush2.msra.mxu0 0.0
        %1748 = vmatprep.subr.mxu0 0.0
        %1749 = vmatpush2.msra.mxu0 0.0
        %1750 = vmatprep.subr.mxu0 0.0
        %1751 = vmatpush2.msra.mxu0 0.0
        %1752 = vmatprep.subr.mxu0 0.0
        %1753 = vmatpush2.msra.mxu0 0.0
        %1754 = vmatprep.subr.mxu0 0.0
        %1755 = vmatpush2.msra.mxu0 0.0
        %1756 = vmatprep.subr.mxu0 0.0
        %1757 = vmatpush2.msra.mxu0 0.0
        %1758 = vmatprep.subr.mxu0 0.0
        %1759 = vmatpush2.msra.mxu0 0.0
        %1760 = vmatprep.subr.mxu0 0.0
        %1761 = vmatpush2.msra.mxu0 0.0
        %1762 = vmatprep.subr.mxu0 0.0
        %1763 = vmatpush2.msra.mxu0 0.0
        %1764 = vmatprep.subr.mxu0 0.0
        %1765 = vmatpush2.msra.mxu0 0.0
        %1766 = vmatprep.subr.mxu0 0.0
        %1767 = vmatpush2.msra.mxu0 0.0
        %1768 = vmatprep.subr.mxu0 0.0
        %1769 = vmatpush2.msra.mxu0 0.0
        %1770 = vmatprep.subr.mxu0 0.0
        %1771 = vmatpush2.msra.mxu0 0.0
        %1772 = vmatprep.subr.mxu0 0.0
        %1773 = vmatpush2.msra.mxu0 0.0
        %1774 = vmatprep.mubr.f32.mxu0 0.0
        %1775 = vmatmul.mubr.f32.gmra.mxu0 %v458
        %v1776 = vpop.f32.mrf.mxu0
        %v1777 = vadd.f32 0.0, %v1776
        %v1778 = vpop.f32.mrf.mxu0
        %1779 = vmatprep.mubr.f32.mxu0 0.0
        %1780 = vmatmul.mubr.f32.gmra.mxu0 %v460
        %v1781 = vpop.f32.mrf.mxu0
        %v1782 = vadd.f32 0.0, %v1781
        %v1783 = vpop.f32.mrf.mxu0
        %1784 = vmatprep.mubr.f32.mxu0 0.0
        %1785 = vmatmul.mubr.f32.gmra.mxu0 %v462
        %v1786 = vpop.f32.mrf.mxu0
        %v1787 = vadd.f32 0.0, %v1786
        %v1788 = vpop.f32.mrf.mxu0
        %1789 = vmatprep.mubr.f32.mxu0 0.0
        %1790 = vmatmul.mubr.f32.gmra.mxu0 %v464
        %v1791 = vpop.f32.mrf.mxu0
        %v1792 = vadd.f32 0.0, %v1791
        %v1793 = vpop.f32.mrf.mxu0
        %1794 = vmatprep.mubr.f32.mxu0 0.0
        %1795 = vmatmul.mubr.f32.gmra.mxu0 %v466
        %v1796 = vpop.f32.mrf.mxu0
        %v1797 = vadd.f32 0.0, %v1796
        %v1798 = vpop.f32.mrf.mxu0
        %1799 = vmatprep.mubr.f32.mxu0 0.0
        %1800 = vmatmul.mubr.f32.gmra.mxu0 %v468
        %v1801 = vpop.f32.mrf.mxu0
        %v1802 = vadd.f32 0.0, %v1801
        %v1803 = vpop.f32.mrf.mxu0
        %1804 = vmatprep.mubr.f32.mxu0 0.0
        %1805 = vmatmul.mubr.f32.gmra.mxu0 %v470
        %v1806 = vpop.f32.mrf.mxu0
        %v1807 = vadd.f32 0.0, %v1806
        %v1808 = vpop.f32.mrf.mxu0
        %1809 = vmatprep.mubr.f32.mxu0 0.0
        %1810 = vmatmul.mubr.f32.gmra.mxu0 %v472
        %v1811 = vpop.f32.mrf.mxu0
        %v1812 = vadd.f32 0.0, %v1811
        %v1813 = vpop.f32.mrf.mxu0
        %1814 = vmatprep.mubr.f32.mxu0 0.0
        %1815 = vmatmul.mubr.f32.gmra.mxu0 %v474
        %v1816 = vpop.f32.mrf.mxu0
        %v1817 = vadd.f32 0.0, %v1816
        %v1818 = vpop.f32.mrf.mxu0
        %1819 = vmatprep.mubr.f32.mxu0 0.0
        %1820 = vmatmul.mubr.f32.gmra.mxu0 %v476
        %v1821 = vpop.f32.mrf.mxu0
        %v1822 = vadd.f32 0.0, %v1821
        %v1823 = vpop.f32.mrf.mxu0
        %1824 = vmatprep.mubr.f32.mxu0 0.0
        %1825 = vmatmul.mubr.f32.gmra.mxu0 %v478
        %v1826 = vpop.f32.mrf.mxu0
        %v1827 = vadd.f32 0.0, %v1826
        %v1828 = vpop.f32.mrf.mxu0
        %1829 = vmatprep.mubr.f32.mxu0 0.0
        %1830 = vmatmul.mubr.f32.gmra.mxu0 %v480
        %v1831 = vpop.f32.mrf.mxu0
        %v1832 = vadd.f32 0.0, %v1831
        %v1833 = vpop.f32.mrf.mxu0
        %1834 = vmatprep.mubr.f32.mxu0 0.0
        %1835 = vmatmul.mubr.f32.gmra.mxu0 %v482
        %v1836 = vpop.f32.mrf.mxu0
        %v1837 = vadd.f32 0.0, %v1836
        %v1838 = vpop.f32.mrf.mxu0
        %1839 = vmatprep.mubr.f32.mxu0 0.0
        %1840 = vmatmul.mubr.f32.gmra.mxu0 %v484
        %v1841 = vpop.f32.mrf.mxu0
        %v1842 = vadd.f32 0.0, %v1841
        %v1843 = vpop.f32.mrf.mxu0
        %1844 = vmatprep.mubr.f32.mxu0 0.0
        %1845 = vmatmul.mubr.f32.gmra.mxu0 %v486
        %v1846 = vpop.f32.mrf.mxu0
        %v1847 = vadd.f32 0.0, %v1846
        %v1848 = vpop.f32.mrf.mxu0
        %1849 = vmatprep.mubr.f32.mxu0 0.0
        %1850 = vmatmul.mubr.f32.gmra.mxu0 %v488
        %v1851 = vpop.f32.mrf.mxu0
        %v1852 = vadd.f32 0.0, %v1851
        %v1853 = vpop.f32.mrf.mxu0
        %1854 = vmatprep.mubr.f32.mxu0 0.0
        %1855 = vmatmul.mubr.f32.gmra.mxu0 %v490
        %v1856 = vpop.f32.mrf.mxu0
        %v1857 = vadd.f32 0.0, %v1856
        %v1858 = vpop.f32.mrf.mxu0
        %1859 = vmatprep.mubr.f32.mxu0 0.0
        %1860 = vmatmul.mubr.f32.gmra.mxu0 %v492
        %v1861 = vpop.f32.mrf.mxu0
        %v1862 = vadd.f32 0.0, %v1861
        %v1863 = vpop.f32.mrf.mxu0
        %1864 = vmatprep.mubr.f32.mxu0 0.0
        %1865 = vmatmul.mubr.f32.gmra.mxu0 %v494
        %v1866 = vpop.f32.mrf.mxu0
        %v1867 = vadd.f32 0.0, %v1866
        %v1868 = vpop.f32.mrf.mxu0
        %1869 = vmatprep.mubr.f32.mxu0 0.0
        %1870 = vmatmul.mubr.f32.gmra.mxu0 %v496
        %v1871 = vpop.f32.mrf.mxu0
        %v1872 = vadd.f32 0.0, %v1871
        %v1873 = vpop.f32.mrf.mxu0
        %1874 = vmatprep.mubr.f32.mxu0 0.0
        %1875 = vmatmul.mubr.f32.gmra.mxu0 %v498
        %v1876 = vpop.f32.mrf.mxu0
        %v1877 = vadd.f32 0.0, %v1876
        %v1878 = vpop.f32.mrf.mxu0
        %1879 = vmatprep.mubr.f32.mxu0 0.0
        %1880 = vmatmul.mubr.f32.gmra.mxu0 %v500
        %v1881 = vpop.f32.mrf.mxu0
        %v1882 = vadd.f32 0.0, %v1881
        %v1883 = vpop.f32.mrf.mxu0
        %1884 = vmatprep.mubr.f32.mxu0 0.0
        %1885 = vmatmul.mubr.f32.gmra.mxu0 %v502
        %v1886 = vpop.f32.mrf.mxu0
        %v1887 = vadd.f32 0.0, %v1886
        %v1888 = vpop.f32.mrf.mxu0
        %1889 = vmatprep.mubr.f32.mxu0 0.0
        %1890 = vmatmul.mubr.f32.gmra.mxu0 %v504
        %v1891 = vpop.f32.mrf.mxu0
        %v1892 = vadd.f32 0.0, %v1891
        %v1893 = vpop.f32.mrf.mxu0
        %1894 = vmatprep.mubr.f32.mxu0 0.0
        %1895 = vmatmul.mubr.f32.gmra.mxu0 %v506
        %v1896 = vpop.f32.mrf.mxu0
        %v1897 = vadd.f32 0.0, %v1896
        %v1898 = vpop.f32.mrf.mxu0
        %1899 = vmatprep.mubr.f32.mxu0 0.0
        %1900 = vmatmul.mubr.f32.gmra.mxu0 %v508
        %v1901 = vpop.f32.mrf.mxu0
        %v1902 = vadd.f32 0.0, %v1901
        %v1903 = vpop.f32.mrf.mxu0
        %1904 = vmatprep.mubr.f32.mxu0 0.0
        %1905 = vmatmul.mubr.f32.gmra.mxu0 %v510
        %v1906 = vpop.f32.mrf.mxu0
        %v1907 = vadd.f32 0.0, %v1906
        %v1908 = vpop.f32.mrf.mxu0
        %1909 = vmatprep.mubr.f32.mxu0 0.0
        %1910 = vmatmul.mubr.f32.gmra.mxu0 %v512
        %v1911 = vpop.f32.mrf.mxu0
        %v1912 = vadd.f32 0.0, %v1911
        %v1913 = vpop.f32.mrf.mxu0
        %1914 = vmatprep.mubr.f32.mxu0 0.0
        %1915 = vmatmul.mubr.f32.gmra.mxu0 %v514
        %v1916 = vpop.f32.mrf.mxu0
        %v1917 = vadd.f32 0.0, %v1916
        %v1918 = vpop.f32.mrf.mxu0
        %1919 = vmatprep.mubr.f32.mxu0 0.0
        %1920 = vmatmul.mubr.f32.gmra.mxu0 %v516
        %v1921 = vpop.f32.mrf.mxu0
        %v1922 = vadd.f32 0.0, %v1921
        %v1923 = vpop.f32.mrf.mxu0
        %1924 = vmatprep.mubr.f32.mxu0 0.0
        %1925 = vmatmul.mubr.f32.gmra.mxu0 %v1706
        %v1926 = vpop.f32.mrf.mxu0
        %v1927 = vadd.f32 0.0, %v1926
        %v1928 = vpop.f32.mrf.mxu0
        %1929 = vmatprep.mubr.f32.mxu0 0.0
        %1930 = vmatmul.mubr.f32.gmra.mxu0 %v1708
        %v1931 = vpop.f32.mrf.mxu0
        %v1932 = vadd.f32 0.0, %v1931
        %v1933 = vpop.f32.mrf.mxu0
        %1934 = vdwg.mxu0
        %v1935 = vadd.f32 %v1667, %v1777
        %v1936 = vadd.f32 %v1668, %v1782
        %v1937 = vadd.f32 %v1669, %v1787
        %v1938 = vadd.f32 %v1670, %v1792
        %v1939 = vadd.f32 %v1671, %v1797
        %v1940 = vadd.f32 %v1672, %v1802
        %v1941 = vadd.f32 %v1673, %v1807
        %v1942 = vadd.f32 %v1674, %v1812
        %v1943 = vadd.f32 %v1675, %v1817
        %v1944 = vadd.f32 %v1676, %v1822
        %v1945 = vadd.f32 %v1677, %v1827
        %v1946 = vadd.f32 %v1678, %v1832
        %v1947 = vadd.f32 %v1679, %v1837
        %v1948 = vadd.f32 %v1680, %v1842
        %v1949 = vadd.f32 %v1681, %v1847
        %v1950 = vadd.f32 %v1682, %v1852
        %v1951 = vadd.f32 %v1683, %v1857
        %v1952 = vadd.f32 %v1684, %v1862
        %v1953 = vadd.f32 %v1685, %v1867
        %v1954 = vadd.f32 %v1686, %v1872
        %v1955 = vadd.f32 %v1687, %v1877
        %v1956 = vadd.f32 %v1688, %v1882
        %v1957 = vadd.f32 %v1689, %v1887
        %v1958 = vadd.f32 %v1690, %v1892
        %v1959 = vadd.f32 %v1691, %v1897
        %v1960 = vadd.f32 %v1692, %v1902
        %v1961 = vadd.f32 %v1693, %v1907
        %v1962 = vadd.f32 %v1694, %v1912
        %v1963 = vadd.f32 %v1695, %v1917
        %v1964 = vadd.f32 %v1696, %v1922
        %v1965 = vadd.f32 %v1697, %v1927
        %v1966 = vadd.f32 %v1698, %v1932
        %v1967 = vrot.slane %v316, 2
        %v1968 = vrot.slane %v317, 2
        %v1969 = vsel %vm1032, %v1967, %v1968
        %v1970 = vrot.slane %v318, 2
        %v1971 = vsel %vm1032, %v1968, %v1970
        %v1972 = vld [vmem:[%s257 + $0x28] sm:$0xff]
        %v1973 = vsel %vm453, %v1969, 0
        %v1975 = vsel %vm453, %v1971, 0
        %1977 = vmatprep.subr.mxu0 0.0
        %1978 = vmatpush1.msra.mxu0 0.0
        %1979 = vmatprep.subr.mxu0 0.0
        %1980 = vmatpush1.msra.mxu0 0.0
        %1981 = vmatprep.subr.mxu0 0.0
        %1982 = vmatpush1.msra.mxu0 0.0
        %1983 = vmatprep.subr.mxu0 0.0
        %1984 = vmatpush1.msra.mxu0 0.0
        %1985 = vmatprep.subr.mxu0 0.0
        %1986 = vmatpush1.msra.mxu0 0.0
        %1987 = vmatprep.subr.mxu0 0.0
        %1988 = vmatpush1.msra.mxu0 0.0
        %1989 = vmatprep.subr.mxu0 0.0
        %1990 = vmatpush1.msra.mxu0 0.0
        %1991 = vmatprep.subr.mxu0 0.0
        %1992 = vmatpush1.msra.mxu0 0.0
        %1993 = vmatprep.subr.mxu0 0.0
        %1994 = vmatpush1.msra.mxu0 0.0
        %1995 = vmatprep.subr.mxu0 0.0
        %1996 = vmatpush1.msra.mxu0 0.0
        %1997 = vmatprep.subr.mxu0 0.0
        %1998 = vmatpush1.msra.mxu0 0.0
        %1999 = vmatprep.subr.mxu0 0.0
        %2000 = vmatpush1.msra.mxu0 0.0
        %2001 = vmatprep.subr.mxu0 0.0
        %2002 = vmatpush1.msra.mxu0 0.0
        %2003 = vmatprep.subr.mxu0 0.0
        %2004 = vmatpush1.msra.mxu0 0.0
        %2005 = vmatprep.subr.mxu0 0.0
        %2006 = vmatpush1.msra.mxu0 0.0
        %2007 = vmatprep.subr.mxu0 0.0
        %2008 = vmatpush1.msra.mxu0 %v1972
        %2009 = vmatprep.subr.mxu0 0.0
        %2010 = vmatpush2.msra.mxu0 0.0
        %2011 = vmatprep.subr.mxu0 0.0
        %2012 = vmatpush2.msra.mxu0 0.0
        %2013 = vmatprep.subr.mxu0 0.0
        %2014 = vmatpush2.msra.mxu0 0.0
        %2015 = vmatprep.subr.mxu0 0.0
        %2016 = vmatpush2.msra.mxu0 0.0
        %2017 = vmatprep.subr.mxu0 0.0
        %2018 = vmatpush2.msra.mxu0 0.0
        %2019 = vmatprep.subr.mxu0 0.0
        %2020 = vmatpush2.msra.mxu0 0.0
        %2021 = vmatprep.subr.mxu0 0.0
        %2022 = vmatpush2.msra.mxu0 0.0
        %2023 = vmatprep.subr.mxu0 0.0
        %2024 = vmatpush2.msra.mxu0 0.0
        %2025 = vmatprep.subr.mxu0 0.0
        %2026 = vmatpush2.msra.mxu0 0.0
        %2027 = vmatprep.subr.mxu0 0.0
        %2028 = vmatpush2.msra.mxu0 0.0
        %2029 = vmatprep.subr.mxu0 0.0
        %2030 = vmatpush2.msra.mxu0 0.0
        %2031 = vmatprep.subr.mxu0 0.0
        %2032 = vmatpush2.msra.mxu0 0.0
        %2033 = vmatprep.subr.mxu0 0.0
        %2034 = vmatpush2.msra.mxu0 0.0
        %2035 = vmatprep.subr.mxu0 0.0
        %2036 = vmatpush2.msra.mxu0 0.0
        %2037 = vmatprep.subr.mxu0 0.0
        %2038 = vmatpush2.msra.mxu0 0.0
        %2039 = vmatprep.subr.mxu0 0.0
        %2040 = vmatpush2.msra.mxu0 0.0
        %2041 = vmatprep.mubr.f32.mxu0 0.0
        %2042 = vmatmul.mubr.f32.gmra.mxu0 %v1118
        %v2043 = vpop.f32.mrf.mxu0
        %v2044 = vadd.f32 0.0, %v2043
        %v2045 = vpop.f32.mrf.mxu0
        %2046 = vmatprep.mubr.f32.mxu0 0.0
        %2047 = vmatmul.mubr.f32.gmra.mxu0 %v1120
        %v2048 = vpop.f32.mrf.mxu0
        %v2049 = vadd.f32 0.0, %v2048
        %v2050 = vpop.f32.mrf.mxu0
        %2051 = vmatprep.mubr.f32.mxu0 0.0
        %2052 = vmatmul.mubr.f32.gmra.mxu0 %v1122
        %v2053 = vpop.f32.mrf.mxu0
        %v2054 = vadd.f32 0.0, %v2053
        %v2055 = vpop.f32.mrf.mxu0
        %2056 = vmatprep.mubr.f32.mxu0 0.0
        %2057 = vmatmul.mubr.f32.gmra.mxu0 %v1124
        %v2058 = vpop.f32.mrf.mxu0
        %v2059 = vadd.f32 0.0, %v2058
        %v2060 = vpop.f32.mrf.mxu0
        %2061 = vmatprep.mubr.f32.mxu0 0.0
        %2062 = vmatmul.mubr.f32.gmra.mxu0 %v1126
        %v2063 = vpop.f32.mrf.mxu0
        %v2064 = vadd.f32 0.0, %v2063
        %v2065 = vpop.f32.mrf.mxu0
        %2066 = vmatprep.mubr.f32.mxu0 0.0
        %2067 = vmatmul.mubr.f32.gmra.mxu0 %v1128
        %v2068 = vpop.f32.mrf.mxu0
        %v2069 = vadd.f32 0.0, %v2068
        %v2070 = vpop.f32.mrf.mxu0
        %2071 = vmatprep.mubr.f32.mxu0 0.0
        %2072 = vmatmul.mubr.f32.gmra.mxu0 %v1130
        %v2073 = vpop.f32.mrf.mxu0
        %v2074 = vadd.f32 0.0, %v2073
        %v2075 = vpop.f32.mrf.mxu0
        %2076 = vmatprep.mubr.f32.mxu0 0.0
        %2077 = vmatmul.mubr.f32.gmra.mxu0 %v1132
        %v2078 = vpop.f32.mrf.mxu0
        %v2079 = vadd.f32 0.0, %v2078
        %v2080 = vpop.f32.mrf.mxu0
        %2081 = vmatprep.mubr.f32.mxu0 0.0
        %2082 = vmatmul.mubr.f32.gmra.mxu0 %v1134
        %v2083 = vpop.f32.mrf.mxu0
        %v2084 = vadd.f32 0.0, %v2083
        %v2085 = vpop.f32.mrf.mxu0
        %2086 = vmatprep.mubr.f32.mxu0 0.0
        %2087 = vmatmul.mubr.f32.gmra.mxu0 %v1136
        %v2088 = vpop.f32.mrf.mxu0
        %v2089 = vadd.f32 0.0, %v2088
        %v2090 = vpop.f32.mrf.mxu0
        %2091 = vmatprep.mubr.f32.mxu0 0.0
        %2092 = vmatmul.mubr.f32.gmra.mxu0 %v1138
        %v2093 = vpop.f32.mrf.mxu0
        %v2094 = vadd.f32 0.0, %v2093
        %v2095 = vpop.f32.mrf.mxu0
        %2096 = vmatprep.mubr.f32.mxu0 0.0
        %2097 = vmatmul.mubr.f32.gmra.mxu0 %v1140
        %v2098 = vpop.f32.mrf.mxu0
        %v2099 = vadd.f32 0.0, %v2098
        %v2100 = vpop.f32.mrf.mxu0
        %2101 = vmatprep.mubr.f32.mxu0 0.0
        %2102 = vmatmul.mubr.f32.gmra.mxu0 %v1142
        %v2103 = vpop.f32.mrf.mxu0
        %v2104 = vadd.f32 0.0, %v2103
        %v2105 = vpop.f32.mrf.mxu0
        %2106 = vmatprep.mubr.f32.mxu0 0.0
        %2107 = vmatmul.mubr.f32.gmra.mxu0 %v1144
        %v2108 = vpop.f32.mrf.mxu0
        %v2109 = vadd.f32 0.0, %v2108
        %v2110 = vpop.f32.mrf.mxu0
        %2111 = vmatprep.mubr.f32.mxu0 0.0
        %2112 = vmatmul.mubr.f32.gmra.mxu0 %v1146
        %v2113 = vpop.f32.mrf.mxu0
        %v2114 = vadd.f32 0.0, %v2113
        %v2115 = vpop.f32.mrf.mxu0
        %2116 = vmatprep.mubr.f32.mxu0 0.0
        %2117 = vmatmul.mubr.f32.gmra.mxu0 %v1148
        %v2118 = vpop.f32.mrf.mxu0
        %v2119 = vadd.f32 0.0, %v2118
        %v2120 = vpop.f32.mrf.mxu0
        %2121 = vmatprep.mubr.f32.mxu0 0.0
        %2122 = vmatmul.mubr.f32.gmra.mxu0 %v1150
        %v2123 = vpop.f32.mrf.mxu0
        %v2124 = vadd.f32 0.0, %v2123
        %v2125 = vpop.f32.mrf.mxu0
        %2126 = vmatprep.mubr.f32.mxu0 0.0
        %2127 = vmatmul.mubr.f32.gmra.mxu0 %v1152
        %v2128 = vpop.f32.mrf.mxu0
        %v2129 = vadd.f32 0.0, %v2128
        %v2130 = vpop.f32.mrf.mxu0
        %2131 = vmatprep.mubr.f32.mxu0 0.0
        %2132 = vmatmul.mubr.f32.gmra.mxu0 %v1154
        %v2133 = vpop.f32.mrf.mxu0
        %v2134 = vadd.f32 0.0, %v2133
        %v2135 = vpop.f32.mrf.mxu0
        %2136 = vmatprep.mubr.f32.mxu0 0.0
        %2137 = vmatmul.mubr.f32.gmra.mxu0 %v1156
        %v2138 = vpop.f32.mrf.mxu0
        %v2139 = vadd.f32 0.0, %v2138
        %v2140 = vpop.f32.mrf.mxu0
        %2141 = vmatprep.mubr.f32.mxu0 0.0
        %2142 = vmatmul.mubr.f32.gmra.mxu0 %v1158
        %v2143 = vpop.f32.mrf.mxu0
        %v2144 = vadd.f32 0.0, %v2143
        %v2145 = vpop.f32.mrf.mxu0
        %2146 = vmatprep.mubr.f32.mxu0 0.0
        %2147 = vmatmul.mubr.f32.gmra.mxu0 %v1160
        %v2148 = vpop.f32.mrf.mxu0
        %v2149 = vadd.f32 0.0, %v2148
        %v2150 = vpop.f32.mrf.mxu0
        %2151 = vmatprep.mubr.f32.mxu0 0.0
        %2152 = vmatmul.mubr.f32.gmra.mxu0 %v1162
        %v2153 = vpop.f32.mrf.mxu0
        %v2154 = vadd.f32 0.0, %v2153
        %v2155 = vpop.f32.mrf.mxu0
        %2156 = vmatprep.mubr.f32.mxu0 0.0
        %2157 = vmatmul.mubr.f32.gmra.mxu0 %v1164
        %v2158 = vpop.f32.mrf.mxu0
        %v2159 = vadd.f32 0.0, %v2158
        %v2160 = vpop.f32.mrf.mxu0
        %2161 = vmatprep.mubr.f32.mxu0 0.0
        %2162 = vmatmul.mubr.f32.gmra.mxu0 %v1166
        %v2163 = vpop.f32.mrf.mxu0
        %v2164 = vadd.f32 0.0, %v2163
        %v2165 = vpop.f32.mrf.mxu0
        %2166 = vmatprep.mubr.f32.mxu0 0.0
        %2167 = vmatmul.mubr.f32.gmra.mxu0 %v1168
        %v2168 = vpop.f32.mrf.mxu0
        %v2169 = vadd.f32 0.0, %v2168
        %v2170 = vpop.f32.mrf.mxu0
        %2171 = vmatprep.mubr.f32.mxu0 0.0
        %2172 = vmatmul.mubr.f32.gmra.mxu0 %v1170
        %v2173 = vpop.f32.mrf.mxu0
        %v2174 = vadd.f32 0.0, %v2173
        %v2175 = vpop.f32.mrf.mxu0
        %2176 = vmatprep.mubr.f32.mxu0 0.0
        %2177 = vmatmul.mubr.f32.gmra.mxu0 %v1172
        %v2178 = vpop.f32.mrf.mxu0
        %v2179 = vadd.f32 0.0, %v2178
        %v2180 = vpop.f32.mrf.mxu0
        %2181 = vmatprep.mubr.f32.mxu0 0.0
        %2182 = vmatmul.mubr.f32.gmra.mxu0 %v1174
        %v2183 = vpop.f32.mrf.mxu0
        %v2184 = vadd.f32 0.0, %v2183
        %v2185 = vpop.f32.mrf.mxu0
        %2186 = vmatprep.mubr.f32.mxu0 0.0
        %2187 = vmatmul.mubr.f32.gmra.mxu0 %v1176
        %v2188 = vpop.f32.mrf.mxu0
        %v2189 = vadd.f32 0.0, %v2188
        %v2190 = vpop.f32.mrf.mxu0
        %2191 = vmatprep.mubr.f32.mxu0 0.0
        %2192 = vmatmul.mubr.f32.gmra.mxu0 %v1973
        %v2193 = vpop.f32.mrf.mxu0
        %v2194 = vadd.f32 0.0, %v2193
        %v2195 = vpop.f32.mrf.mxu0
        %2196 = vmatprep.mubr.f32.mxu0 0.0
        %2197 = vmatmul.mubr.f32.gmra.mxu0 %v1975
        %v2198 = vpop.f32.mrf.mxu0
        %v2199 = vadd.f32 0.0, %v2198
        %v2200 = vpop.f32.mrf.mxu0
        %2201 = vdwg.mxu0
        %v2202 = vadd.f32 %v1935, %v2044
        %v2203 = vadd.f32 %v1936, %v2049
        %v2204 = vadd.f32 %v1937, %v2054
        %v2205 = vadd.f32 %v1938, %v2059
        %v2206 = vadd.f32 %v1939, %v2064
        %v2207 = vadd.f32 %v1940, %v2069
        %v2208 = vadd.f32 %v1941, %v2074
        %v2209 = vadd.f32 %v1942, %v2079
        %v2210 = vadd.f32 %v1943, %v2084
        %v2211 = vadd.f32 %v1944, %v2089
        %v2212 = vadd.f32 %v1945, %v2094
        %v2213 = vadd.f32 %v1946, %v2099
        %v2214 = vadd.f32 %v1947, %v2104
        %v2215 = vadd.f32 %v1948, %v2109
        %v2216 = vadd.f32 %v1949, %v2114
        %v2217 = vadd.f32 %v1950, %v2119
        %v2218 = vadd.f32 %v1951, %v2124
        %v2219 = vadd.f32 %v1952, %v2129
        %v2220 = vadd.f32 %v1953, %v2134
        %v2221 = vadd.f32 %v1954, %v2139
        %v2222 = vadd.f32 %v1955, %v2144
        %v2223 = vadd.f32 %v1956, %v2149
        %v2224 = vadd.f32 %v1957, %v2154
        %v2225 = vadd.f32 %v1958, %v2159
        %v2226 = vadd.f32 %v1959, %v2164
        %v2227 = vadd.f32 %v1960, %v2169
        %v2228 = vadd.f32 %v1961, %v2174
        %v2229 = vadd.f32 %v1962, %v2179
        %v2230 = vadd.f32 %v1963, %v2184
        %v2231 = vadd.f32 %v1964, %v2189
        %v2232 = vadd.f32 %v1965, %v2194
        %v2233 = vadd.f32 %v1966, %v2199
        %v2234 = vld [vmem:[%s257 + $0x30] sm:$0xff]
        %v2236 = vsel %vm453, %v319, 0
        %v2239 = vsel %vm453, %v320, 0
        %2241 = vmatprep.subr.mxu0 0.0
        %2242 = vmatpush1.msra.mxu0 0.0
        %2243 = vmatprep.subr.mxu0 0.0
        %2244 = vmatpush1.msra.mxu0 0.0
        %2245 = vmatprep.subr.mxu0 0.0
        %2246 = vmatpush1.msra.mxu0 0.0
        %2247 = vmatprep.subr.mxu0 0.0
        %2248 = vmatpush1.msra.mxu0 0.0
        %2249 = vmatprep.subr.mxu0 0.0
        %2250 = vmatpush1.msra.mxu0 0.0
        %2251 = vmatprep.subr.mxu0 0.0
        %2252 = vmatpush1.msra.mxu0 0.0
        %2253 = vmatprep.subr.mxu0 0.0
        %2254 = vmatpush1.msra.mxu0 0.0
        %2255 = vmatprep.subr.mxu0 0.0
        %2256 = vmatpush1.msra.mxu0 0.0
        %2257 = vmatprep.subr.mxu0 0.0
        %2258 = vmatpush1.msra.mxu0 0.0
        %2259 = vmatprep.subr.mxu0 0.0
        %2260 = vmatpush1.msra.mxu0 0.0
        %2261 = vmatprep.subr.mxu0 0.0
        %2262 = vmatpush1.msra.mxu0 0.0
        %2263 = vmatprep.subr.mxu0 0.0
        %2264 = vmatpush1.msra.mxu0 0.0
        %2265 = vmatprep.subr.mxu0 0.0
        %2266 = vmatpush1.msra.mxu0 0.0
        %2267 = vmatprep.subr.mxu0 0.0
        %2268 = vmatpush1.msra.mxu0 0.0
        %2269 = vmatprep.subr.mxu0 0.0
        %2270 = vmatpush1.msra.mxu0 0.0
        %2271 = vmatprep.subr.mxu0 0.0
        %2272 = vmatpush1.msra.mxu0 %v2234
        %2273 = vmatprep.subr.mxu0 0.0
        %2274 = vmatpush2.msra.mxu0 0.0
        %2275 = vmatprep.subr.mxu0 0.0
        %2276 = vmatpush2.msra.mxu0 0.0
        %2277 = vmatprep.subr.mxu0 0.0
        %2278 = vmatpush2.msra.mxu0 0.0
        %2279 = vmatprep.subr.mxu0 0.0
        %2280 = vmatpush2.msra.mxu0 0.0
        %2281 = vmatprep.subr.mxu0 0.0
        %2282 = vmatpush2.msra.mxu0 0.0
        %2283 = vmatprep.subr.mxu0 0.0
        %2284 = vmatpush2.msra.mxu0 0.0
        %2285 = vmatprep.subr.mxu0 0.0
        %2286 = vmatpush2.msra.mxu0 0.0
        %2287 = vmatprep.subr.mxu0 0.0
        %2288 = vmatpush2.msra.mxu0 0.0
        %2289 = vmatprep.subr.mxu0 0.0
        %2290 = vmatpush2.msra.mxu0 0.0
        %2291 = vmatprep.subr.mxu0 0.0
        %2292 = vmatpush2.msra.mxu0 0.0
        %2293 = vmatprep.subr.mxu0 0.0
        %2294 = vmatpush2.msra.mxu0 0.0
        %2295 = vmatprep.subr.mxu0 0.0
        %2296 = vmatpush2.msra.mxu0 0.0
        %2297 = vmatprep.subr.mxu0 0.0
        %2298 = vmatpush2.msra.mxu0 0.0
        %2299 = vmatprep.subr.mxu0 0.0
        %2300 = vmatpush2.msra.mxu0 0.0
        %2301 = vmatprep.subr.mxu0 0.0
        %2302 = vmatpush2.msra.mxu0 0.0
        %2303 = vmatprep.subr.mxu0 0.0
        %2304 = vmatpush2.msra.mxu0 0.0
        %2305 = vmatprep.mubr.f32.mxu0 0.0
        %2306 = vmatmul.mubr.f32.gmra.mxu0 %v751
        %v2307 = vpop.f32.mrf.mxu0
        %v2308 = vadd.f32 0.0, %v2307
        %v2309 = vpop.f32.mrf.mxu0
        %2310 = vmatprep.mubr.f32.mxu0 0.0
        %2311 = vmatmul.mubr.f32.gmra.mxu0 %v753
        %v2312 = vpop.f32.mrf.mxu0
        %v2313 = vadd.f32 0.0, %v2312
        %v2314 = vpop.f32.mrf.mxu0
        %2315 = vmatprep.mubr.f32.mxu0 0.0
        %2316 = vmatmul.mubr.f32.gmra.mxu0 %v755
        %v2317 = vpop.f32.mrf.mxu0
        %v2318 = vadd.f32 0.0, %v2317
        %v2319 = vpop.f32.mrf.mxu0
        %2320 = vmatprep.mubr.f32.mxu0 0.0
        %2321 = vmatmul.mubr.f32.gmra.mxu0 %v757
        %v2322 = vpop.f32.mrf.mxu0
        %v2323 = vadd.f32 0.0, %v2322
        %v2324 = vpop.f32.mrf.mxu0
        %2325 = vmatprep.mubr.f32.mxu0 0.0
        %2326 = vmatmul.mubr.f32.gmra.mxu0 %v759
        %v2327 = vpop.f32.mrf.mxu0
        %v2328 = vadd.f32 0.0, %v2327
        %v2329 = vpop.f32.mrf.mxu0
        %2330 = vmatprep.mubr.f32.mxu0 0.0
        %2331 = vmatmul.mubr.f32.gmra.mxu0 %v761
        %v2332 = vpop.f32.mrf.mxu0
        %v2333 = vadd.f32 0.0, %v2332
        %v2334 = vpop.f32.mrf.mxu0
        %2335 = vmatprep.mubr.f32.mxu0 0.0
        %2336 = vmatmul.mubr.f32.gmra.mxu0 %v763
        %v2337 = vpop.f32.mrf.mxu0
        %v2338 = vadd.f32 0.0, %v2337
        %v2339 = vpop.f32.mrf.mxu0
        %2340 = vmatprep.mubr.f32.mxu0 0.0
        %2341 = vmatmul.mubr.f32.gmra.mxu0 %v765
        %v2342 = vpop.f32.mrf.mxu0
        %v2343 = vadd.f32 0.0, %v2342
        %v2344 = vpop.f32.mrf.mxu0
        %2345 = vmatprep.mubr.f32.mxu0 0.0
        %2346 = vmatmul.mubr.f32.gmra.mxu0 %v767
        %v2347 = vpop.f32.mrf.mxu0
        %v2348 = vadd.f32 0.0, %v2347
        %v2349 = vpop.f32.mrf.mxu0
        %2350 = vmatprep.mubr.f32.mxu0 0.0
        %2351 = vmatmul.mubr.f32.gmra.mxu0 %v769
        %v2352 = vpop.f32.mrf.mxu0
        %v2353 = vadd.f32 0.0, %v2352
        %v2354 = vpop.f32.mrf.mxu0
        %2355 = vmatprep.mubr.f32.mxu0 0.0
        %2356 = vmatmul.mubr.f32.gmra.mxu0 %v771
        %v2357 = vpop.f32.mrf.mxu0
        %v2358 = vadd.f32 0.0, %v2357
        %v2359 = vpop.f32.mrf.mxu0
        %2360 = vmatprep.mubr.f32.mxu0 0.0
        %2361 = vmatmul.mubr.f32.gmra.mxu0 %v773
        %v2362 = vpop.f32.mrf.mxu0
        %v2363 = vadd.f32 0.0, %v2362
        %v2364 = vpop.f32.mrf.mxu0
        %2365 = vmatprep.mubr.f32.mxu0 0.0
        %2366 = vmatmul.mubr.f32.gmra.mxu0 %v775
        %v2367 = vpop.f32.mrf.mxu0
        %v2368 = vadd.f32 0.0, %v2367
        %v2369 = vpop.f32.mrf.mxu0
        %2370 = vmatprep.mubr.f32.mxu0 0.0
        %2371 = vmatmul.mubr.f32.gmra.mxu0 %v777
        %v2372 = vpop.f32.mrf.mxu0
        %v2373 = vadd.f32 0.0, %v2372
        %v2374 = vpop.f32.mrf.mxu0
        %2375 = vmatprep.mubr.f32.mxu0 0.0
        %2376 = vmatmul.mubr.f32.gmra.mxu0 %v779
        %v2377 = vpop.f32.mrf.mxu0
        %v2378 = vadd.f32 0.0, %v2377
        %v2379 = vpop.f32.mrf.mxu0
        %2380 = vmatprep.mubr.f32.mxu0 0.0
        %2381 = vmatmul.mubr.f32.gmra.mxu0 %v781
        %v2382 = vpop.f32.mrf.mxu0
        %v2383 = vadd.f32 0.0, %v2382
        %v2384 = vpop.f32.mrf.mxu0
        %2385 = vmatprep.mubr.f32.mxu0 0.0
        %2386 = vmatmul.mubr.f32.gmra.mxu0 %v783
        %v2387 = vpop.f32.mrf.mxu0
        %v2388 = vadd.f32 0.0, %v2387
        %v2389 = vpop.f32.mrf.mxu0
        %2390 = vmatprep.mubr.f32.mxu0 0.0
        %2391 = vmatmul.mubr.f32.gmra.mxu0 %v785
        %v2392 = vpop.f32.mrf.mxu0
        %v2393 = vadd.f32 0.0, %v2392
        %v2394 = vpop.f32.mrf.mxu0
        %2395 = vmatprep.mubr.f32.mxu0 0.0
        %2396 = vmatmul.mubr.f32.gmra.mxu0 %v787
        %v2397 = vpop.f32.mrf.mxu0
        %v2398 = vadd.f32 0.0, %v2397
        %v2399 = vpop.f32.mrf.mxu0
        %2400 = vmatprep.mubr.f32.mxu0 0.0
        %2401 = vmatmul.mubr.f32.gmra.mxu0 %v789
        %v2402 = vpop.f32.mrf.mxu0
        %v2403 = vadd.f32 0.0, %v2402
        %v2404 = vpop.f32.mrf.mxu0
        %2405 = vmatprep.mubr.f32.mxu0 0.0
        %2406 = vmatmul.mubr.f32.gmra.mxu0 %v791
        %v2407 = vpop.f32.mrf.mxu0
        %v2408 = vadd.f32 0.0, %v2407
        %v2409 = vpop.f32.mrf.mxu0
        %2410 = vmatprep.mubr.f32.mxu0 0.0
        %2411 = vmatmul.mubr.f32.gmra.mxu0 %v793
        %v2412 = vpop.f32.mrf.mxu0
        %v2413 = vadd.f32 0.0, %v2412
        %v2414 = vpop.f32.mrf.mxu0
        %2415 = vmatprep.mubr.f32.mxu0 0.0
        %2416 = vmatmul.mubr.f32.gmra.mxu0 %v795
        %v2417 = vpop.f32.mrf.mxu0
        %v2418 = vadd.f32 0.0, %v2417
        %v2419 = vpop.f32.mrf.mxu0
        %2420 = vmatprep.mubr.f32.mxu0 0.0
        %2421 = vmatmul.mubr.f32.gmra.mxu0 %v797
        %v2422 = vpop.f32.mrf.mxu0
        %v2423 = vadd.f32 0.0, %v2422
        %v2424 = vpop.f32.mrf.mxu0
        %2425 = vmatprep.mubr.f32.mxu0 0.0
        %2426 = vmatmul.mubr.f32.gmra.mxu0 %v799
        %v2427 = vpop.f32.mrf.mxu0
        %v2428 = vadd.f32 0.0, %v2427
        %v2429 = vpop.f32.mrf.mxu0
        %2430 = vmatprep.mubr.f32.mxu0 0.0
        %2431 = vmatmul.mubr.f32.gmra.mxu0 %v801
        %v2432 = vpop.f32.mrf.mxu0
        %v2433 = vadd.f32 0.0, %v2432
        %v2434 = vpop.f32.mrf.mxu0
        %2435 = vmatprep.mubr.f32.mxu0 0.0
        %2436 = vmatmul.mubr.f32.gmra.mxu0 %v803
        %v2437 = vpop.f32.mrf.mxu0
        %v2438 = vadd.f32 0.0, %v2437
        %v2439 = vpop.f32.mrf.mxu0
        %2440 = vmatprep.mubr.f32.mxu0 0.0
        %2441 = vmatmul.mubr.f32.gmra.mxu0 %v805
        %v2442 = vpop.f32.mrf.mxu0
        %v2443 = vadd.f32 0.0, %v2442
        %v2444 = vpop.f32.mrf.mxu0
        %2445 = vmatprep.mubr.f32.mxu0 0.0
        %2446 = vmatmul.mubr.f32.gmra.mxu0 %v1437
        %v2447 = vpop.f32.mrf.mxu0
        %v2448 = vadd.f32 0.0, %v2447
        %v2449 = vpop.f32.mrf.mxu0
        %2450 = vmatprep.mubr.f32.mxu0 0.0
        %2451 = vmatmul.mubr.f32.gmra.mxu0 %v1440
        %v2452 = vpop.f32.mrf.mxu0
        %v2453 = vadd.f32 0.0, %v2452
        %v2454 = vpop.f32.mrf.mxu0
        %2455 = vmatprep.mubr.f32.mxu0 0.0
        %2456 = vmatmul.mubr.f32.gmra.mxu0 %v2236
        %v2457 = vpop.f32.mrf.mxu0
        %v2458 = vadd.f32 0.0, %v2457
        %v2459 = vpop.f32.mrf.mxu0
        %2460 = vmatprep.mubr.f32.mxu0 0.0
        %2461 = vmatmul.mubr.f32.gmra.mxu0 %v2239
        %v2462 = vpop.f32.mrf.mxu0
        %v2463 = vadd.f32 0.0, %v2462
        %v2464 = vpop.f32.mrf.mxu0
        %2465 = vdwg.mxu0
        %v2466 = vadd.f32 %v2202, %v2308
        %v2467 = vadd.f32 %v2203, %v2313
        %v2468 = vadd.f32 %v2204, %v2318
        %v2469 = vadd.f32 %v2205, %v2323
        %v2470 = vadd.f32 %v2206, %v2328
        %v2471 = vadd.f32 %v2207, %v2333
        %v2472 = vadd.f32 %v2208, %v2338
        %v2473 = vadd.f32 %v2209, %v2343
        %v2474 = vadd.f32 %v2210, %v2348
        %v2475 = vadd.f32 %v2211, %v2353
        %v2476 = vadd.f32 %v2212, %v2358
        %v2477 = vadd.f32 %v2213, %v2363
        %v2478 = vadd.f32 %v2214, %v2368
        %v2479 = vadd.f32 %v2215, %v2373
        %v2480 = vadd.f32 %v2216, %v2378
        %v2481 = vadd.f32 %v2217, %v2383
        %v2482 = vadd.f32 %v2218, %v2388
        %v2483 = vadd.f32 %v2219, %v2393
        %v2484 = vadd.f32 %v2220, %v2398
        %v2485 = vadd.f32 %v2221, %v2403
        %v2486 = vadd.f32 %v2222, %v2408
        %v2487 = vadd.f32 %v2223, %v2413
        %v2488 = vadd.f32 %v2224, %v2418
        %v2489 = vadd.f32 %v2225, %v2423
        %v2490 = vadd.f32 %v2226, %v2428
        %v2491 = vadd.f32 %v2227, %v2433
        %v2492 = vadd.f32 %v2228, %v2438
        %v2493 = vadd.f32 %v2229, %v2443
        %v2494 = vadd.f32 %v2230, %v2448
        %v2495 = vadd.f32 %v2231, %v2453
        %v2496 = vadd.f32 %v2232, %v2458
        %v2497 = vadd.f32 %v2233, %v2463
        %v2499 = vrot.slane %v319, 1
        %v2500 = vrot.slane %v320, 1
        %v2501 = vsel %vm371, %v2499, %v2500
        %v2502 = vrot.slane %v321, 1
        %v2503 = vsel %vm371, %v2500, %v2502
        %v2504 = vld [vmem:[%s257 + $0x38] sm:$0xff]
        %v2505 = vsel %vm453, %v2501, 0
        %v2507 = vsel %vm453, %v2503, 0
        %2509 = vmatprep.subr.mxu0 0.0
        %2510 = vmatpush1.msra.mxu0 0.0
        %2511 = vmatprep.subr.mxu0 0.0
        %2512 = vmatpush1.msra.mxu0 0.0
        %2513 = vmatprep.subr.mxu0 0.0
        %2514 = vmatpush1.msra.mxu0 0.0
        %2515 = vmatprep.subr.mxu0 0.0
        %2516 = vmatpush1.msra.mxu0 0.0
        %2517 = vmatprep.subr.mxu0 0.0
        %2518 = vmatpush1.msra.mxu0 0.0
        %2519 = vmatprep.subr.mxu0 0.0
        %2520 = vmatpush1.msra.mxu0 0.0
        %2521 = vmatprep.subr.mxu0 0.0
        %2522 = vmatpush1.msra.mxu0 0.0
        %2523 = vmatprep.subr.mxu0 0.0
        %2524 = vmatpush1.msra.mxu0 0.0
        %2525 = vmatprep.subr.mxu0 0.0
        %2526 = vmatpush1.msra.mxu0 0.0
        %2527 = vmatprep.subr.mxu0 0.0
        %2528 = vmatpush1.msra.mxu0 0.0
        %2529 = vmatprep.subr.mxu0 0.0
        %2530 = vmatpush1.msra.mxu0 0.0
        %2531 = vmatprep.subr.mxu0 0.0
        %2532 = vmatpush1.msra.mxu0 0.0
        %2533 = vmatprep.subr.mxu0 0.0
        %2534 = vmatpush1.msra.mxu0 0.0
        %2535 = vmatprep.subr.mxu0 0.0
        %2536 = vmatpush1.msra.mxu0 0.0
        %2537 = vmatprep.subr.mxu0 0.0
        %2538 = vmatpush1.msra.mxu0 0.0
        %2539 = vmatprep.subr.mxu0 0.0
        %2540 = vmatpush1.msra.mxu0 %v2504
        %2541 = vmatprep.subr.mxu0 0.0
        %2542 = vmatpush2.msra.mxu0 0.0
        %2543 = vmatprep.subr.mxu0 0.0
        %2544 = vmatpush2.msra.mxu0 0.0
        %2545 = vmatprep.subr.mxu0 0.0
        %2546 = vmatpush2.msra.mxu0 0.0
        %2547 = vmatprep.subr.mxu0 0.0
        %2548 = vmatpush2.msra.mxu0 0.0
        %2549 = vmatprep.subr.mxu0 0.0
        %2550 = vmatpush2.msra.mxu0 0.0
        %2551 = vmatprep.subr.mxu0 0.0
        %2552 = vmatpush2.msra.mxu0 0.0
        %2553 = vmatprep.subr.mxu0 0.0
        %2554 = vmatpush2.msra.mxu0 0.0
        %2555 = vmatprep.subr.mxu0 0.0
        %2556 = vmatpush2.msra.mxu0 0.0
        %2557 = vmatprep.subr.mxu0 0.0
        %2558 = vmatpush2.msra.mxu0 0.0
        %2559 = vmatprep.subr.mxu0 0.0
        %2560 = vmatpush2.msra.mxu0 0.0
        %2561 = vmatprep.subr.mxu0 0.0
        %2562 = vmatpush2.msra.mxu0 0.0
        %2563 = vmatprep.subr.mxu0 0.0
        %2564 = vmatpush2.msra.mxu0 0.0
        %2565 = vmatprep.subr.mxu0 0.0
        %2566 = vmatpush2.msra.mxu0 0.0
        %2567 = vmatprep.subr.mxu0 0.0
        %2568 = vmatpush2.msra.mxu0 0.0
        %2569 = vmatprep.subr.mxu0 0.0
        %2570 = vmatpush2.msra.mxu0 0.0
        %2571 = vmatprep.subr.mxu0 0.0
        %2572 = vmatpush2.msra.mxu0 0.0
        %2573 = vmatprep.mubr.f32.mxu0 0.0
        %2574 = vmatmul.mubr.f32.gmra.mxu0 %v462
        %v2575 = vpop.f32.mrf.mxu0
        %v2576 = vadd.f32 0.0, %v2575
        %v2577 = vpop.f32.mrf.mxu0
        %2578 = vmatprep.mubr.f32.mxu0 0.0
        %2579 = vmatmul.mubr.f32.gmra.mxu0 %v464
        %v2580 = vpop.f32.mrf.mxu0
        %v2581 = vadd.f32 0.0, %v2580
        %v2582 = vpop.f32.mrf.mxu0
        %2583 = vmatprep.mubr.f32.mxu0 0.0
        %2584 = vmatmul.mubr.f32.gmra.mxu0 %v466
        %v2585 = vpop.f32.mrf.mxu0
        %v2586 = vadd.f32 0.0, %v2585
        %v2587 = vpop.f32.mrf.mxu0
        %2588 = vmatprep.mubr.f32.mxu0 0.0
        %2589 = vmatmul.mubr.f32.gmra.mxu0 %v468
        %v2590 = vpop.f32.mrf.mxu0
        %v2591 = vadd.f32 0.0, %v2590
        %v2592 = vpop.f32.mrf.mxu0
        %2593 = vmatprep.mubr.f32.mxu0 0.0
        %2594 = vmatmul.mubr.f32.gmra.mxu0 %v470
        %v2595 = vpop.f32.mrf.mxu0
        %v2596 = vadd.f32 0.0, %v2595
        %v2597 = vpop.f32.mrf.mxu0
        %2598 = vmatprep.mubr.f32.mxu0 0.0
        %2599 = vmatmul.mubr.f32.gmra.mxu0 %v472
        %v2600 = vpop.f32.mrf.mxu0
        %v2601 = vadd.f32 0.0, %v2600
        %v2602 = vpop.f32.mrf.mxu0
        %2603 = vmatprep.mubr.f32.mxu0 0.0
        %2604 = vmatmul.mubr.f32.gmra.mxu0 %v474
        %v2605 = vpop.f32.mrf.mxu0
        %v2606 = vadd.f32 0.0, %v2605
        %v2607 = vpop.f32.mrf.mxu0
        %2608 = vmatprep.mubr.f32.mxu0 0.0
        %2609 = vmatmul.mubr.f32.gmra.mxu0 %v476
        %v2610 = vpop.f32.mrf.mxu0
        %v2611 = vadd.f32 0.0, %v2610
        %v2612 = vpop.f32.mrf.mxu0
        %2613 = vmatprep.mubr.f32.mxu0 0.0
        %2614 = vmatmul.mubr.f32.gmra.mxu0 %v478
        %v2615 = vpop.f32.mrf.mxu0
        %v2616 = vadd.f32 0.0, %v2615
        %v2617 = vpop.f32.mrf.mxu0
        %2618 = vmatprep.mubr.f32.mxu0 0.0
        %2619 = vmatmul.mubr.f32.gmra.mxu0 %v480
        %v2620 = vpop.f32.mrf.mxu0
        %v2621 = vadd.f32 0.0, %v2620
        %v2622 = vpop.f32.mrf.mxu0
        %2623 = vmatprep.mubr.f32.mxu0 0.0
        %2624 = vmatmul.mubr.f32.gmra.mxu0 %v482
        %v2625 = vpop.f32.mrf.mxu0
        %v2626 = vadd.f32 0.0, %v2625
        %v2627 = vpop.f32.mrf.mxu0
        %2628 = vmatprep.mubr.f32.mxu0 0.0
        %2629 = vmatmul.mubr.f32.gmra.mxu0 %v484
        %v2630 = vpop.f32.mrf.mxu0
        %v2631 = vadd.f32 0.0, %v2630
        %v2632 = vpop.f32.mrf.mxu0
        %2633 = vmatprep.mubr.f32.mxu0 0.0
        %2634 = vmatmul.mubr.f32.gmra.mxu0 %v486
        %v2635 = vpop.f32.mrf.mxu0
        %v2636 = vadd.f32 0.0, %v2635
        %v2637 = vpop.f32.mrf.mxu0
        %2638 = vmatprep.mubr.f32.mxu0 0.0
        %2639 = vmatmul.mubr.f32.gmra.mxu0 %v488
        %v2640 = vpop.f32.mrf.mxu0
        %v2641 = vadd.f32 0.0, %v2640
        %v2642 = vpop.f32.mrf.mxu0
        %2643 = vmatprep.mubr.f32.mxu0 0.0
        %2644 = vmatmul.mubr.f32.gmra.mxu0 %v490
        %v2645 = vpop.f32.mrf.mxu0
        %v2646 = vadd.f32 0.0, %v2645
        %v2647 = vpop.f32.mrf.mxu0
        %2648 = vmatprep.mubr.f32.mxu0 0.0
        %2649 = vmatmul.mubr.f32.gmra.mxu0 %v492
        %v2650 = vpop.f32.mrf.mxu0
        %v2651 = vadd.f32 0.0, %v2650
        %v2652 = vpop.f32.mrf.mxu0
        %2653 = vmatprep.mubr.f32.mxu0 0.0
        %2654 = vmatmul.mubr.f32.gmra.mxu0 %v494
        %v2655 = vpop.f32.mrf.mxu0
        %v2656 = vadd.f32 0.0, %v2655
        %v2657 = vpop.f32.mrf.mxu0
        %2658 = vmatprep.mubr.f32.mxu0 0.0
        %2659 = vmatmul.mubr.f32.gmra.mxu0 %v496
        %v2660 = vpop.f32.mrf.mxu0
        %v2661 = vadd.f32 0.0, %v2660
        %v2662 = vpop.f32.mrf.mxu0
        %2663 = vmatprep.mubr.f32.mxu0 0.0
        %2664 = vmatmul.mubr.f32.gmra.mxu0 %v498
        %v2665 = vpop.f32.mrf.mxu0
        %v2666 = vadd.f32 0.0, %v2665
        %v2667 = vpop.f32.mrf.mxu0
        %2668 = vmatprep.mubr.f32.mxu0 0.0
        %2669 = vmatmul.mubr.f32.gmra.mxu0 %v500
        %v2670 = vpop.f32.mrf.mxu0
        %v2671 = vadd.f32 0.0, %v2670
        %v2672 = vpop.f32.mrf.mxu0
        %2673 = vmatprep.mubr.f32.mxu0 0.0
        %2674 = vmatmul.mubr.f32.gmra.mxu0 %v502
        %v2675 = vpop.f32.mrf.mxu0
        %v2676 = vadd.f32 0.0, %v2675
        %v2677 = vpop.f32.mrf.mxu0
        %2678 = vmatprep.mubr.f32.mxu0 0.0
        %2679 = vmatmul.mubr.f32.gmra.mxu0 %v504
        %v2680 = vpop.f32.mrf.mxu0
        %v2681 = vadd.f32 0.0, %v2680
        %v2682 = vpop.f32.mrf.mxu0
        %2683 = vmatprep.mubr.f32.mxu0 0.0
        %2684 = vmatmul.mubr.f32.gmra.mxu0 %v506
        %v2685 = vpop.f32.mrf.mxu0
        %v2686 = vadd.f32 0.0, %v2685
        %v2687 = vpop.f32.mrf.mxu0
        %2688 = vmatprep.mubr.f32.mxu0 0.0
        %2689 = vmatmul.mubr.f32.gmra.mxu0 %v508
        %v2690 = vpop.f32.mrf.mxu0
        %v2691 = vadd.f32 0.0, %v2690
        %v2692 = vpop.f32.mrf.mxu0
        %2693 = vmatprep.mubr.f32.mxu0 0.0
        %2694 = vmatmul.mubr.f32.gmra.mxu0 %v510
        %v2695 = vpop.f32.mrf.mxu0
        %v2696 = vadd.f32 0.0, %v2695
        %v2697 = vpop.f32.mrf.mxu0
        %2698 = vmatprep.mubr.f32.mxu0 0.0
        %2699 = vmatmul.mubr.f32.gmra.mxu0 %v512
        %v2700 = vpop.f32.mrf.mxu0
        %v2701 = vadd.f32 0.0, %v2700
        %v2702 = vpop.f32.mrf.mxu0
        %2703 = vmatprep.mubr.f32.mxu0 0.0
        %2704 = vmatmul.mubr.f32.gmra.mxu0 %v514
        %v2705 = vpop.f32.mrf.mxu0
        %v2706 = vadd.f32 0.0, %v2705
        %v2707 = vpop.f32.mrf.mxu0
        %2708 = vmatprep.mubr.f32.mxu0 0.0
        %2709 = vmatmul.mubr.f32.gmra.mxu0 %v516
        %v2710 = vpop.f32.mrf.mxu0
        %v2711 = vadd.f32 0.0, %v2710
        %v2712 = vpop.f32.mrf.mxu0
        %2713 = vmatprep.mubr.f32.mxu0 0.0
        %2714 = vmatmul.mubr.f32.gmra.mxu0 %v1706
        %v2715 = vpop.f32.mrf.mxu0
        %v2716 = vadd.f32 0.0, %v2715
        %v2717 = vpop.f32.mrf.mxu0
        %2718 = vmatprep.mubr.f32.mxu0 0.0
        %2719 = vmatmul.mubr.f32.gmra.mxu0 %v1708
        %v2720 = vpop.f32.mrf.mxu0
        %v2721 = vadd.f32 0.0, %v2720
        %v2722 = vpop.f32.mrf.mxu0
        %2723 = vmatprep.mubr.f32.mxu0 0.0
        %2724 = vmatmul.mubr.f32.gmra.mxu0 %v2505
        %v2725 = vpop.f32.mrf.mxu0
        %v2726 = vadd.f32 0.0, %v2725
        %v2727 = vpop.f32.mrf.mxu0
        %2728 = vmatprep.mubr.f32.mxu0 0.0
        %2729 = vmatmul.mubr.f32.gmra.mxu0 %v2507
        %v2730 = vpop.f32.mrf.mxu0
        %v2731 = vadd.f32 0.0, %v2730
        %v2732 = vpop.f32.mrf.mxu0
        %2733 = vdwg.mxu0
        %v2734 = vadd.f32 %v2466, %v2576
        %v2735 = vadd.f32 %v2467, %v2581
        %v2736 = vadd.f32 %v2468, %v2586
        %v2737 = vadd.f32 %v2469, %v2591
        %v2738 = vadd.f32 %v2470, %v2596
        %v2739 = vadd.f32 %v2471, %v2601
        %v2740 = vadd.f32 %v2472, %v2606
        %v2741 = vadd.f32 %v2473, %v2611
        %v2742 = vadd.f32 %v2474, %v2616
        %v2743 = vadd.f32 %v2475, %v2621
        %v2744 = vadd.f32 %v2476, %v2626
        %v2745 = vadd.f32 %v2477, %v2631
        %v2746 = vadd.f32 %v2478, %v2636
        %v2747 = vadd.f32 %v2479, %v2641
        %v2748 = vadd.f32 %v2480, %v2646
        %v2749 = vadd.f32 %v2481, %v2651
        %v2750 = vadd.f32 %v2482, %v2656
        %v2751 = vadd.f32 %v2483, %v2661
        %v2752 = vadd.f32 %v2484, %v2666
        %v2753 = vadd.f32 %v2485, %v2671
        %v2754 = vadd.f32 %v2486, %v2676
        %v2755 = vadd.f32 %v2487, %v2681
        %v2756 = vadd.f32 %v2488, %v2686
        %v2757 = vadd.f32 %v2489, %v2691
        %v2758 = vadd.f32 %v2490, %v2696
        %v2759 = vadd.f32 %v2491, %v2701
        %v2760 = vadd.f32 %v2492, %v2706
        %v2761 = vadd.f32 %v2493, %v2711
        %v2762 = vadd.f32 %v2494, %v2716
        %v2763 = vadd.f32 %v2495, %v2721
        %v2764 = vadd.f32 %v2496, %v2726
        %v2765 = vadd.f32 %v2497, %v2731
        %v2766 = vrot.slane %v319, 2
        %v2767 = vrot.slane %v320, 2
        %v2768 = vsel %vm1032, %v2766, %v2767
        %v2769 = vrot.slane %v321, 2
        %v2770 = vsel %vm1032, %v2767, %v2769
        %v2771 = vld [vmem:[%s257 + $0x40] sm:$0xff]
        %v2772 = vsel %vm453, %v2768, 0
        %v2774 = vsel %vm453, %v2770, 0
        %2776 = vmatprep.subr.mxu0 0.0
        %2777 = vmatpush1.msra.mxu0 0.0
        %2778 = vmatprep.subr.mxu0 0.0
        %2779 = vmatpush1.msra.mxu0 0.0
        %2780 = vmatprep.subr.mxu0 0.0
        %2781 = vmatpush1.msra.mxu0 0.0
        %2782 = vmatprep.subr.mxu0 0.0
        %2783 = vmatpush1.msra.mxu0 0.0
        %2784 = vmatprep.subr.mxu0 0.0
        %2785 = vmatpush1.msra.mxu0 0.0
        %2786 = vmatprep.subr.mxu0 0.0
        %2787 = vmatpush1.msra.mxu0 0.0
        %2788 = vmatprep.subr.mxu0 0.0
        %2789 = vmatpush1.msra.mxu0 0.0
        %2790 = vmatprep.subr.mxu0 0.0
        %2791 = vmatpush1.msra.mxu0 0.0
        %2792 = vmatprep.subr.mxu0 0.0
        %2793 = vmatpush1.msra.mxu0 0.0
        %2794 = vmatprep.subr.mxu0 0.0
        %2795 = vmatpush1.msra.mxu0 0.0
        %2796 = vmatprep.subr.mxu0 0.0
        %2797 = vmatpush1.msra.mxu0 0.0
        %2798 = vmatprep.subr.mxu0 0.0
        %2799 = vmatpush1.msra.mxu0 0.0
        %2800 = vmatprep.subr.mxu0 0.0
        %2801 = vmatpush1.msra.mxu0 0.0
        %2802 = vmatprep.subr.mxu0 0.0
        %2803 = vmatpush1.msra.mxu0 0.0
        %2804 = vmatprep.subr.mxu0 0.0
        %2805 = vmatpush1.msra.mxu0 0.0
        %2806 = vmatprep.subr.mxu0 0.0
        %2807 = vmatpush1.msra.mxu0 %v2771
        %2808 = vmatprep.subr.mxu0 0.0
        %2809 = vmatpush2.msra.mxu0 0.0
        %2810 = vmatprep.subr.mxu0 0.0
        %2811 = vmatpush2.msra.mxu0 0.0
        %2812 = vmatprep.subr.mxu0 0.0
        %2813 = vmatpush2.msra.mxu0 0.0
        %2814 = vmatprep.subr.mxu0 0.0
        %2815 = vmatpush2.msra.mxu0 0.0
        %2816 = vmatprep.subr.mxu0 0.0
        %2817 = vmatpush2.msra.mxu0 0.0
        %2818 = vmatprep.subr.mxu0 0.0
        %2819 = vmatpush2.msra.mxu0 0.0
        %2820 = vmatprep.subr.mxu0 0.0
        %2821 = vmatpush2.msra.mxu0 0.0
        %2822 = vmatprep.subr.mxu0 0.0
        %2823 = vmatpush2.msra.mxu0 0.0
        %2824 = vmatprep.subr.mxu0 0.0
        %2825 = vmatpush2.msra.mxu0 0.0
        %2826 = vmatprep.subr.mxu0 0.0
        %2827 = vmatpush2.msra.mxu0 0.0
        %2828 = vmatprep.subr.mxu0 0.0
        %2829 = vmatpush2.msra.mxu0 0.0
        %2830 = vmatprep.subr.mxu0 0.0
        %2831 = vmatpush2.msra.mxu0 0.0
        %2832 = vmatprep.subr.mxu0 0.0
        %2833 = vmatpush2.msra.mxu0 0.0
        %2834 = vmatprep.subr.mxu0 0.0
        %2835 = vmatpush2.msra.mxu0 0.0
        %2836 = vmatprep.subr.mxu0 0.0
        %2837 = vmatpush2.msra.mxu0 0.0
        %2838 = vmatprep.subr.mxu0 0.0
        %2839 = vmatpush2.msra.mxu0 0.0
        %2840 = vmatprep.mubr.f32.mxu0 0.0
        %2841 = vmatmul.mubr.f32.gmra.mxu0 %v1122
        %v2842 = vpop.f32.mrf.mxu0
        %v2843 = vadd.f32 0.0, %v2842
        %v2844 = vpop.f32.mrf.mxu0
        %2845 = vmatprep.mubr.f32.mxu0 0.0
        %2846 = vmatmul.mubr.f32.gmra.mxu0 %v1124
        %v2847 = vpop.f32.mrf.mxu0
        %v2848 = vadd.f32 0.0, %v2847
        %v2849 = vpop.f32.mrf.mxu0
        %2850 = vmatprep.mubr.f32.mxu0 0.0
        %2851 = vmatmul.mubr.f32.gmra.mxu0 %v1126
        %v2852 = vpop.f32.mrf.mxu0
        %v2853 = vadd.f32 0.0, %v2852
        %v2854 = vpop.f32.mrf.mxu0
        %2855 = vmatprep.mubr.f32.mxu0 0.0
        %2856 = vmatmul.mubr.f32.gmra.mxu0 %v1128
        %v2857 = vpop.f32.mrf.mxu0
        %v2858 = vadd.f32 0.0, %v2857
        %v2859 = vpop.f32.mrf.mxu0
        %2860 = vmatprep.mubr.f32.mxu0 0.0
        %2861 = vmatmul.mubr.f32.gmra.mxu0 %v1130
        %v2862 = vpop.f32.mrf.mxu0
        %v2863 = vadd.f32 0.0, %v2862
        %v2864 = vpop.f32.mrf.mxu0
        %2865 = vmatprep.mubr.f32.mxu0 0.0
        %2866 = vmatmul.mubr.f32.gmra.mxu0 %v1132
        %v2867 = vpop.f32.mrf.mxu0
        %v2868 = vadd.f32 0.0, %v2867
        %v2869 = vpop.f32.mrf.mxu0
        %2870 = vmatprep.mubr.f32.mxu0 0.0
        %2871 = vmatmul.mubr.f32.gmra.mxu0 %v1134
        %v2872 = vpop.f32.mrf.mxu0
        %v2873 = vadd.f32 0.0, %v2872
        %v2874 = vpop.f32.mrf.mxu0
        %2875 = vmatprep.mubr.f32.mxu0 0.0
        %2876 = vmatmul.mubr.f32.gmra.mxu0 %v1136
        %v2877 = vpop.f32.mrf.mxu0
        %v2878 = vadd.f32 0.0, %v2877
        %v2879 = vpop.f32.mrf.mxu0
        %2880 = vmatprep.mubr.f32.mxu0 0.0
        %2881 = vmatmul.mubr.f32.gmra.mxu0 %v1138
        %v2882 = vpop.f32.mrf.mxu0
        %v2883 = vadd.f32 0.0, %v2882
        %v2884 = vpop.f32.mrf.mxu0
        %2885 = vmatprep.mubr.f32.mxu0 0.0
        %2886 = vmatmul.mubr.f32.gmra.mxu0 %v1140
        %v2887 = vpop.f32.mrf.mxu0
        %v2888 = vadd.f32 0.0, %v2887
        %v2889 = vpop.f32.mrf.mxu0
        %2890 = vmatprep.mubr.f32.mxu0 0.0
        %2891 = vmatmul.mubr.f32.gmra.mxu0 %v1142
        %v2892 = vpop.f32.mrf.mxu0
        %v2893 = vadd.f32 0.0, %v2892
        %v2894 = vpop.f32.mrf.mxu0
        %2895 = vmatprep.mubr.f32.mxu0 0.0
        %2896 = vmatmul.mubr.f32.gmra.mxu0 %v1144
        %v2897 = vpop.f32.mrf.mxu0
        %v2898 = vadd.f32 0.0, %v2897
        %v2899 = vpop.f32.mrf.mxu0
        %2900 = vmatprep.mubr.f32.mxu0 0.0
        %2901 = vmatmul.mubr.f32.gmra.mxu0 %v1146
        %v2902 = vpop.f32.mrf.mxu0
        %v2903 = vadd.f32 0.0, %v2902
        %v2904 = vpop.f32.mrf.mxu0
        %2905 = vmatprep.mubr.f32.mxu0 0.0
        %2906 = vmatmul.mubr.f32.gmra.mxu0 %v1148
        %v2907 = vpop.f32.mrf.mxu0
        %v2908 = vadd.f32 0.0, %v2907
        %v2909 = vpop.f32.mrf.mxu0
        %2910 = vmatprep.mubr.f32.mxu0 0.0
        %2911 = vmatmul.mubr.f32.gmra.mxu0 %v1150
        %v2912 = vpop.f32.mrf.mxu0
        %v2913 = vadd.f32 0.0, %v2912
        %v2914 = vpop.f32.mrf.mxu0
        %2915 = vmatprep.mubr.f32.mxu0 0.0
        %2916 = vmatmul.mubr.f32.gmra.mxu0 %v1152
        %v2917 = vpop.f32.mrf.mxu0
        %v2918 = vadd.f32 0.0, %v2917
        %v2919 = vpop.f32.mrf.mxu0
        %2920 = vmatprep.mubr.f32.mxu0 0.0
        %2921 = vmatmul.mubr.f32.gmra.mxu0 %v1154
        %v2922 = vpop.f32.mrf.mxu0
        %v2923 = vadd.f32 0.0, %v2922
        %v2924 = vpop.f32.mrf.mxu0
        %2925 = vmatprep.mubr.f32.mxu0 0.0
        %2926 = vmatmul.mubr.f32.gmra.mxu0 %v1156
        %v2927 = vpop.f32.mrf.mxu0
        %v2928 = vadd.f32 0.0, %v2927
        %v2929 = vpop.f32.mrf.mxu0
        %2930 = vmatprep.mubr.f32.mxu0 0.0
        %2931 = vmatmul.mubr.f32.gmra.mxu0 %v1158
        %v2932 = vpop.f32.mrf.mxu0
        %v2933 = vadd.f32 0.0, %v2932
        %v2934 = vpop.f32.mrf.mxu0
        %2935 = vmatprep.mubr.f32.mxu0 0.0
        %2936 = vmatmul.mubr.f32.gmra.mxu0 %v1160
        %v2937 = vpop.f32.mrf.mxu0
        %v2938 = vadd.f32 0.0, %v2937
        %v2939 = vpop.f32.mrf.mxu0
        %2940 = vmatprep.mubr.f32.mxu0 0.0
        %2941 = vmatmul.mubr.f32.gmra.mxu0 %v1162
        %v2942 = vpop.f32.mrf.mxu0
        %v2943 = vadd.f32 0.0, %v2942
        %v2944 = vpop.f32.mrf.mxu0
        %2945 = vmatprep.mubr.f32.mxu0 0.0
        %2946 = vmatmul.mubr.f32.gmra.mxu0 %v1164
        %v2947 = vpop.f32.mrf.mxu0
        %v2948 = vadd.f32 0.0, %v2947
        %v2949 = vpop.f32.mrf.mxu0
        %2950 = vmatprep.mubr.f32.mxu0 0.0
        %2951 = vmatmul.mubr.f32.gmra.mxu0 %v1166
        %v2952 = vpop.f32.mrf.mxu0
        %v2953 = vadd.f32 0.0, %v2952
        %v2954 = vpop.f32.mrf.mxu0
        %2955 = vmatprep.mubr.f32.mxu0 0.0
        %2956 = vmatmul.mubr.f32.gmra.mxu0 %v1168
        %v2957 = vpop.f32.mrf.mxu0
        %v2958 = vadd.f32 0.0, %v2957
        %v2959 = vpop.f32.mrf.mxu0
        %2960 = vmatprep.mubr.f32.mxu0 0.0
        %2961 = vmatmul.mubr.f32.gmra.mxu0 %v1170
        %v2962 = vpop.f32.mrf.mxu0
        %v2963 = vadd.f32 0.0, %v2962
        %v2964 = vpop.f32.mrf.mxu0
        %2965 = vmatprep.mubr.f32.mxu0 0.0
        %2966 = vmatmul.mubr.f32.gmra.mxu0 %v1172
        %v2967 = vpop.f32.mrf.mxu0
        %v2968 = vadd.f32 0.0, %v2967
        %v2969 = vpop.f32.mrf.mxu0
        %2970 = vmatprep.mubr.f32.mxu0 0.0
        %2971 = vmatmul.mubr.f32.gmra.mxu0 %v1174
        %v2972 = vpop.f32.mrf.mxu0
        %v2973 = vadd.f32 0.0, %v2972
        %v2974 = vpop.f32.mrf.mxu0
        %2975 = vmatprep.mubr.f32.mxu0 0.0
        %2976 = vmatmul.mubr.f32.gmra.mxu0 %v1176
        %v2977 = vpop.f32.mrf.mxu0
        %v2978 = vadd.f32 0.0, %v2977
        %v2979 = vpop.f32.mrf.mxu0
        %2980 = vmatprep.mubr.f32.mxu0 0.0
        %2981 = vmatmul.mubr.f32.gmra.mxu0 %v1973
        %v2982 = vpop.f32.mrf.mxu0
        %v2983 = vadd.f32 0.0, %v2982
        %v2984 = vpop.f32.mrf.mxu0
        %2985 = vmatprep.mubr.f32.mxu0 0.0
        %2986 = vmatmul.mubr.f32.gmra.mxu0 %v1975
        %v2987 = vpop.f32.mrf.mxu0
        %v2988 = vadd.f32 0.0, %v2987
        %v2989 = vpop.f32.mrf.mxu0
        %2990 = vmatprep.mubr.f32.mxu0 0.0
        %2991 = vmatmul.mubr.f32.gmra.mxu0 %v2772
        %v2992 = vpop.f32.mrf.mxu0
        %v2993 = vadd.f32 0.0, %v2992
        %v2994 = vpop.f32.mrf.mxu0
        %2995 = vmatprep.mubr.f32.mxu0 0.0
        %2996 = vmatmul.mubr.f32.gmra.mxu0 %v2774
        %v2997 = vpop.f32.mrf.mxu0
        %v2998 = vadd.f32 0.0, %v2997
        %v2999 = vpop.f32.mrf.mxu0
        %3000 = vdwg.mxu0
        %v3001 = vadd.f32 %v2734, %v2843
        %v3002 = vadd.f32 %v2735, %v2848
        %v3003 = vadd.f32 %v2736, %v2853
        %v3004 = vadd.f32 %v2737, %v2858
        %v3005 = vadd.f32 %v2738, %v2863
        %v3006 = vadd.f32 %v2739, %v2868
        %v3007 = vadd.f32 %v2740, %v2873
        %v3008 = vadd.f32 %v2741, %v2878
        %v3009 = vadd.f32 %v2742, %v2883
        %v3010 = vadd.f32 %v2743, %v2888
        %v3011 = vadd.f32 %v2744, %v2893
        %v3012 = vadd.f32 %v2745, %v2898
        %v3013 = vadd.f32 %v2746, %v2903
        %v3014 = vadd.f32 %v2747, %v2908
        %v3015 = vadd.f32 %v2748, %v2913
        %v3016 = vadd.f32 %v2749, %v2918
        %v3017 = vadd.f32 %v2750, %v2923
        %v3018 = vadd.f32 %v2751, %v2928
        %v3019 = vadd.f32 %v2752, %v2933
        %v3020 = vadd.f32 %v2753, %v2938
        %v3021 = vadd.f32 %v2754, %v2943
        %v3022 = vadd.f32 %v2755, %v2948
        %v3023 = vadd.f32 %v2756, %v2953
        %v3024 = vadd.f32 %v2757, %v2958
        %v3025 = vadd.f32 %v2758, %v2963
        %v3026 = vadd.f32 %v2759, %v2968
        %v3027 = vadd.f32 %v2760, %v2973
        %v3028 = vadd.f32 %v2761, %v2978
        %v3029 = vadd.f32 %v2762, %v2983
        %v3030 = vadd.f32 %v2763, %v2988
        %v3031 = vadd.f32 %v2764, %v2993
        %v3032 = vadd.f32 %v2765, %v2998
        %v3033 = vld [vmem:[%s260] sm:$0x1]
        %v3035 = vlaneseq
        %v3036 = vshrl.u32 %v3035, 7
        %v3037 = vsub.s32 0, %v3036
        %v3038 = vrot.slane %v3033, %v3037
        %v3040 = vmul.f32 %v3001, %v3038
        %v3041 = vmul.f32 %v3002, %v3038
        %v3042 = vmul.f32 %v3003, %v3038
        %v3043 = vmul.f32 %v3004, %v3038
        %v3044 = vmul.f32 %v3005, %v3038
        %v3045 = vmul.f32 %v3006, %v3038
        %v3046 = vmul.f32 %v3007, %v3038
        %v3047 = vmul.f32 %v3008, %v3038
        %v3048 = vmul.f32 %v3009, %v3038
        %v3049 = vmul.f32 %v3010, %v3038
        %v3050 = vmul.f32 %v3011, %v3038
        %v3051 = vmul.f32 %v3012, %v3038
        %v3052 = vmul.f32 %v3013, %v3038
        %v3053 = vmul.f32 %v3014, %v3038
        %v3054 = vmul.f32 %v3015, %v3038
        %v3055 = vmul.f32 %v3016, %v3038
        %v3056 = vmul.f32 %v3017, %v3038
        %v3057 = vmul.f32 %v3018, %v3038
        %v3058 = vmul.f32 %v3019, %v3038
        %v3059 = vmul.f32 %v3020, %v3038
        %v3060 = vmul.f32 %v3021, %v3038
        %v3061 = vmul.f32 %v3022, %v3038
        %v3062 = vmul.f32 %v3023, %v3038
        %v3063 = vmul.f32 %v3024, %v3038
        %v3064 = vmul.f32 %v3025, %v3038
        %v3065 = vmul.f32 %v3026, %v3038
        %v3066 = vmul.f32 %v3027, %v3038
        %v3067 = vmul.f32 %v3028, %v3038
        %v3068 = vmul.f32 %v3029, %v3038
        %v3069 = vmul.f32 %v3030, %v3038
        %v3070 = vmul.f32 %v3031, %v3038
        %v3071 = vmul.f32 %v3032, %v3038
        %v3072 = vld [vmem:[%s263] sm:$0x1]
        %v3074 = vlaneseq
        %v3075 = vshrl.u32 %v3074, 7
        %v3076 = vsub.s32 0, %v3075
        %v3077 = vrot.slane %v3072, %v3076
        %v3079 = vadd.f32 %v3040, %v3077
        %v3080 = vadd.f32 %v3041, %v3077
        %v3081 = vadd.f32 %v3042, %v3077
        %v3082 = vadd.f32 %v3043, %v3077
        %v3083 = vadd.f32 %v3044, %v3077
        %v3084 = vadd.f32 %v3045, %v3077
        %v3085 = vadd.f32 %v3046, %v3077
        %v3086 = vadd.f32 %v3047, %v3077
        %v3087 = vadd.f32 %v3048, %v3077
        %v3088 = vadd.f32 %v3049, %v3077
        %v3089 = vadd.f32 %v3050, %v3077
        %v3090 = vadd.f32 %v3051, %v3077
        %v3091 = vadd.f32 %v3052, %v3077
        %v3092 = vadd.f32 %v3053, %v3077
        %v3093 = vadd.f32 %v3054, %v3077
        %v3094 = vadd.f32 %v3055, %v3077
        %v3095 = vadd.f32 %v3056, %v3077
        %v3096 = vadd.f32 %v3057, %v3077
        %v3097 = vadd.f32 %v3058, %v3077
        %v3098 = vadd.f32 %v3059, %v3077
        %v3099 = vadd.f32 %v3060, %v3077
        %v3100 = vadd.f32 %v3061, %v3077
        %v3101 = vadd.f32 %v3062, %v3077
        %v3102 = vadd.f32 %v3063, %v3077
        %v3103 = vadd.f32 %v3064, %v3077
        %v3104 = vadd.f32 %v3065, %v3077
        %v3105 = vadd.f32 %v3066, %v3077
        %v3106 = vadd.f32 %v3067, %v3077
        %v3107 = vadd.f32 %v3068, %v3077
        %v3108 = vadd.f32 %v3069, %v3077
        %v3109 = vadd.f32 %v3070, %v3077
        %v3110 = vadd.f32 %v3071, %v3077
        %3111 = vst [vmem:[%s248] sm:$0xff] %v3079
        %3112 = vst [vmem:[%s248 + $0x8] sm:$0xff] %v3080
        %3113 = vst [vmem:[%s248 + $0x10] sm:$0xff] %v3081
        %3114 = vst [vmem:[%s248 + $0x18] sm:$0xff] %v3082
        %3115 = vst [vmem:[%s248 + $0x20] sm:$0xff] %v3083
        %3116 = vst [vmem:[%s248 + $0x28] sm:$0xff] %v3084
        %3117 = vst [vmem:[%s248 + $0x30] sm:$0xff] %v3085
        %3118 = vst [vmem:[%s248 + $0x38] sm:$0xff] %v3086
        %3119 = vst [vmem:[%s248 + $0x40] sm:$0xff] %v3087
        %3120 = vst [vmem:[%s248 + $0x48] sm:$0xff] %v3088
        %3121 = vst [vmem:[%s248 + $0x50] sm:$0xff] %v3089
        %3122 = vst [vmem:[%s248 + $0x58] sm:$0xff] %v3090
        %3123 = vst [vmem:[%s248 + $0x60] sm:$0xff] %v3091
        %3124 = vst [vmem:[%s248 + $0x68] sm:$0xff] %v3092
        %3125 = vst [vmem:[%s248 + $0x70] sm:$0xff] %v3093
        %3126 = vst [vmem:[%s248 + $0x78] sm:$0xff] %v3094
        %3127 = vst [vmem:[%s248 + $0x80] sm:$0xff] %v3095
        %3128 = vst [vmem:[%s248 + $0x88] sm:$0xff] %v3096
        %3129 = vst [vmem:[%s248 + $0x90] sm:$0xff] %v3097
        %3130 = vst [vmem:[%s248 + $0x98] sm:$0xff] %v3098
        %3131 = vst [vmem:[%s248 + $0xa0] sm:$0xff] %v3099
        %3132 = vst [vmem:[%s248 + $0xa8] sm:$0xff] %v3100
        %3133 = vst [vmem:[%s248 + $0xb0] sm:$0xff] %v3101
        %3134 = vst [vmem:[%s248 + $0xb8] sm:$0xff] %v3102
        %3135 = vst [vmem:[%s248 + $0xc0] sm:$0xff] %v3103
        %3136 = vst [vmem:[%s248 + $0xc8] sm:$0xff] %v3104
        %3137 = vst [vmem:[%s248 + $0xd0] sm:$0xff] %v3105
        %3138 = vst [vmem:[%s248 + $0xd8] sm:$0xff] %v3106
        %3139 = vst [vmem:[%s248 + $0xe0] sm:$0xff] %v3107
        %3140 = vst [vmem:[%s248 + $0xe8] sm:$0xff] %v3108
        %3141 = vst [vmem:[%s248 + $0xf0] sm:$0xff] %v3109
        %3142 = vst [vmem:[%s248 + $0xf8] sm:$0xff] %v3110
        %s3143 = sand.u32 %s153, 1
        %s3144 = scalar_lea.sflag [#allocation3], %s3143
        %s3145 = sand.u32 %s153, 1
        %s3146 = smul.addr %s3145, 256
        %s3147 = scalar_lea.vmem [#allocation2], %s3146
        // Predicated region
        $region37: #{tpu_custom_call.1} parent=35 // pred_check
          %p3148 = pneg %p163
        $region38: #{tpu_custom_call.1} parent=35 // pred_check_branch
          %3150 = sbr.rel (%p3148) target = $region40
        $region39: #{tpu_custom_call.1} parent=35 // pred_region
          %s3151 = smul.u32 16, %s25
          %s3153 = ssub.s32 4096, 4096
          %3154 = vsyncadd %s3144, %s3153
          %s3155 = smul.addr %s3151, 2
          %s3156 = sadd.s32 %s24, %s3155
          %s3157 = smul.addr %s23, 32
          %s3158 = sadd.s32 %s3156, %s3157
          %s3159 = smul.addr %s3158, 128
          %s3160 = scalar_lea.hbm %s4, %s3159
          %s3161 = sshll.u32 %s3147, 4
          %s3162 = int_to_ptr.vmem [resolvable:$true] %s3161
          %3167 = dma.vmem_to_hbm [thread:$0]  %s3162, 4096, %s3160, %s3144, 128, 128, 8
        $region40: #{tpu_custom_call.1} parent=35 // pred_fallthru
          _
      $region36: #{tpu_custom_call.1} parent=5 // pred_fallthru
        _
      %p3168 = scmp.le.s32.totalorder 2, %s13
      // Predicated region
      $region41: #{tpu_custom_call.1} parent=5 // pred_check
        %p3169 = pneg %p3168
      $region42: #{tpu_custom_call.1} parent=5 // pred_check_branch
        %3171 = sbr.rel (%p3169) target = $region44
      $region43: #{tpu_custom_call.1} parent=5 // pred_region
        %s3172 = ssub.s32 %s13, 2
        // Predicated region
        $region45: #{tpu_custom_call.1} parent=43 // pred_check
          %p3173 = pneg %p169
        $region46: #{tpu_custom_call.1} parent=43 // pred_check_branch
          %3175 = sbr.rel (%p3173) target = $region48
        $region47: #{tpu_custom_call.1} parent=43 // pred_region
          %s3176 = sand.u32 %s154, 1
          %s3177 = scalar_lea.sflag [#allocation3], %s3176
          %s3178 = sand.u32 %s154, 1
          %s3179 = smul.addr %s3178, 256
          %s3180 = scalar_lea.vmem [#allocation2], %s3179
          %3181 = dma.done %s3177, 4096
        $region48: #{tpu_custom_call.1} parent=43 // pred_fallthru
          _
      $region44: #{tpu_custom_call.1} parent=5 // pred_fallthru
        _
    $region6: #{tpu_custom_call.1} parent=1 // loop_footer
      %s17 = sadd.s32 1, %s13
    $region7: #{tpu_custom_call.1} parent=1 // loop_footer_branch
      %12 = sbr.rel target = $region3
    $region8: #{tpu_custom_call.1} parent=1 // loop_exit
      _
    %3182 = vsyncpa [#allocation3], 1
    %s3183 = scalar_lea.sflag [#allocation3], 1
    %3184 = vsyncpa %s3183, 1

</llo_original>
